<compile_context>
chip_gen: v7x
topology: tpu7x:2x2x1
jax: 0.10.0
libtpu: 0.0.40
codegen_flags: <defaults>
</compile_context>

<pallas_src>
import functools

import jax
import jax.numpy as jnp
from jax.experimental import pallas as pl
from jax.experimental.pallas import tpu as pltpu

LANE = 128


def _round_up(x, m):
    return ((x + m - 1) // m) * m


# ---------------------------------------------------------------------------
# Fused whole-model Pallas kernel
# ---------------------------------------------------------------------------
def _make_fused_kernel(seq, batch, hidden, n_layers):
    """Build the fused kernel: n_layers of BiLSTM + fc, single invocation."""
    S, B, H = seq, batch, hidden
    G4 = 4 * H          # per-direction gate width  [i | f | g | o]
    G8 = 8 * H          # both directions packed along lanes (fwd | bwd)

    def kernel(*refs):
        x_ref = refs[0]                            # (S*B, in0)  f32
        layer_refs = refs[1:1 + 3 * n_layers]      # (w_ih, w_hh, b) per layer
        fc_w_ref = refs[1 + 3 * n_layers]          # (2H, out_pad) bf16
        fc_b_ref = refs[2 + 3 * n_layers]          # (1, out_pad)  f32
        out_ref = refs[3 + 3 * n_layers]           # (S*B, out_pad) f32
        gx_ref = refs[4 + 3 * n_layers]            # (S*B, 8H) f32 scratch
        act_ref = refs[5 + 3 * n_layers]           # (S*B, 2H) f32 scratch

        # Lane mask for the tanh ("g") gate — hoisted out of all loops.
        col = jax.lax.broadcasted_iota(jnp.int32, (B, G4), 1)
        g_mask = (col >= 2 * H) & (col < 3 * H)

        def run_layer(x_bf16, w_ih_ref, w_hh_ref, b_ref):
            # --- input projection for all timesteps & both directions ------
            # one (S*B, in) x (in, 8H) matmul, 256-wide N on the MXU.
            gx_ref[...] = (
                jnp.dot(x_bf16, w_ih_ref[...], preferred_element_type=jnp.float32)
                + b_ref[...]
            )
            # --- recurrence (fully unrolled; W_hh hoisted out of the loop) -
            w_hh = w_hh_ref[...]                       # (2H, 8H) bf16, block-diag
            h_f = jnp.zeros((B, H), jnp.float32)
            c_f = jnp.zeros((B, H), jnp.float32)
            h_b = jnp.zeros((B, H), jnp.float32)
            c_b = jnp.zeros((B, H), jnp.float32)
            for t in range(S):
                tb = S - 1 - t
                h_cat = jnp.concatenate([h_f, h_b], axis=-1).astype(jnp.bfloat16)
                rec = jnp.dot(h_cat, w_hh, preferred_element_type=jnp.float32)  # (B, 8H)
                gates_f = gx_ref[t * B:(t + 1) * B, 0:G4] + rec[:, 0:G4]
                gates_b = gx_ref[tb * B:(tb + 1) * B, G4:G8] + rec[:, G4:G8]
                # full-tile EUP activations combined with a lane mask
                a_f = jnp.where(g_mask, jnp.tanh(gates_f), jax.nn.sigmoid(gates_f))
                a_b = jnp.where(g_mask, jnp.tanh(gates_b), jax.nn.sigmoid(gates_b))
                i_f, f_f, g_f, o_f = (a_f[:, 0:H], a_f[:, H:2 * H],
                                      a_f[:, 2 * H:3 * H], a_f[:, 3 * H:4 * H])
                i_b, f_b, g_b, o_b = (a_b[:, 0:H], a_b[:, H:2 * H],
                                      a_b[:, 2 * H:3 * H], a_b[:, 3 * H:4 * H])
                c_f = f_f * c_f + i_f * g_f
                h_f = o_f * jnp.tanh(c_f)
                c_b = f_b * c_b + i_b * g_b
                h_b = o_b * jnp.tanh(c_b)
                act_ref[t * B:(t + 1) * B, 0:H] = h_f
                act_ref[tb * B:(tb + 1) * B, H:2 * H] = h_b

        x_in = x_ref[...].astype(jnp.bfloat16)
        for l in range(n_layers):
            run_layer(x_in, layer_refs[3 * l], layer_refs[3 * l + 1],
                      layer_refs[3 * l + 2])
            x_in = act_ref[...].astype(jnp.bfloat16)   # next layer's input

        # --- fc head, fused; lane-dense (128-wide padded) output -----------
        out_ref[...] = (
            jnp.dot(x_in, fc_w_ref[...], preferred_element_type=jnp.float32)
            + fc_b_ref[...]
        )

    return kernel


def _vmem_spec():
    return pl.BlockSpec(memory_space=pltpu.MemorySpace.VMEM)


def _fused_forward_call(x2d, packed_lstm, fc_w, fc_b, *, seq, batch, hidden,
                        n_layers):
    out_pad = fc_w.shape[1]
    kernel = _make_fused_kernel(seq, batch, hidden, n_layers)
    inputs = [x2d]
    for lp in packed_lstm:
        inputs += [lp["w_ih"], lp["w_hh"], lp["b"]]
    inputs += [fc_w, fc_b]
    return pl.pallas_call(
        kernel,
        out_shape=jax.ShapeDtypeStruct((seq * batch, out_pad), jnp.float32),
        in_specs=[_vmem_spec()] * len(inputs),
        out_specs=_vmem_spec(),
        scratch_shapes=[
            pltpu.VMEM((seq * batch, 8 * hidden), jnp.float32),  # gx
            pltpu.VMEM((seq * batch, 2 * hidden), jnp.float32),  # layer acts
        ],
    )(*inputs)


# ---------------------------------------------------------------------------
# Parameters: init (matches nn.LSTM layout) + packing into fused layouts
# ---------------------------------------------------------------------------
def init_params(key, *, word_vocab, char_vocab, emb_dim, hidden_dim,
                output_dim, n_layers):
    ks = jax.random.split(key, 4 + 6 * n_layers * 2)
    ki = iter(ks)
    scale = 0.1
    params = {
        "word_emb": scale * jax.random.normal(next(ki), (word_vocab, emb_dim), jnp.float32),
        "char_emb": scale * jax.random.normal(next(ki), (char_vocab, emb_dim), jnp.float32),
        "fc_w": scale * jax.random.normal(next(ki), (2 * hidden_dim, output_dim), jnp.float32),
        "fc_b": scale * jax.random.normal(next(ki), (1, output_dim), jnp.float32),
        "lstm": [],
    }
    for layer in range(n_layers):
        in_dim = 2 * emb_dim if layer == 0 else 2 * hidden_dim
        layer_p = []
        for _direction in range(2):  # 0=fwd, 1=bwd
            w_ih = scale * jax.random.normal(next(ki), (in_dim, 4 * hidden_dim), jnp.float32)
            w_hh = scale * jax.random.normal(next(ki), (hidden_dim, 4 * hidden_dim), jnp.float32)
            b_ih = scale * jax.random.normal(next(ki), (1, 4 * hidden_dim), jnp.float32)
            b_hh = scale * jax.random.normal(next(ki), (1, 4 * hidden_dim), jnp.float32)
            layer_p.append({"w_ih": w_ih, "w_hh": w_hh, "b": b_ih + b_hh})
        params["lstm"].append(layer_p)
    return params


def pack_params(params, *, hidden_dim, output_dim):
    """Pack per-direction weights into the fused/MXU-friendly layouts (bf16)."""
    H = hidden_dim
    out_pad = _round_up(max(output_dim, LANE), LANE)
    packed = {
        "word_emb": params["word_emb"],
        "char_emb": params["char_emb"],
        "lstm": [],
    }
    for fwd, bwd in params["lstm"]:
        # directions concatenated along the gate axis -> 8H (=256) wide N
        w_ih = jnp.concatenate([fwd["w_ih"], bwd["w_ih"]], axis=1).astype(jnp.bfloat16)
        w_hh = jnp.zeros((2 * H, 8 * H), jnp.float32)
        w_hh = w_hh.at[:H, :4 * H].set(fwd["w_hh"])          # block-diagonal
        w_hh = w_hh.at[H:, 4 * H:].set(bwd["w_hh"])
        b = jnp.concatenate([fwd["b"], bwd["b"]], axis=1)    # (1, 8H) f32
        packed["lstm"].append({"w_ih": w_ih,
                               "w_hh": w_hh.astype(jnp.bfloat16),
                               "b": b})
    fc_w = jnp.zeros((2 * H, out_pad), jnp.float32).at[:, :output_dim].set(params["fc_w"])
    fc_b = jnp.zeros((1, out_pad), jnp.float32).at[:, :output_dim].set(params["fc_b"])
    packed["fc_w"] = fc_w.astype(jnp.bfloat16)
    packed["fc_b"] = fc_b
    return packed


# ---------------------------------------------------------------------------
# Forward pass
# ---------------------------------------------------------------------------
@functools.partial(jax.jit, static_argnames=("hidden_dim", "n_layers", "output_dim"))
def pos_tagger_forward(packed, words, chars, *, hidden_dim, n_layers, output_dim):
    """words, chars: int32 (seq_len, batch). Returns (seq_len, batch, output_dim)."""
    # Embedding lookups (XLA glue). Dropout == identity (eval mode).
    words_embedded = jnp.take(packed["word_emb"], words, axis=0)   # (S, B, E)
    chars_embedded = jnp.take(packed["char_emb"], chars, axis=0)   # (S, B, E)
    word_rep = jnp.concatenate((chars_embedded, words_embedded), axis=-1)  # (S, B, 2E)
    S, B, F = word_rep.shape
    x2d = word_rep.reshape(S * B, F)

    logits2d = _fused_forward_call(
        x2d, packed["lstm"], packed["fc_w"], packed["fc_b"],
        seq=S, batch=B, hidden=hidden_dim, n_layers=n_layers)

    return logits2d[:, :output_dim].reshape(S, B, output_dim)


# ---------------------------------------------------------------------------
# Main
# ---------------------------------------------------------------------------
if __name__ == "__main__":
    SEQ_LEN = 8
    BATCH = 2
    EMB_DIM = 16          # word_encoder.embedding_dim == char_encoder.embedding_dim
    HIDDEN_DIM = 32
    OUTPUT_DIM = 10
    N_LAYERS = 2
    WORD_VOCAB = 50
    CHAR_VOCAB = 40

    key = jax.random.PRNGKey(0)
    k_params, k_words, k_chars = jax.random.split(key, 3)

    params = init_params(
        k_params,
        word_vocab=WORD_VOCAB,
        char_vocab=CHAR_VOCAB,
        emb_dim=EMB_DIM,
        hidden_dim=HIDDEN_DIM,
        output_dim=OUTPUT_DIM,
        n_layers=N_LAYERS,
    )
    packed = pack_params(params, hidden_dim=HIDDEN_DIM, output_dim=OUTPUT_DIM)

    words = jax.random.randint(k_words, (SEQ_LEN, BATCH), 0, WORD_VOCAB, dtype=jnp.int32)
    chars = jax.random.randint(k_chars, (SEQ_LEN, BATCH), 0, CHAR_VOCAB, dtype=jnp.int32)

    logits = pos_tagger_forward(packed, words, chars,
                                hidden_dim=HIDDEN_DIM, n_layers=N_LAYERS,
                                output_dim=OUTPUT_DIM)
    jax.block_until_ready(logits)

    assert logits.shape == (SEQ_LEN, BATCH, OUTPUT_DIM), logits.shape
    assert logits.dtype == jnp.float32
    assert bool(jnp.all(jnp.isfinite(logits)))
    print("KERNEL_OK")
</pallas_src>

<mosaic_0001>
module attributes {stable_mosaic.version = 11 : i64} {
  func.func @kernel(%arg0: memref<16x32xf32, #tpu.memory_space<vmem>>, %arg1: memref<32x256xbf16, #tpu.memory_space<vmem>>, %arg2: memref<64x256xbf16, #tpu.memory_space<vmem>>, %arg3: memref<1x256xf32, #tpu.memory_space<vmem>>, %arg4: memref<64x256xbf16, #tpu.memory_space<vmem>>, %arg5: memref<64x256xbf16, #tpu.memory_space<vmem>>, %arg6: memref<1x256xf32, #tpu.memory_space<vmem>>, %arg7: memref<64x128xbf16, #tpu.memory_space<vmem>>, %arg8: memref<1x128xf32, #tpu.memory_space<vmem>>, %arg9: memref<16x128xf32, #tpu.memory_space<vmem>>, %arg10: memref<16x256xf32, #tpu.memory_space<vmem>>, %arg11: memref<16x64xf32, #tpu.memory_space<vmem>>) attributes {dimension_semantics = [], scalar_prefetch = 0 : i64, scratch_operands = 2 : i64, tpu.core_type = #tpu.core_type<tc>} {
    %0 = tpu.iota {dimensions = array<i32: 1>} : vector<2x128xi32>
    %c64_i32 = arith.constant 64 : i32
    %1 = vector.broadcast %c64_i32 : i32 to vector<2x128xi32>
    %2 = arith.cmpi sge, %0, %1 : vector<2x128xi32>
    %c96_i32 = arith.constant 96 : i32
    %3 = vector.broadcast %c96_i32 : i32 to vector<2x128xi32>
    %4 = arith.cmpi slt, %0, %3 : vector<2x128xi32>
    %5 = arith.andi %2, %4 : vector<2x128xi1>
    %c0 = arith.constant 0 : index
    %c0_0 = arith.constant 0 : index
    %6 = vector.load %arg0[%c0, %c0_0] : memref<16x32xf32, #tpu.memory_space<vmem>>, vector<16x32xf32>
    %7 = arith.truncf %6 : vector<16x32xf32> to vector<16x32xbf16>
    %c0_1 = arith.constant 0 : index
    %c0_2 = arith.constant 0 : index
    %8 = vector.load %arg1[%c0_1, %c0_2] : memref<32x256xbf16, #tpu.memory_space<vmem>>, vector<32x256xbf16>
    %cst = arith.constant dense<0.000000e+00> : vector<16x256xf32>
    %9 = tpu.matmul %7, %8, %cst {dimension_numbers = #tpu.dot_dimension_numbers<[1], [0], [0], [1], [0, 0, 1, 1], [], []>} : vector<16x32xbf16>, vector<32x256xbf16>, vector<16x256xf32> -> vector<16x256xf32>
    %c0_3 = arith.constant 0 : index
    %c0_4 = arith.constant 0 : index
    %10 = vector.load %arg3[%c0_3, %c0_4] : memref<1x256xf32, #tpu.memory_space<vmem>>, vector<1x256xf32>
    %11 = vector.broadcast %10 : vector<1x256xf32> to vector<16x256xf32>
    %12 = arith.addf %9, %11 : vector<16x256xf32>
    %c0_5 = arith.constant 0 : index
    %c0_6 = arith.constant 0 : index
    %13 = vector.load %arg10[%c0_5, %c0_6] : memref<16x256xf32, #tpu.memory_space<vmem>>, vector<16x256xf32>
    tpu.vector_store %arg10[%c0_5, %c0_6], %12 {strides = array<i32>} : memref<16x256xf32, #tpu.memory_space<vmem>>, vector<16x256xf32>,
    %c0_7 = arith.constant 0 : index
    %c0_8 = arith.constant 0 : index
    %14 = vector.load %arg2[%c0_7, %c0_8] : memref<64x256xbf16, #tpu.memory_space<vmem>>, vector<64x256xbf16>
    %cst_9 = arith.constant 0.000000e+00 : f32
    %15 = vector.broadcast %cst_9 : f32 to vector<2x32xf32>
    %cst_10 = arith.constant 0.000000e+00 : f32
    %16 = vector.broadcast %cst_10 : f32 to vector<2x32xf32>
    %cst_11 = arith.constant 0.000000e+00 : f32
    %17 = vector.broadcast %cst_11 : f32 to vector<2x32xf32>
    %cst_12 = arith.constant 0.000000e+00 : f32
    %18 = vector.broadcast %cst_12 : f32 to vector<2x32xf32>
    %19 = tpu.concatenate %15, %17 in 1 : vector<2x32xf32>, vector<2x32xf32> -> vector<2x64xf32>
    %20 = arith.truncf %19 : vector<2x64xf32> to vector<2x64xbf16>
    %cst_13 = arith.constant dense<0.000000e+00> : vector<2x256xf32>
    %21 = tpu.matmul %20, %14, %cst_13 {dimension_numbers = #tpu.dot_dimension_numbers<[1], [0], [0], [1], [0, 0, 1, 1], [], []>} : vector<2x64xbf16>, vector<64x256xbf16>, vector<2x256xf32> -> vector<2x256xf32>
    %c0_14 = arith.constant 0 : index
    %c0_15 = arith.constant 0 : index
    %22 = vector.load %arg10[%c0_14, %c0_15] : memref<16x256xf32, #tpu.memory_space<vmem>>, vector<2x128xf32>
    %23 = vector.extract_strided_slice %21 {offsets = [0, 0], sizes = [2, 128], strides = [1, 1]} : vector<2x256xf32> to vector<2x128xf32>
    %24 = arith.addf %22, %23 : vector<2x128xf32>
    %c14 = arith.constant 14 : index
    %c128 = arith.constant 128 : index
    %25 = vector.load %arg10[%c14, %c128] : memref<16x256xf32, #tpu.memory_space<vmem>>, vector<2x128xf32>
    %26 = vector.extract_strided_slice %21 {offsets = [0, 128], sizes = [2, 128], strides = [1, 1]} : vector<2x256xf32> to vector<2x128xf32>
    %27 = arith.addf %25, %26 : vector<2x128xf32>
    %28 = math.tanh %24 : vector<2x128xf32>
    %29 = arith.negf %24 : vector<2x128xf32>
    %30 = math.exp %29 : vector<2x128xf32>
    %cst_16 = arith.constant 1.000000e+00 : f32
    %31 = vector.broadcast %cst_16 : f32 to vector<2x128xf32>
    %32 = arith.addf %31, %30 : vector<2x128xf32>
    %33 = arith.divf %31, %32 : vector<2x128xf32>
    %34 = arith.select %5, %28, %33 : vector<2x128xi1>, vector<2x128xf32>
    %35 = math.tanh %27 : vector<2x128xf32>
    %36 = arith.negf %27 : vector<2x128xf32>
    %37 = math.exp %36 : vector<2x128xf32>
    %cst_17 = arith.constant 1.000000e+00 : f32
    %38 = vector.broadcast %cst_17 : f32 to vector<2x128xf32>
    %39 = arith.addf %38, %37 : vector<2x128xf32>
    %40 = arith.divf %38, %39 : vector<2x128xf32>
    %41 = arith.select %5, %35, %40 : vector<2x128xi1>, vector<2x128xf32>
    %42 = vector.extract_strided_slice %34 {offsets = [0, 0], sizes = [2, 32], strides = [1, 1]} : vector<2x128xf32> to vector<2x32xf32>
    %43 = vector.extract_strided_slice %34 {offsets = [0, 32], sizes = [2, 32], strides = [1, 1]} : vector<2x128xf32> to vector<2x32xf32>
    %44 = vector.extract_strided_slice %34 {offsets = [0, 64], sizes = [2, 32], strides = [1, 1]} : vector<2x128xf32> to vector<2x32xf32>
    %45 = vector.extract_strided_slice %34 {offsets = [0, 96], sizes = [2, 32], strides = [1, 1]} : vector<2x128xf32> to vector<2x32xf32>
    %46 = vector.extract_strided_slice %41 {offsets = [0, 0], sizes = [2, 32], strides = [1, 1]} : vector<2x128xf32> to vector<2x32xf32>
    %47 = vector.extract_strided_slice %41 {offsets = [0, 32], sizes = [2, 32], strides = [1, 1]} : vector<2x128xf32> to vector<2x32xf32>
    %48 = vector.extract_strided_slice %41 {offsets = [0, 64], sizes = [2, 32], strides = [1, 1]} : vector<2x128xf32> to vector<2x32xf32>
    %49 = vector.extract_strided_slice %41 {offsets = [0, 96], sizes = [2, 32], strides = [1, 1]} : vector<2x128xf32> to vector<2x32xf32>
    %50 = arith.mulf %43, %16 : vector<2x32xf32>
    %51 = arith.mulf %42, %44 : vector<2x32xf32>
    %52 = arith.addf %50, %51 : vector<2x32xf32>
    %53 = math.tanh %52 : vector<2x32xf32>
    %54 = arith.mulf %45, %53 : vector<2x32xf32>
    %55 = arith.mulf %47, %18 : vector<2x32xf32>
    %56 = arith.mulf %46, %48 : vector<2x32xf32>
    %57 = arith.addf %55, %56 : vector<2x32xf32>
    %58 = math.tanh %57 : vector<2x32xf32>
    %59 = arith.mulf %49, %58 : vector<2x32xf32>
    %c0_18 = arith.constant 0 : index
    %c0_19 = arith.constant 0 : index
    %60 = vector.load %arg11[%c0_18, %c0_19] : memref<16x64xf32, #tpu.memory_space<vmem>>, vector<2x32xf32>
    tpu.vector_store %arg11[%c0_18, %c0_19], %54 {strides = array<i32>} : memref<16x64xf32, #tpu.memory_space<vmem>>, vector<2x32xf32>,
    %c14_20 = arith.constant 14 : index
    %c32 = arith.constant 32 : index
    %61 = vector.load %arg11[%c14_20, %c32] : memref<16x64xf32, #tpu.memory_space<vmem>>, vector<2x32xf32>
    tpu.vector_store %arg11[%c14_20, %c32], %59 {strides = array<i32>} : memref<16x64xf32, #tpu.memory_space<vmem>>, vector<2x32xf32>,
    %62 = tpu.concatenate %54, %59 in 1 : vector<2x32xf32>, vector<2x32xf32> -> vector<2x64xf32>
    %63 = arith.truncf %62 : vector<2x64xf32> to vector<2x64xbf16>
    %cst_21 = arith.constant dense<0.000000e+00> : vector<2x256xf32>
    %64 = tpu.matmul %63, %14, %cst_21 {dimension_numbers = #tpu.dot_dimension_numbers<[1], [0], [0], [1], [0, 0, 1, 1], [], []>} : vector<2x64xbf16>, vector<64x256xbf16>, vector<2x256xf32> -> vector<2x256xf32>
    %c2 = arith.constant 2 : index
    %c0_22 = arith.constant 0 : index
    %65 = vector.load %arg10[%c2, %c0_22] : memref<16x256xf32, #tpu.memory_space<vmem>>, vector<2x128xf32>
    %66 = vector.extract_strided_slice %64 {offsets = [0, 0], sizes = [2, 128], strides = [1, 1]} : vector<2x256xf32> to vector<2x128xf32>
    %67 = arith.addf %65, %66 : vector<2x128xf32>
    %c12 = arith.constant 12 : index
    %c128_23 = arith.constant 128 : index
    %68 = vector.load %arg10[%c12, %c128_23] : memref<16x256xf32, #tpu.memory_space<vmem>>, vector<2x128xf32>
    %69 = vector.extract_strided_slice %64 {offsets = [0, 128], sizes = [2, 128], strides = [1, 1]} : vector<2x256xf32> to vector<2x128xf32>
    %70 = arith.addf %68, %69 : vector<2x128xf32>
    %71 = math.tanh %67 : vector<2x128xf32>
    %72 = arith.negf %67 : vector<2x128xf32>
    %73 = math.exp %72 : vector<2x128xf32>
    %cst_24 = arith.constant 1.000000e+00 : f32
    %74 = vector.broadcast %cst_24 : f32 to vector<2x128xf32>
    %75 = arith.addf %74, %73 : vector<2x128xf32>
    %76 = arith.divf %74, %75 : vector<2x128xf32>
    %77 = arith.select %5, %71, %76 : vector<2x128xi1>, vector<2x128xf32>
    %78 = math.tanh %70 : vector<2x128xf32>
    %79 = arith.negf %70 : vector<2x128xf32>
    %80 = math.exp %79 : vector<2x128xf32>
    %cst_25 = arith.constant 1.000000e+00 : f32
    %81 = vector.broadcast %cst_25 : f32 to vector<2x128xf32>
    %82 = arith.addf %81, %80 : vector<2x128xf32>
    %83 = arith.divf %81, %82 : vector<2x128xf32>
    %84 = arith.select %5, %78, %83 : vector<2x128xi1>, vector<2x128xf32>
    %85 = vector.extract_strided_slice %77 {offsets = [0, 0], sizes = [2, 32], strides = [1, 1]} : vector<2x128xf32> to vector<2x32xf32>
    %86 = vector.extract_strided_slice %77 {offsets = [0, 32], sizes = [2, 32], strides = [1, 1]} : vector<2x128xf32> to vector<2x32xf32>
    %87 = vector.extract_strided_slice %77 {offsets = [0, 64], sizes = [2, 32], strides = [1, 1]} : vector<2x128xf32> to vector<2x32xf32>
    %88 = vector.extract_strided_slice %77 {offsets = [0, 96], sizes = [2, 32], strides = [1, 1]} : vector<2x128xf32> to vector<2x32xf32>
    %89 = vector.extract_strided_slice %84 {offsets = [0, 0], sizes = [2, 32], strides = [1, 1]} : vector<2x128xf32> to vector<2x32xf32>
    %90 = vector.extract_strided_slice %84 {offsets = [0, 32], sizes = [2, 32], strides = [1, 1]} : vector<2x128xf32> to vector<2x32xf32>
    %91 = vector.extract_strided_slice %84 {offsets = [0, 64], sizes = [2, 32], strides = [1, 1]} : vector<2x128xf32> to vector<2x32xf32>
    %92 = vector.extract_strided_slice %84 {offsets = [0, 96], sizes = [2, 32], strides = [1, 1]} : vector<2x128xf32> to vector<2x32xf32>
    %93 = arith.mulf %86, %52 : vector<2x32xf32>
    %94 = arith.mulf %85, %87 : vector<2x32xf32>
    %95 = arith.addf %93, %94 : vector<2x32xf32>
    %96 = math.tanh %95 : vector<2x32xf32>
    %97 = arith.mulf %88, %96 : vector<2x32xf32>
    %98 = arith.mulf %90, %57 : vector<2x32xf32>
    %99 = arith.mulf %89, %91 : vector<2x32xf32>
    %100 = arith.addf %98, %99 : vector<2x32xf32>
    %101 = math.tanh %100 : vector<2x32xf32>
    %102 = arith.mulf %92, %101 : vector<2x32xf32>
    %c2_26 = arith.constant 2 : index
    %c0_27 = arith.constant 0 : index
    %103 = vector.load %arg11[%c2_26, %c0_27] : memref<16x64xf32, #tpu.memory_space<vmem>>, vector<2x32xf32>
    tpu.vector_store %arg11[%c2_26, %c0_27], %97 {strides = array<i32>} : memref<16x64xf32, #tpu.memory_space<vmem>>, vector<2x32xf32>,
    %c12_28 = arith.constant 12 : index
    %c32_29 = arith.constant 32 : index
    %104 = vector.load %arg11[%c12_28, %c32_29] : memref<16x64xf32, #tpu.memory_space<vmem>>, vector<2x32xf32>
    tpu.vector_store %arg11[%c12_28, %c32_29], %102 {strides = array<i32>} : memref<16x64xf32, #tpu.memory_space<vmem>>, vector<2x32xf32>,
    %105 = tpu.concatenate %97, %102 in 1 : vector<2x32xf32>, vector<2x32xf32> -> vector<2x64xf32>
    %106 = arith.truncf %105 : vector<2x64xf32> to vector<2x64xbf16>
    %cst_30 = arith.constant dense<0.000000e+00> : vector<2x256xf32>
    %107 = tpu.matmul %106, %14, %cst_30 {dimension_numbers = #tpu.dot_dimension_numbers<[1], [0], [0], [1], [0, 0, 1, 1], [], []>} : vector<2x64xbf16>, vector<64x256xbf16>, vector<2x256xf32> -> vector<2x256xf32>
    %c4 = arith.constant 4 : index
    %c0_31 = arith.constant 0 : index
    %108 = vector.load %arg10[%c4, %c0_31] : memref<16x256xf32, #tpu.memory_space<vmem>>, vector<2x128xf32>
    %109 = vector.extract_strided_slice %107 {offsets = [0, 0], sizes = [2, 128], strides = [1, 1]} : vector<2x256xf32> to vector<2x128xf32>
    %110 = arith.addf %108, %109 : vector<2x128xf32>
    %c10 = arith.constant 10 : index
    %c128_32 = arith.constant 128 : index
    %111 = vector.load %arg10[%c10, %c128_32] : memref<16x256xf32, #tpu.memory_space<vmem>>, vector<2x128xf32>
    %112 = vector.extract_strided_slice %107 {offsets = [0, 128], sizes = [2, 128], strides = [1, 1]} : vector<2x256xf32> to vector<2x128xf32>
    %113 = arith.addf %111, %112 : vector<2x128xf32>
    %114 = math.tanh %110 : vector<2x128xf32>
    %115 = arith.negf %110 : vector<2x128xf32>
    %116 = math.exp %115 : vector<2x128xf32>
    %cst_33 = arith.constant 1.000000e+00 : f32
    %117 = vector.broadcast %cst_33 : f32 to vector<2x128xf32>
    %118 = arith.addf %117, %116 : vector<2x128xf32>
    %119 = arith.divf %117, %118 : vector<2x128xf32>
    %120 = arith.select %5, %114, %119 : vector<2x128xi1>, vector<2x128xf32>
    %121 = math.tanh %113 : vector<2x128xf32>
    %122 = arith.negf %113 : vector<2x128xf32>
    %123 = math.exp %122 : vector<2x128xf32>
    %cst_34 = arith.constant 1.000000e+00 : f32
    %124 = vector.broadcast %cst_34 : f32 to vector<2x128xf32>
    %125 = arith.addf %124, %123 : vector<2x128xf32>
    %126 = arith.divf %124, %125 : vector<2x128xf32>
    %127 = arith.select %5, %121, %126 : vector<2x128xi1>, vector<2x128xf32>
    %128 = vector.extract_strided_slice %120 {offsets = [0, 0], sizes = [2, 32], strides = [1, 1]} : vector<2x128xf32> to vector<2x32xf32>
    %129 = vector.extract_strided_slice %120 {offsets = [0, 32], sizes = [2, 32], strides = [1, 1]} : vector<2x128xf32> to vector<2x32xf32>
    %130 = vector.extract_strided_slice %120 {offsets = [0, 64], sizes = [2, 32], strides = [1, 1]} : vector<2x128xf32> to vector<2x32xf32>
    %131 = vector.extract_strided_slice %120 {offsets = [0, 96], sizes = [2, 32], strides = [1, 1]} : vector<2x128xf32> to vector<2x32xf32>
    %132 = vector.extract_strided_slice %127 {offsets = [0, 0], sizes = [2, 32], strides = [1, 1]} : vector<2x128xf32> to vector<2x32xf32>
    %133 = vector.extract_strided_slice %127 {offsets = [0, 32], sizes = [2, 32], strides = [1, 1]} : vector<2x128xf32> to vector<2x32xf32>
    %134 = vector.extract_strided_slice %127 {offsets = [0, 64], sizes = [2, 32], strides = [1, 1]} : vector<2x128xf32> to vector<2x32xf32>
    %135 = vector.extract_strided_slice %127 {offsets = [0, 96], sizes = [2, 32], strides = [1, 1]} : vector<2x128xf32> to vector<2x32xf32>
    %136 = arith.mulf %129, %95 : vector<2x32xf32>
    %137 = arith.mulf %128, %130 : vector<2x32xf32>
    %138 = arith.addf %136, %137 : vector<2x32xf32>
    %139 = math.tanh %138 : vector<2x32xf32>
    %140 = arith.mulf %131, %139 : vector<2x32xf32>
    %141 = arith.mulf %133, %100 : vector<2x32xf32>
    %142 = arith.mulf %132, %134 : vector<2x32xf32>
    %143 = arith.addf %141, %142 : vector<2x32xf32>
    %144 = math.tanh %143 : vector<2x32xf32>
    %145 = arith.mulf %135, %144 : vector<2x32xf32>
    %c4_35 = arith.constant 4 : index
    %c0_36 = arith.constant 0 : index
    %146 = vector.load %arg11[%c4_35, %c0_36] : memref<16x64xf32, #tpu.memory_space<vmem>>, vector<2x32xf32>
    tpu.vector_store %arg11[%c4_35, %c0_36], %140 {strides = array<i32>} : memref<16x64xf32, #tpu.memory_space<vmem>>, vector<2x32xf32>,
    %c10_37 = arith.constant 10 : index
    %c32_38 = arith.constant 32 : index
    %147 = vector.load %arg11[%c10_37, %c32_38] : memref<16x64xf32, #tpu.memory_space<vmem>>, vector<2x32xf32>
    tpu.vector_store %arg11[%c10_37, %c32_38], %145 {strides = array<i32>} : memref<16x64xf32, #tpu.memory_space<vmem>>, vector<2x32xf32>,
    %148 = tpu.concatenate %140, %145 in 1 : vector<2x32xf32>, vector<2x32xf32> -> vector<2x64xf32>
    %149 = arith.truncf %148 : vector<2x64xf32> to vector<2x64xbf16>
    %cst_39 = arith.constant dense<0.000000e+00> : vector<2x256xf32>
    %150 = tpu.matmul %149, %14, %cst_39 {dimension_numbers = #tpu.dot_dimension_numbers<[1], [0], [0], [1], [0, 0, 1, 1], [], []>} : vector<2x64xbf16>, vector<64x256xbf16>, vector<2x256xf32> -> vector<2x256xf32>
    %c6 = arith.constant 6 : index
    %c0_40 = arith.constant 0 : index
    %151 = vector.load %arg10[%c6, %c0_40] : memref<16x256xf32, #tpu.memory_space<vmem>>, vector<2x128xf32>
    %152 = vector.extract_strided_slice %150 {offsets = [0, 0], sizes = [2, 128], strides = [1, 1]} : vector<2x256xf32> to vector<2x128xf32>
    %153 = arith.addf %151, %152 : vector<2x128xf32>
    %c8 = arith.constant 8 : index
    %c128_41 = arith.constant 128 : index
    %154 = vector.load %arg10[%c8, %c128_41] : memref<16x256xf32, #tpu.memory_space<vmem>>, vector<2x128xf32>
    %155 = vector.extract_strided_slice %150 {offsets = [0, 128], sizes = [2, 128], strides = [1, 1]} : vector<2x256xf32> to vector<2x128xf32>
    %156 = arith.addf %154, %155 : vector<2x128xf32>
    %157 = math.tanh %153 : vector<2x128xf32>
    %158 = arith.negf %153 : vector<2x128xf32>
    %159 = math.exp %158 : vector<2x128xf32>
    %cst_42 = arith.constant 1.000000e+00 : f32
    %160 = vector.broadcast %cst_42 : f32 to vector<2x128xf32>
    %161 = arith.addf %160, %159 : vector<2x128xf32>
    %162 = arith.divf %160, %161 : vector<2x128xf32>
    %163 = arith.select %5, %157, %162 : vector<2x128xi1>, vector<2x128xf32>
    %164 = math.tanh %156 : vector<2x128xf32>
    %165 = arith.negf %156 : vector<2x128xf32>
    %166 = math.exp %165 : vector<2x128xf32>
    %cst_43 = arith.constant 1.000000e+00 : f32
    %167 = vector.broadcast %cst_43 : f32 to vector<2x128xf32>
    %168 = arith.addf %167, %166 : vector<2x128xf32>
    %169 = arith.divf %167, %168 : vector<2x128xf32>
    %170 = arith.select %5, %164, %169 : vector<2x128xi1>, vector<2x128xf32>
    %171 = vector.extract_strided_slice %163 {offsets = [0, 0], sizes = [2, 32], strides = [1, 1]} : vector<2x128xf32> to vector<2x32xf32>
    %172 = vector.extract_strided_slice %163 {offsets = [0, 32], sizes = [2, 32], strides = [1, 1]} : vector<2x128xf32> to vector<2x32xf32>
    %173 = vector.extract_strided_slice %163 {offsets = [0, 64], sizes = [2, 32], strides = [1, 1]} : vector<2x128xf32> to vector<2x32xf32>
    %174 = vector.extract_strided_slice %163 {offsets = [0, 96], sizes = [2, 32], strides = [1, 1]} : vector<2x128xf32> to vector<2x32xf32>
    %175 = vector.extract_strided_slice %170 {offsets = [0, 0], sizes = [2, 32], strides = [1, 1]} : vector<2x128xf32> to vector<2x32xf32>
    %176 = vector.extract_strided_slice %170 {offsets = [0, 32], sizes = [2, 32], strides = [1, 1]} : vector<2x128xf32> to vector<2x32xf32>
    %177 = vector.extract_strided_slice %170 {offsets = [0, 64], sizes = [2, 32], strides = [1, 1]} : vector<2x128xf32> to vector<2x32xf32>
    %178 = vector.extract_strided_slice %170 {offsets = [0, 96], sizes = [2, 32], strides = [1, 1]} : vector<2x128xf32> to vector<2x32xf32>
    %179 = arith.mulf %172, %138 : vector<2x32xf32>
    %180 = arith.mulf %171, %173 : vector<2x32xf32>
    %181 = arith.addf %179, %180 : vector<2x32xf32>
    %182 = math.tanh %181 : vector<2x32xf32>
    %183 = arith.mulf %174, %182 : vector<2x32xf32>
    %184 = arith.mulf %176, %143 : vector<2x32xf32>
    %185 = arith.mulf %175, %177 : vector<2x32xf32>
    %186 = arith.addf %184, %185 : vector<2x32xf32>
    %187 = math.tanh %186 : vector<2x32xf32>
    %188 = arith.mulf %178, %187 : vector<2x32xf32>
    %c6_44 = arith.constant 6 : index
    %c0_45 = arith.constant 0 : index
    %189 = vector.load %arg11[%c6_44, %c0_45] : memref<16x64xf32, #tpu.memory_space<vmem>>, vector<2x32xf32>
    tpu.vector_store %arg11[%c6_44, %c0_45], %183 {strides = array<i32>} : memref<16x64xf32, #tpu.memory_space<vmem>>, vector<2x32xf32>,
    %c8_46 = arith.constant 8 : index
    %c32_47 = arith.constant 32 : index
    %190 = vector.load %arg11[%c8_46, %c32_47] : memref<16x64xf32, #tpu.memory_space<vmem>>, vector<2x32xf32>
    tpu.vector_store %arg11[%c8_46, %c32_47], %188 {strides = array<i32>} : memref<16x64xf32, #tpu.memory_space<vmem>>, vector<2x32xf32>,
    %191 = tpu.concatenate %183, %188 in 1 : vector<2x32xf32>, vector<2x32xf32> -> vector<2x64xf32>
    %192 = arith.truncf %191 : vector<2x64xf32> to vector<2x64xbf16>
    %cst_48 = arith.constant dense<0.000000e+00> : vector<2x256xf32>
    %193 = tpu.matmul %192, %14, %cst_48 {dimension_numbers = #tpu.dot_dimension_numbers<[1], [0], [0], [1], [0, 0, 1, 1], [], []>} : vector<2x64xbf16>, vector<64x256xbf16>, vector<2x256xf32> -> vector<2x256xf32>
    %c8_49 = arith.constant 8 : index
    %c0_50 = arith.constant 0 : index
    %194 = vector.load %arg10[%c8_49, %c0_50] : memref<16x256xf32, #tpu.memory_space<vmem>>, vector<2x128xf32>
    %195 = vector.extract_strided_slice %193 {offsets = [0, 0], sizes = [2, 128], strides = [1, 1]} : vector<2x256xf32> to vector<2x128xf32>
    %196 = arith.addf %194, %195 : vector<2x128xf32>
    %c6_51 = arith.constant 6 : index
    %c128_52 = arith.constant 128 : index
    %197 = vector.load %arg10[%c6_51, %c128_52] : memref<16x256xf32, #tpu.memory_space<vmem>>, vector<2x128xf32>
    %198 = vector.extract_strided_slice %193 {offsets = [0, 128], sizes = [2, 128], strides = [1, 1]} : vector<2x256xf32> to vector<2x128xf32>
    %199 = arith.addf %197, %198 : vector<2x128xf32>
    %200 = math.tanh %196 : vector<2x128xf32>
    %201 = arith.negf %196 : vector<2x128xf32>
    %202 = math.exp %201 : vector<2x128xf32>
    %cst_53 = arith.constant 1.000000e+00 : f32
    %203 = vector.broadcast %cst_53 : f32 to vector<2x128xf32>
    %204 = arith.addf %203, %202 : vector<2x128xf32>
    %205 = arith.divf %203, %204 : vector<2x128xf32>
    %206 = arith.select %5, %200, %205 : vector<2x128xi1>, vector<2x128xf32>
    %207 = math.tanh %199 : vector<2x128xf32>
    %208 = arith.negf %199 : vector<2x128xf32>
    %209 = math.exp %208 : vector<2x128xf32>
    %cst_54 = arith.constant 1.000000e+00 : f32
    %210 = vector.broadcast %cst_54 : f32 to vector<2x128xf32>
    %211 = arith.addf %210, %209 : vector<2x128xf32>
    %212 = arith.divf %210, %211 : vector<2x128xf32>
    %213 = arith.select %5, %207, %212 : vector<2x128xi1>, vector<2x128xf32>
    %214 = vector.extract_strided_slice %206 {offsets = [0, 0], sizes = [2, 32], strides = [1, 1]} : vector<2x128xf32> to vector<2x32xf32>
    %215 = vector.extract_strided_slice %206 {offsets = [0, 32], sizes = [2, 32], strides = [1, 1]} : vector<2x128xf32> to vector<2x32xf32>
    %216 = vector.extract_strided_slice %206 {offsets = [0, 64], sizes = [2, 32], strides = [1, 1]} : vector<2x128xf32> to vector<2x32xf32>
    %217 = vector.extract_strided_slice %206 {offsets = [0, 96], sizes = [2, 32], strides = [1, 1]} : vector<2x128xf32> to vector<2x32xf32>
    %218 = vector.extract_strided_slice %213 {offsets = [0, 0], sizes = [2, 32], strides = [1, 1]} : vector<2x128xf32> to vector<2x32xf32>
    %219 = vector.extract_strided_slice %213 {offsets = [0, 32], sizes = [2, 32], strides = [1, 1]} : vector<2x128xf32> to vector<2x32xf32>
    %220 = vector.extract_strided_slice %213 {offsets = [0, 64], sizes = [2, 32], strides = [1, 1]} : vector<2x128xf32> to vector<2x32xf32>
    %221 = vector.extract_strided_slice %213 {offsets = [0, 96], sizes = [2, 32], strides = [1, 1]} : vector<2x128xf32> to vector<2x32xf32>
    %222 = arith.mulf %215, %181 : vector<2x32xf32>
    %223 = arith.mulf %214, %216 : vector<2x32xf32>
    %224 = arith.addf %222, %223 : vector<2x32xf32>
    %225 = math.tanh %224 : vector<2x32xf32>
    %226 = arith.mulf %217, %225 : vector<2x32xf32>
    %227 = arith.mulf %219, %186 : vector<2x32xf32>
    %228 = arith.mulf %218, %220 : vector<2x32xf32>
    %229 = arith.addf %227, %228 : vector<2x32xf32>
    %230 = math.tanh %229 : vector<2x32xf32>
    %231 = arith.mulf %221, %230 : vector<2x32xf32>
    %c8_55 = arith.constant 8 : index
    %c0_56 = arith.constant 0 : index
    %232 = vector.load %arg11[%c8_55, %c0_56] : memref<16x64xf32, #tpu.memory_space<vmem>>, vector<2x32xf32>
    tpu.vector_store %arg11[%c8_55, %c0_56], %226 {strides = array<i32>} : memref<16x64xf32, #tpu.memory_space<vmem>>, vector<2x32xf32>,
    %c6_57 = arith.constant 6 : index
    %c32_58 = arith.constant 32 : index
    %233 = vector.load %arg11[%c6_57, %c32_58] : memref<16x64xf32, #tpu.memory_space<vmem>>, vector<2x32xf32>
    tpu.vector_store %arg11[%c6_57, %c32_58], %231 {strides = array<i32>} : memref<16x64xf32, #tpu.memory_space<vmem>>, vector<2x32xf32>,
    %234 = tpu.concatenate %226, %231 in 1 : vector<2x32xf32>, vector<2x32xf32> -> vector<2x64xf32>
    %235 = arith.truncf %234 : vector<2x64xf32> to vector<2x64xbf16>
    %cst_59 = arith.constant dense<0.000000e+00> : vector<2x256xf32>
    %236 = tpu.matmul %235, %14, %cst_59 {dimension_numbers = #tpu.dot_dimension_numbers<[1], [0], [0], [1], [0, 0, 1, 1], [], []>} : vector<2x64xbf16>, vector<64x256xbf16>, vector<2x256xf32> -> vector<2x256xf32>
    %c10_60 = arith.constant 10 : index
    %c0_61 = arith.constant 0 : index
    %237 = vector.load %arg10[%c10_60, %c0_61] : memref<16x256xf32, #tpu.memory_space<vmem>>, vector<2x128xf32>
    %238 = vector.extract_strided_slice %236 {offsets = [0, 0], sizes = [2, 128], strides = [1, 1]} : vector<2x256xf32> to vector<2x128xf32>
    %239 = arith.addf %237, %238 : vector<2x128xf32>
    %c4_62 = arith.constant 4 : index
    %c128_63 = arith.constant 128 : index
    %240 = vector.load %arg10[%c4_62, %c128_63] : memref<16x256xf32, #tpu.memory_space<vmem>>, vector<2x128xf32>
    %241 = vector.extract_strided_slice %236 {offsets = [0, 128], sizes = [2, 128], strides = [1, 1]} : vector<2x256xf32> to vector<2x128xf32>
    %242 = arith.addf %240, %241 : vector<2x128xf32>
    %243 = math.tanh %239 : vector<2x128xf32>
    %244 = arith.negf %239 : vector<2x128xf32>
    %245 = math.exp %244 : vector<2x128xf32>
    %cst_64 = arith.constant 1.000000e+00 : f32
    %246 = vector.broadcast %cst_64 : f32 to vector<2x128xf32>
    %247 = arith.addf %246, %245 : vector<2x128xf32>
    %248 = arith.divf %246, %247 : vector<2x128xf32>
    %249 = arith.select %5, %243, %248 : vector<2x128xi1>, vector<2x128xf32>
    %250 = math.tanh %242 : vector<2x128xf32>
    %251 = arith.negf %242 : vector<2x128xf32>
    %252 = math.exp %251 : vector<2x128xf32>
    %cst_65 = arith.constant 1.000000e+00 : f32
    %253 = vector.broadcast %cst_65 : f32 to vector<2x128xf32>
    %254 = arith.addf %253, %252 : vector<2x128xf32>
    %255 = arith.divf %253, %254 : vector<2x128xf32>
    %256 = arith.select %5, %250, %255 : vector<2x128xi1>, vector<2x128xf32>
    %257 = vector.extract_strided_slice %249 {offsets = [0, 0], sizes = [2, 32], strides = [1, 1]} : vector<2x128xf32> to vector<2x32xf32>
    %258 = vector.extract_strided_slice %249 {offsets = [0, 32], sizes = [2, 32], strides = [1, 1]} : vector<2x128xf32> to vector<2x32xf32>
    %259 = vector.extract_strided_slice %249 {offsets = [0, 64], sizes = [2, 32], strides = [1, 1]} : vector<2x128xf32> to vector<2x32xf32>
    %260 = vector.extract_strided_slice %249 {offsets = [0, 96], sizes = [2, 32], strides = [1, 1]} : vector<2x128xf32> to vector<2x32xf32>
    %261 = vector.extract_strided_slice %256 {offsets = [0, 0], sizes = [2, 32], strides = [1, 1]} : vector<2x128xf32> to vector<2x32xf32>
    %262 = vector.extract_strided_slice %256 {offsets = [0, 32], sizes = [2, 32], strides = [1, 1]} : vector<2x128xf32> to vector<2x32xf32>
    %263 = vector.extract_strided_slice %256 {offsets = [0, 64], sizes = [2, 32], strides = [1, 1]} : vector<2x128xf32> to vector<2x32xf32>
    %264 = vector.extract_strided_slice %256 {offsets = [0, 96], sizes = [2, 32], strides = [1, 1]} : vector<2x128xf32> to vector<2x32xf32>
    %265 = arith.mulf %258, %224 : vector<2x32xf32>
    %266 = arith.mulf %257, %259 : vector<2x32xf32>
    %267 = arith.addf %265, %266 : vector<2x32xf32>
    %268 = math.tanh %267 : vector<2x32xf32>
    %269 = arith.mulf %260, %268 : vector<2x32xf32>
    %270 = arith.mulf %262, %229 : vector<2x32xf32>
    %271 = arith.mulf %261, %263 : vector<2x32xf32>
    %272 = arith.addf %270, %271 : vector<2x32xf32>
    %273 = math.tanh %272 : vector<2x32xf32>
    %274 = arith.mulf %264, %273 : vector<2x32xf32>
    %c10_66 = arith.constant 10 : index
    %c0_67 = arith.constant 0 : index
    %275 = vector.load %arg11[%c10_66, %c0_67] : memref<16x64xf32, #tpu.memory_space<vmem>>, vector<2x32xf32>
    tpu.vector_store %arg11[%c10_66, %c0_67], %269 {strides = array<i32>} : memref<16x64xf32, #tpu.memory_space<vmem>>, vector<2x32xf32>,
    %c4_68 = arith.constant 4 : index
    %c32_69 = arith.constant 32 : index
    %276 = vector.load %arg11[%c4_68, %c32_69] : memref<16x64xf32, #tpu.memory_space<vmem>>, vector<2x32xf32>
    tpu.vector_store %arg11[%c4_68, %c32_69], %274 {strides = array<i32>} : memref<16x64xf32, #tpu.memory_space<vmem>>, vector<2x32xf32>,
    %277 = tpu.concatenate %269, %274 in 1 : vector<2x32xf32>, vector<2x32xf32> -> vector<2x64xf32>
    %278 = arith.truncf %277 : vector<2x64xf32> to vector<2x64xbf16>
    %cst_70 = arith.constant dense<0.000000e+00> : vector<2x256xf32>
    %279 = tpu.matmul %278, %14, %cst_70 {dimension_numbers = #tpu.dot_dimension_numbers<[1], [0], [0], [1], [0, 0, 1, 1], [], []>} : vector<2x64xbf16>, vector<64x256xbf16>, vector<2x256xf32> -> vector<2x256xf32>
    %c12_71 = arith.constant 12 : index
    %c0_72 = arith.constant 0 : index
    %280 = vector.load %arg10[%c12_71, %c0_72] : memref<16x256xf32, #tpu.memory_space<vmem>>, vector<2x128xf32>
    %281 = vector.extract_strided_slice %279 {offsets = [0, 0], sizes = [2, 128], strides = [1, 1]} : vector<2x256xf32> to vector<2x128xf32>
    %282 = arith.addf %280, %281 : vector<2x128xf32>
    %c2_73 = arith.constant 2 : index
    %c128_74 = arith.constant 128 : index
    %283 = vector.load %arg10[%c2_73, %c128_74] : memref<16x256xf32, #tpu.memory_space<vmem>>, vector<2x128xf32>
    %284 = vector.extract_strided_slice %279 {offsets = [0, 128], sizes = [2, 128], strides = [1, 1]} : vector<2x256xf32> to vector<2x128xf32>
    %285 = arith.addf %283, %284 : vector<2x128xf32>
    %286 = math.tanh %282 : vector<2x128xf32>
    %287 = arith.negf %282 : vector<2x128xf32>
    %288 = math.exp %287 : vector<2x128xf32>
    %cst_75 = arith.constant 1.000000e+00 : f32
    %289 = vector.broadcast %cst_75 : f32 to vector<2x128xf32>
    %290 = arith.addf %289, %288 : vector<2x128xf32>
    %291 = arith.divf %289, %290 : vector<2x128xf32>
    %292 = arith.select %5, %286, %291 : vector<2x128xi1>, vector<2x128xf32>
    %293 = math.tanh %285 : vector<2x128xf32>
    %294 = arith.negf %285 : vector<2x128xf32>
    %295 = math.exp %294 : vector<2x128xf32>
    %cst_76 = arith.constant 1.000000e+00 : f32
    %296 = vector.broadcast %cst_76 : f32 to vector<2x128xf32>
    %297 = arith.addf %296, %295 : vector<2x128xf32>
    %298 = arith.divf %296, %297 : vector<2x128xf32>
    %299 = arith.select %5, %293, %298 : vector<2x128xi1>, vector<2x128xf32>
    %300 = vector.extract_strided_slice %292 {offsets = [0, 0], sizes = [2, 32], strides = [1, 1]} : vector<2x128xf32> to vector<2x32xf32>
    %301 = vector.extract_strided_slice %292 {offsets = [0, 32], sizes = [2, 32], strides = [1, 1]} : vector<2x128xf32> to vector<2x32xf32>
    %302 = vector.extract_strided_slice %292 {offsets = [0, 64], sizes = [2, 32], strides = [1, 1]} : vector<2x128xf32> to vector<2x32xf32>
    %303 = vector.extract_strided_slice %292 {offsets = [0, 96], sizes = [2, 32], strides = [1, 1]} : vector<2x128xf32> to vector<2x32xf32>
    %304 = vector.extract_strided_slice %299 {offsets = [0, 0], sizes = [2, 32], strides = [1, 1]} : vector<2x128xf32> to vector<2x32xf32>
    %305 = vector.extract_strided_slice %299 {offsets = [0, 32], sizes = [2, 32], strides = [1, 1]} : vector<2x128xf32> to vector<2x32xf32>
    %306 = vector.extract_strided_slice %299 {offsets = [0, 64], sizes = [2, 32], strides = [1, 1]} : vector<2x128xf32> to vector<2x32xf32>
    %307 = vector.extract_strided_slice %299 {offsets = [0, 96], sizes = [2, 32], strides = [1, 1]} : vector<2x128xf32> to vector<2x32xf32>
    %308 = arith.mulf %301, %267 : vector<2x32xf32>
    %309 = arith.mulf %300, %302 : vector<2x32xf32>
    %310 = arith.addf %308, %309 : vector<2x32xf32>
    %311 = math.tanh %310 : vector<2x32xf32>
    %312 = arith.mulf %303, %311 : vector<2x32xf32>
    %313 = arith.mulf %305, %272 : vector<2x32xf32>
    %314 = arith.mulf %304, %306 : vector<2x32xf32>
    %315 = arith.addf %313, %314 : vector<2x32xf32>
    %316 = math.tanh %315 : vector<2x32xf32>
    %317 = arith.mulf %307, %316 : vector<2x32xf32>
    %c12_77 = arith.constant 12 : index
    %c0_78 = arith.constant 0 : index
    %318 = vector.load %arg11[%c12_77, %c0_78] : memref<16x64xf32, #tpu.memory_space<vmem>>, vector<2x32xf32>
    tpu.vector_store %arg11[%c12_77, %c0_78], %312 {strides = array<i32>} : memref<16x64xf32, #tpu.memory_space<vmem>>, vector<2x32xf32>,
    %c2_79 = arith.constant 2 : index
    %c32_80 = arith.constant 32 : index
    %319 = vector.load %arg11[%c2_79, %c32_80] : memref<16x64xf32, #tpu.memory_space<vmem>>, vector<2x32xf32>
    tpu.vector_store %arg11[%c2_79, %c32_80], %317 {strides = array<i32>} : memref<16x64xf32, #tpu.memory_space<vmem>>, vector<2x32xf32>,
    %320 = tpu.concatenate %312, %317 in 1 : vector<2x32xf32>, vector<2x32xf32> -> vector<2x64xf32>
    %321 = arith.truncf %320 : vector<2x64xf32> to vector<2x64xbf16>
    %cst_81 = arith.constant dense<0.000000e+00> : vector<2x256xf32>
    %322 = tpu.matmul %321, %14, %cst_81 {dimension_numbers = #tpu.dot_dimension_numbers<[1], [0], [0], [1], [0, 0, 1, 1], [], []>} : vector<2x64xbf16>, vector<64x256xbf16>, vector<2x256xf32> -> vector<2x256xf32>
    %c14_82 = arith.constant 14 : index
    %c0_83 = arith.constant 0 : index
    %323 = vector.load %arg10[%c14_82, %c0_83] : memref<16x256xf32, #tpu.memory_space<vmem>>, vector<2x128xf32>
    %324 = vector.extract_strided_slice %322 {offsets = [0, 0], sizes = [2, 128], strides = [1, 1]} : vector<2x256xf32> to vector<2x128xf32>
    %325 = arith.addf %323, %324 : vector<2x128xf32>
    %c0_84 = arith.constant 0 : index
    %c128_85 = arith.constant 128 : index
    %326 = vector.load %arg10[%c0_84, %c128_85] : memref<16x256xf32, #tpu.memory_space<vmem>>, vector<2x128xf32>
    %327 = vector.extract_strided_slice %322 {offsets = [0, 128], sizes = [2, 128], strides = [1, 1]} : vector<2x256xf32> to vector<2x128xf32>
    %328 = arith.addf %326, %327 : vector<2x128xf32>
    %329 = math.tanh %325 : vector<2x128xf32>
    %330 = arith.negf %325 : vector<2x128xf32>
    %331 = math.exp %330 : vector<2x128xf32>
    %cst_86 = arith.constant 1.000000e+00 : f32
    %332 = vector.broadcast %cst_86 : f32 to vector<2x128xf32>
    %333 = arith.addf %332, %331 : vector<2x128xf32>
    %334 = arith.divf %332, %333 : vector<2x128xf32>
    %335 = arith.select %5, %329, %334 : vector<2x128xi1>, vector<2x128xf32>
    %336 = math.tanh %328 : vector<2x128xf32>
    %337 = arith.negf %328 : vector<2x128xf32>
    %338 = math.exp %337 : vector<2x128xf32>
    %cst_87 = arith.constant 1.000000e+00 : f32
    %339 = vector.broadcast %cst_87 : f32 to vector<2x128xf32>
    %340 = arith.addf %339, %338 : vector<2x128xf32>
    %341 = arith.divf %339, %340 : vector<2x128xf32>
    %342 = arith.select %5, %336, %341 : vector<2x128xi1>, vector<2x128xf32>
    %343 = vector.extract_strided_slice %335 {offsets = [0, 0], sizes = [2, 32], strides = [1, 1]} : vector<2x128xf32> to vector<2x32xf32>
    %344 = vector.extract_strided_slice %335 {offsets = [0, 32], sizes = [2, 32], strides = [1, 1]} : vector<2x128xf32> to vector<2x32xf32>
    %345 = vector.extract_strided_slice %335 {offsets = [0, 64], sizes = [2, 32], strides = [1, 1]} : vector<2x128xf32> to vector<2x32xf32>
    %346 = vector.extract_strided_slice %335 {offsets = [0, 96], sizes = [2, 32], strides = [1, 1]} : vector<2x128xf32> to vector<2x32xf32>
    %347 = vector.extract_strided_slice %342 {offsets = [0, 0], sizes = [2, 32], strides = [1, 1]} : vector<2x128xf32> to vector<2x32xf32>
    %348 = vector.extract_strided_slice %342 {offsets = [0, 32], sizes = [2, 32], strides = [1, 1]} : vector<2x128xf32> to vector<2x32xf32>
    %349 = vector.extract_strided_slice %342 {offsets = [0, 64], sizes = [2, 32], strides = [1, 1]} : vector<2x128xf32> to vector<2x32xf32>
    %350 = vector.extract_strided_slice %342 {offsets = [0, 96], sizes = [2, 32], strides = [1, 1]} : vector<2x128xf32> to vector<2x32xf32>
    %351 = arith.mulf %344, %310 : vector<2x32xf32>
    %352 = arith.mulf %343, %345 : vector<2x32xf32>
    %353 = arith.addf %351, %352 : vector<2x32xf32>
    %354 = math.tanh %353 : vector<2x32xf32>
    %355 = arith.mulf %346, %354 : vector<2x32xf32>
    %356 = arith.mulf %348, %315 : vector<2x32xf32>
    %357 = arith.mulf %347, %349 : vector<2x32xf32>
    %358 = arith.addf %356, %357 : vector<2x32xf32>
    %359 = math.tanh %358 : vector<2x32xf32>
    %360 = arith.mulf %350, %359 : vector<2x32xf32>
    %c14_88 = arith.constant 14 : index
    %c0_89 = arith.constant 0 : index
    %361 = vector.load %arg11[%c14_88, %c0_89] : memref<16x64xf32, #tpu.memory_space<vmem>>, vector<2x32xf32>
    tpu.vector_store %arg11[%c14_88, %c0_89], %355 {strides = array<i32>} : memref<16x64xf32, #tpu.memory_space<vmem>>, vector<2x32xf32>,
    %c0_90 = arith.constant 0 : index
    %c32_91 = arith.constant 32 : index
    %362 = vector.load %arg11[%c0_90, %c32_91] : memref<16x64xf32, #tpu.memory_space<vmem>>, vector<2x32xf32>
    tpu.vector_store %arg11[%c0_90, %c32_91], %360 {strides = array<i32>} : memref<16x64xf32, #tpu.memory_space<vmem>>, vector<2x32xf32>,
    %c0_92 = arith.constant 0 : index
    %c0_93 = arith.constant 0 : index
    %363 = vector.load %arg11[%c0_92, %c0_93] : memref<16x64xf32, #tpu.memory_space<vmem>>, vector<16x64xf32>
    %364 = arith.truncf %363 : vector<16x64xf32> to vector<16x64xbf16>
    %c0_94 = arith.constant 0 : index
    %c0_95 = arith.constant 0 : index
    %365 = vector.load %arg4[%c0_94, %c0_95] : memref<64x256xbf16, #tpu.memory_space<vmem>>, vector<64x256xbf16>
    %cst_96 = arith.constant dense<0.000000e+00> : vector<16x256xf32>
    %366 = tpu.matmul %364, %365, %cst_96 {dimension_numbers = #tpu.dot_dimension_numbers<[1], [0], [0], [1], [0, 0, 1, 1], [], []>} : vector<16x64xbf16>, vector<64x256xbf16>, vector<16x256xf32> -> vector<16x256xf32>
    %c0_97 = arith.constant 0 : index
    %c0_98 = arith.constant 0 : index
    %367 = vector.load %arg6[%c0_97, %c0_98] : memref<1x256xf32, #tpu.memory_space<vmem>>, vector<1x256xf32>
    %368 = vector.broadcast %367 : vector<1x256xf32> to vector<16x256xf32>
    %369 = arith.addf %366, %368 : vector<16x256xf32>
    %c0_99 = arith.constant 0 : index
    %c0_100 = arith.constant 0 : index
    %370 = vector.load %arg10[%c0_99, %c0_100] : memref<16x256xf32, #tpu.memory_space<vmem>>, vector<16x256xf32>
    tpu.vector_store %arg10[%c0_99, %c0_100], %369 {strides = array<i32>} : memref<16x256xf32, #tpu.memory_space<vmem>>, vector<16x256xf32>,
    %c0_101 = arith.constant 0 : index
    %c0_102 = arith.constant 0 : index
    %371 = vector.load %arg5[%c0_101, %c0_102] : memref<64x256xbf16, #tpu.memory_space<vmem>>, vector<64x256xbf16>
    %cst_103 = arith.constant 0.000000e+00 : f32
    %372 = vector.broadcast %cst_103 : f32 to vector<2x32xf32>
    %cst_104 = arith.constant 0.000000e+00 : f32
    %373 = vector.broadcast %cst_104 : f32 to vector<2x32xf32>
    %cst_105 = arith.constant 0.000000e+00 : f32
    %374 = vector.broadcast %cst_105 : f32 to vector<2x32xf32>
    %cst_106 = arith.constant 0.000000e+00 : f32
    %375 = vector.broadcast %cst_106 : f32 to vector<2x32xf32>
    %376 = tpu.concatenate %372, %374 in 1 : vector<2x32xf32>, vector<2x32xf32> -> vector<2x64xf32>
    %377 = arith.truncf %376 : vector<2x64xf32> to vector<2x64xbf16>
    %cst_107 = arith.constant dense<0.000000e+00> : vector<2x256xf32>
    %378 = tpu.matmul %377, %371, %cst_107 {dimension_numbers = #tpu.dot_dimension_numbers<[1], [0], [0], [1], [0, 0, 1, 1], [], []>} : vector<2x64xbf16>, vector<64x256xbf16>, vector<2x256xf32> -> vector<2x256xf32>
    %c0_108 = arith.constant 0 : index
    %c0_109 = arith.constant 0 : index
    %379 = vector.load %arg10[%c0_108, %c0_109] : memref<16x256xf32, #tpu.memory_space<vmem>>, vector<2x128xf32>
    %380 = vector.extract_strided_slice %378 {offsets = [0, 0], sizes = [2, 128], strides = [1, 1]} : vector<2x256xf32> to vector<2x128xf32>
    %381 = arith.addf %379, %380 : vector<2x128xf32>
    %c14_110 = arith.constant 14 : index
    %c128_111 = arith.constant 128 : index
    %382 = vector.load %arg10[%c14_110, %c128_111] : memref<16x256xf32, #tpu.memory_space<vmem>>, vector<2x128xf32>
    %383 = vector.extract_strided_slice %378 {offsets = [0, 128], sizes = [2, 128], strides = [1, 1]} : vector<2x256xf32> to vector<2x128xf32>
    %384 = arith.addf %382, %383 : vector<2x128xf32>
    %385 = math.tanh %381 : vector<2x128xf32>
    %386 = arith.negf %381 : vector<2x128xf32>
    %387 = math.exp %386 : vector<2x128xf32>
    %cst_112 = arith.constant 1.000000e+00 : f32
    %388 = vector.broadcast %cst_112 : f32 to vector<2x128xf32>
    %389 = arith.addf %388, %387 : vector<2x128xf32>
    %390 = arith.divf %388, %389 : vector<2x128xf32>
    %391 = arith.select %5, %385, %390 : vector<2x128xi1>, vector<2x128xf32>
    %392 = math.tanh %384 : vector<2x128xf32>
    %393 = arith.negf %384 : vector<2x128xf32>
    %394 = math.exp %393 : vector<2x128xf32>
    %cst_113 = arith.constant 1.000000e+00 : f32
    %395 = vector.broadcast %cst_113 : f32 to vector<2x128xf32>
    %396 = arith.addf %395, %394 : vector<2x128xf32>
    %397 = arith.divf %395, %396 : vector<2x128xf32>
    %398 = arith.select %5, %392, %397 : vector<2x128xi1>, vector<2x128xf32>
    %399 = vector.extract_strided_slice %391 {offsets = [0, 0], sizes = [2, 32], strides = [1, 1]} : vector<2x128xf32> to vector<2x32xf32>
    %400 = vector.extract_strided_slice %391 {offsets = [0, 32], sizes = [2, 32], strides = [1, 1]} : vector<2x128xf32> to vector<2x32xf32>
    %401 = vector.extract_strided_slice %391 {offsets = [0, 64], sizes = [2, 32], strides = [1, 1]} : vector<2x128xf32> to vector<2x32xf32>
    %402 = vector.extract_strided_slice %391 {offsets = [0, 96], sizes = [2, 32], strides = [1, 1]} : vector<2x128xf32> to vector<2x32xf32>
    %403 = vector.extract_strided_slice %398 {offsets = [0, 0], sizes = [2, 32], strides = [1, 1]} : vector<2x128xf32> to vector<2x32xf32>
    %404 = vector.extract_strided_slice %398 {offsets = [0, 32], sizes = [2, 32], strides = [1, 1]} : vector<2x128xf32> to vector<2x32xf32>
    %405 = vector.extract_strided_slice %398 {offsets = [0, 64], sizes = [2, 32], strides = [1, 1]} : vector<2x128xf32> to vector<2x32xf32>
    %406 = vector.extract_strided_slice %398 {offsets = [0, 96], sizes = [2, 32], strides = [1, 1]} : vector<2x128xf32> to vector<2x32xf32>
    %407 = arith.mulf %400, %373 : vector<2x32xf32>
    %408 = arith.mulf %399, %401 : vector<2x32xf32>
    %409 = arith.addf %407, %408 : vector<2x32xf32>
    %410 = math.tanh %409 : vector<2x32xf32>
    %411 = arith.mulf %402, %410 : vector<2x32xf32>
    %412 = arith.mulf %404, %375 : vector<2x32xf32>
    %413 = arith.mulf %403, %405 : vector<2x32xf32>
    %414 = arith.addf %412, %413 : vector<2x32xf32>
    %415 = math.tanh %414 : vector<2x32xf32>
    %416 = arith.mulf %406, %415 : vector<2x32xf32>
    %c0_114 = arith.constant 0 : index
    %c0_115 = arith.constant 0 : index
    %417 = vector.load %arg11[%c0_114, %c0_115] : memref<16x64xf32, #tpu.memory_space<vmem>>, vector<2x32xf32>
    tpu.vector_store %arg11[%c0_114, %c0_115], %411 {strides = array<i32>} : memref<16x64xf32, #tpu.memory_space<vmem>>, vector<2x32xf32>,
    %c14_116 = arith.constant 14 : index
    %c32_117 = arith.constant 32 : index
    %418 = vector.load %arg11[%c14_116, %c32_117] : memref<16x64xf32, #tpu.memory_space<vmem>>, vector<2x32xf32>
    tpu.vector_store %arg11[%c14_116, %c32_117], %416 {strides = array<i32>} : memref<16x64xf32, #tpu.memory_space<vmem>>, vector<2x32xf32>,
    %419 = tpu.concatenate %411, %416 in 1 : vector<2x32xf32>, vector<2x32xf32> -> vector<2x64xf32>
    %420 = arith.truncf %419 : vector<2x64xf32> to vector<2x64xbf16>
    %cst_118 = arith.constant dense<0.000000e+00> : vector<2x256xf32>
    %421 = tpu.matmul %420, %371, %cst_118 {dimension_numbers = #tpu.dot_dimension_numbers<[1], [0], [0], [1], [0, 0, 1, 1], [], []>} : vector<2x64xbf16>, vector<64x256xbf16>, vector<2x256xf32> -> vector<2x256xf32>
    %c2_119 = arith.constant 2 : index
    %c0_120 = arith.constant 0 : index
    %422 = vector.load %arg10[%c2_119, %c0_120] : memref<16x256xf32, #tpu.memory_space<vmem>>, vector<2x128xf32>
    %423 = vector.extract_strided_slice %421 {offsets = [0, 0], sizes = [2, 128], strides = [1, 1]} : vector<2x256xf32> to vector<2x128xf32>
    %424 = arith.addf %422, %423 : vector<2x128xf32>
    %c12_121 = arith.constant 12 : index
    %c128_122 = arith.constant 128 : index
    %425 = vector.load %arg10[%c12_121, %c128_122] : memref<16x256xf32, #tpu.memory_space<vmem>>, vector<2x128xf32>
    %426 = vector.extract_strided_slice %421 {offsets = [0, 128], sizes = [2, 128], strides = [1, 1]} : vector<2x256xf32> to vector<2x128xf32>
    %427 = arith.addf %425, %426 : vector<2x128xf32>
    %428 = math.tanh %424 : vector<2x128xf32>
    %429 = arith.negf %424 : vector<2x128xf32>
    %430 = math.exp %429 : vector<2x128xf32>
    %cst_123 = arith.constant 1.000000e+00 : f32
    %431 = vector.broadcast %cst_123 : f32 to vector<2x128xf32>
    %432 = arith.addf %431, %430 : vector<2x128xf32>
    %433 = arith.divf %431, %432 : vector<2x128xf32>
    %434 = arith.select %5, %428, %433 : vector<2x128xi1>, vector<2x128xf32>
    %435 = math.tanh %427 : vector<2x128xf32>
    %436 = arith.negf %427 : vector<2x128xf32>
    %437 = math.exp %436 : vector<2x128xf32>
    %cst_124 = arith.constant 1.000000e+00 : f32
    %438 = vector.broadcast %cst_124 : f32 to vector<2x128xf32>
    %439 = arith.addf %438, %437 : vector<2x128xf32>
    %440 = arith.divf %438, %439 : vector<2x128xf32>
    %441 = arith.select %5, %435, %440 : vector<2x128xi1>, vector<2x128xf32>
    %442 = vector.extract_strided_slice %434 {offsets = [0, 0], sizes = [2, 32], strides = [1, 1]} : vector<2x128xf32> to vector<2x32xf32>
    %443 = vector.extract_strided_slice %434 {offsets = [0, 32], sizes = [2, 32], strides = [1, 1]} : vector<2x128xf32> to vector<2x32xf32>
    %444 = vector.extract_strided_slice %434 {offsets = [0, 64], sizes = [2, 32], strides = [1, 1]} : vector<2x128xf32> to vector<2x32xf32>
    %445 = vector.extract_strided_slice %434 {offsets = [0, 96], sizes = [2, 32], strides = [1, 1]} : vector<2x128xf32> to vector<2x32xf32>
    %446 = vector.extract_strided_slice %441 {offsets = [0, 0], sizes = [2, 32], strides = [1, 1]} : vector<2x128xf32> to vector<2x32xf32>
    %447 = vector.extract_strided_slice %441 {offsets = [0, 32], sizes = [2, 32], strides = [1, 1]} : vector<2x128xf32> to vector<2x32xf32>
    %448 = vector.extract_strided_slice %441 {offsets = [0, 64], sizes = [2, 32], strides = [1, 1]} : vector<2x128xf32> to vector<2x32xf32>
    %449 = vector.extract_strided_slice %441 {offsets = [0, 96], sizes = [2, 32], strides = [1, 1]} : vector<2x128xf32> to vector<2x32xf32>
    %450 = arith.mulf %443, %409 : vector<2x32xf32>
    %451 = arith.mulf %442, %444 : vector<2x32xf32>
    %452 = arith.addf %450, %451 : vector<2x32xf32>
    %453 = math.tanh %452 : vector<2x32xf32>
    %454 = arith.mulf %445, %453 : vector<2x32xf32>
    %455 = arith.mulf %447, %414 : vector<2x32xf32>
    %456 = arith.mulf %446, %448 : vector<2x32xf32>
    %457 = arith.addf %455, %456 : vector<2x32xf32>
    %458 = math.tanh %457 : vector<2x32xf32>
    %459 = arith.mulf %449, %458 : vector<2x32xf32>
    %c2_125 = arith.constant 2 : index
    %c0_126 = arith.constant 0 : index
    %460 = vector.load %arg11[%c2_125, %c0_126] : memref<16x64xf32, #tpu.memory_space<vmem>>, vector<2x32xf32>
    tpu.vector_store %arg11[%c2_125, %c0_126], %454 {strides = array<i32>} : memref<16x64xf32, #tpu.memory_space<vmem>>, vector<2x32xf32>,
    %c12_127 = arith.constant 12 : index
    %c32_128 = arith.constant 32 : index
    %461 = vector.load %arg11[%c12_127, %c32_128] : memref<16x64xf32, #tpu.memory_space<vmem>>, vector<2x32xf32>
    tpu.vector_store %arg11[%c12_127, %c32_128], %459 {strides = array<i32>} : memref<16x64xf32, #tpu.memory_space<vmem>>, vector<2x32xf32>,
    %462 = tpu.concatenate %454, %459 in 1 : vector<2x32xf32>, vector<2x32xf32> -> vector<2x64xf32>
    %463 = arith.truncf %462 : vector<2x64xf32> to vector<2x64xbf16>
    %cst_129 = arith.constant dense<0.000000e+00> : vector<2x256xf32>
    %464 = tpu.matmul %463, %371, %cst_129 {dimension_numbers = #tpu.dot_dimension_numbers<[1], [0], [0], [1], [0, 0, 1, 1], [], []>} : vector<2x64xbf16>, vector<64x256xbf16>, vector<2x256xf32> -> vector<2x256xf32>
    %c4_130 = arith.constant 4 : index
    %c0_131 = arith.constant 0 : index
    %465 = vector.load %arg10[%c4_130, %c0_131] : memref<16x256xf32, #tpu.memory_space<vmem>>, vector<2x128xf32>
    %466 = vector.extract_strided_slice %464 {offsets = [0, 0], sizes = [2, 128], strides = [1, 1]} : vector<2x256xf32> to vector<2x128xf32>
    %467 = arith.addf %465, %466 : vector<2x128xf32>
    %c10_132 = arith.constant 10 : index
    %c128_133 = arith.constant 128 : index
    %468 = vector.load %arg10[%c10_132, %c128_133] : memref<16x256xf32, #tpu.memory_space<vmem>>, vector<2x128xf32>
    %469 = vector.extract_strided_slice %464 {offsets = [0, 128], sizes = [2, 128], strides = [1, 1]} : vector<2x256xf32> to vector<2x128xf32>
    %470 = arith.addf %468, %469 : vector<2x128xf32>
    %471 = math.tanh %467 : vector<2x128xf32>
    %472 = arith.negf %467 : vector<2x128xf32>
    %473 = math.exp %472 : vector<2x128xf32>
    %cst_134 = arith.constant 1.000000e+00 : f32
    %474 = vector.broadcast %cst_134 : f32 to vector<2x128xf32>
    %475 = arith.addf %474, %473 : vector<2x128xf32>
    %476 = arith.divf %474, %475 : vector<2x128xf32>
    %477 = arith.select %5, %471, %476 : vector<2x128xi1>, vector<2x128xf32>
    %478 = math.tanh %470 : vector<2x128xf32>
    %479 = arith.negf %470 : vector<2x128xf32>
    %480 = math.exp %479 : vector<2x128xf32>
    %cst_135 = arith.constant 1.000000e+00 : f32
    %481 = vector.broadcast %cst_135 : f32 to vector<2x128xf32>
    %482 = arith.addf %481, %480 : vector<2x128xf32>
    %483 = arith.divf %481, %482 : vector<2x128xf32>
    %484 = arith.select %5, %478, %483 : vector<2x128xi1>, vector<2x128xf32>
    %485 = vector.extract_strided_slice %477 {offsets = [0, 0], sizes = [2, 32], strides = [1, 1]} : vector<2x128xf32> to vector<2x32xf32>
    %486 = vector.extract_strided_slice %477 {offsets = [0, 32], sizes = [2, 32], strides = [1, 1]} : vector<2x128xf32> to vector<2x32xf32>
    %487 = vector.extract_strided_slice %477 {offsets = [0, 64], sizes = [2, 32], strides = [1, 1]} : vector<2x128xf32> to vector<2x32xf32>
    %488 = vector.extract_strided_slice %477 {offsets = [0, 96], sizes = [2, 32], strides = [1, 1]} : vector<2x128xf32> to vector<2x32xf32>
    %489 = vector.extract_strided_slice %484 {offsets = [0, 0], sizes = [2, 32], strides = [1, 1]} : vector<2x128xf32> to vector<2x32xf32>
    %490 = vector.extract_strided_slice %484 {offsets = [0, 32], sizes = [2, 32], strides = [1, 1]} : vector<2x128xf32> to vector<2x32xf32>
    %491 = vector.extract_strided_slice %484 {offsets = [0, 64], sizes = [2, 32], strides = [1, 1]} : vector<2x128xf32> to vector<2x32xf32>
    %492 = vector.extract_strided_slice %484 {offsets = [0, 96], sizes = [2, 32], strides = [1, 1]} : vector<2x128xf32> to vector<2x32xf32>
    %493 = arith.mulf %486, %452 : vector<2x32xf32>
    %494 = arith.mulf %485, %487 : vector<2x32xf32>
    %495 = arith.addf %493, %494 : vector<2x32xf32>
    %496 = math.tanh %495 : vector<2x32xf32>
    %497 = arith.mulf %488, %496 : vector<2x32xf32>
    %498 = arith.mulf %490, %457 : vector<2x32xf32>
    %499 = arith.mulf %489, %491 : vector<2x32xf32>
    %500 = arith.addf %498, %499 : vector<2x32xf32>
    %501 = math.tanh %500 : vector<2x32xf32>
    %502 = arith.mulf %492, %501 : vector<2x32xf32>
    %c4_136 = arith.constant 4 : index
    %c0_137 = arith.constant 0 : index
    %503 = vector.load %arg11[%c4_136, %c0_137] : memref<16x64xf32, #tpu.memory_space<vmem>>, vector<2x32xf32>
    tpu.vector_store %arg11[%c4_136, %c0_137], %497 {strides = array<i32>} : memref<16x64xf32, #tpu.memory_space<vmem>>, vector<2x32xf32>,
    %c10_138 = arith.constant 10 : index
    %c32_139 = arith.constant 32 : index
    %504 = vector.load %arg11[%c10_138, %c32_139] : memref<16x64xf32, #tpu.memory_space<vmem>>, vector<2x32xf32>
    tpu.vector_store %arg11[%c10_138, %c32_139], %502 {strides = array<i32>} : memref<16x64xf32, #tpu.memory_space<vmem>>, vector<2x32xf32>,
    %505 = tpu.concatenate %497, %502 in 1 : vector<2x32xf32>, vector<2x32xf32> -> vector<2x64xf32>
    %506 = arith.truncf %505 : vector<2x64xf32> to vector<2x64xbf16>
    %cst_140 = arith.constant dense<0.000000e+00> : vector<2x256xf32>
    %507 = tpu.matmul %506, %371, %cst_140 {dimension_numbers = #tpu.dot_dimension_numbers<[1], [0], [0], [1], [0, 0, 1, 1], [], []>} : vector<2x64xbf16>, vector<64x256xbf16>, vector<2x256xf32> -> vector<2x256xf32>
    %c6_141 = arith.constant 6 : index
    %c0_142 = arith.constant 0 : index
    %508 = vector.load %arg10[%c6_141, %c0_142] : memref<16x256xf32, #tpu.memory_space<vmem>>, vector<2x128xf32>
    %509 = vector.extract_strided_slice %507 {offsets = [0, 0], sizes = [2, 128], strides = [1, 1]} : vector<2x256xf32> to vector<2x128xf32>
    %510 = arith.addf %508, %509 : vector<2x128xf32>
    %c8_143 = arith.constant 8 : index
    %c128_144 = arith.constant 128 : index
    %511 = vector.load %arg10[%c8_143, %c128_144] : memref<16x256xf32, #tpu.memory_space<vmem>>, vector<2x128xf32>
    %512 = vector.extract_strided_slice %507 {offsets = [0, 128], sizes = [2, 128], strides = [1, 1]} : vector<2x256xf32> to vector<2x128xf32>
    %513 = arith.addf %511, %512 : vector<2x128xf32>
    %514 = math.tanh %510 : vector<2x128xf32>
    %515 = arith.negf %510 : vector<2x128xf32>
    %516 = math.exp %515 : vector<2x128xf32>
    %cst_145 = arith.constant 1.000000e+00 : f32
    %517 = vector.broadcast %cst_145 : f32 to vector<2x128xf32>
    %518 = arith.addf %517, %516 : vector<2x128xf32>
    %519 = arith.divf %517, %518 : vector<2x128xf32>
    %520 = arith.select %5, %514, %519 : vector<2x128xi1>, vector<2x128xf32>
    %521 = math.tanh %513 : vector<2x128xf32>
    %522 = arith.negf %513 : vector<2x128xf32>
    %523 = math.exp %522 : vector<2x128xf32>
    %cst_146 = arith.constant 1.000000e+00 : f32
    %524 = vector.broadcast %cst_146 : f32 to vector<2x128xf32>
    %525 = arith.addf %524, %523 : vector<2x128xf32>
    %526 = arith.divf %524, %525 : vector<2x128xf32>
    %527 = arith.select %5, %521, %526 : vector<2x128xi1>, vector<2x128xf32>
    %528 = vector.extract_strided_slice %520 {offsets = [0, 0], sizes = [2, 32], strides = [1, 1]} : vector<2x128xf32> to vector<2x32xf32>
    %529 = vector.extract_strided_slice %520 {offsets = [0, 32], sizes = [2, 32], strides = [1, 1]} : vector<2x128xf32> to vector<2x32xf32>
    %530 = vector.extract_strided_slice %520 {offsets = [0, 64], sizes = [2, 32], strides = [1, 1]} : vector<2x128xf32> to vector<2x32xf32>
    %531 = vector.extract_strided_slice %520 {offsets = [0, 96], sizes = [2, 32], strides = [1, 1]} : vector<2x128xf32> to vector<2x32xf32>
    %532 = vector.extract_strided_slice %527 {offsets = [0, 0], sizes = [2, 32], strides = [1, 1]} : vector<2x128xf32> to vector<2x32xf32>
    %533 = vector.extract_strided_slice %527 {offsets = [0, 32], sizes = [2, 32], strides = [1, 1]} : vector<2x128xf32> to vector<2x32xf32>
    %534 = vector.extract_strided_slice %527 {offsets = [0, 64], sizes = [2, 32], strides = [1, 1]} : vector<2x128xf32> to vector<2x32xf32>
    %535 = vector.extract_strided_slice %527 {offsets = [0, 96], sizes = [2, 32], strides = [1, 1]} : vector<2x128xf32> to vector<2x32xf32>
    %536 = arith.mulf %529, %495 : vector<2x32xf32>
    %537 = arith.mulf %528, %530 : vector<2x32xf32>
    %538 = arith.addf %536, %537 : vector<2x32xf32>
    %539 = math.tanh %538 : vector<2x32xf32>
    %540 = arith.mulf %531, %539 : vector<2x32xf32>
    %541 = arith.mulf %533, %500 : vector<2x32xf32>
    %542 = arith.mulf %532, %534 : vector<2x32xf32>
    %543 = arith.addf %541, %542 : vector<2x32xf32>
    %544 = math.tanh %543 : vector<2x32xf32>
    %545 = arith.mulf %535, %544 : vector<2x32xf32>
    %c6_147 = arith.constant 6 : index
    %c0_148 = arith.constant 0 : index
    %546 = vector.load %arg11[%c6_147, %c0_148] : memref<16x64xf32, #tpu.memory_space<vmem>>, vector<2x32xf32>
    tpu.vector_store %arg11[%c6_147, %c0_148], %540 {strides = array<i32>} : memref<16x64xf32, #tpu.memory_space<vmem>>, vector<2x32xf32>,
    %c8_149 = arith.constant 8 : index
    %c32_150 = arith.constant 32 : index
    %547 = vector.load %arg11[%c8_149, %c32_150] : memref<16x64xf32, #tpu.memory_space<vmem>>, vector<2x32xf32>
    tpu.vector_store %arg11[%c8_149, %c32_150], %545 {strides = array<i32>} : memref<16x64xf32, #tpu.memory_space<vmem>>, vector<2x32xf32>,
    %548 = tpu.concatenate %540, %545 in 1 : vector<2x32xf32>, vector<2x32xf32> -> vector<2x64xf32>
    %549 = arith.truncf %548 : vector<2x64xf32> to vector<2x64xbf16>
    %cst_151 = arith.constant dense<0.000000e+00> : vector<2x256xf32>
    %550 = tpu.matmul %549, %371, %cst_151 {dimension_numbers = #tpu.dot_dimension_numbers<[1], [0], [0], [1], [0, 0, 1, 1], [], []>} : vector<2x64xbf16>, vector<64x256xbf16>, vector<2x256xf32> -> vector<2x256xf32>
    %c8_152 = arith.constant 8 : index
    %c0_153 = arith.constant 0 : index
    %551 = vector.load %arg10[%c8_152, %c0_153] : memref<16x256xf32, #tpu.memory_space<vmem>>, vector<2x128xf32>
    %552 = vector.extract_strided_slice %550 {offsets = [0, 0], sizes = [2, 128], strides = [1, 1]} : vector<2x256xf32> to vector<2x128xf32>
    %553 = arith.addf %551, %552 : vector<2x128xf32>
    %c6_154 = arith.constant 6 : index
    %c128_155 = arith.constant 128 : index
    %554 = vector.load %arg10[%c6_154, %c128_155] : memref<16x256xf32, #tpu.memory_space<vmem>>, vector<2x128xf32>
    %555 = vector.extract_strided_slice %550 {offsets = [0, 128], sizes = [2, 128], strides = [1, 1]} : vector<2x256xf32> to vector<2x128xf32>
    %556 = arith.addf %554, %555 : vector<2x128xf32>
    %557 = math.tanh %553 : vector<2x128xf32>
    %558 = arith.negf %553 : vector<2x128xf32>
    %559 = math.exp %558 : vector<2x128xf32>
    %cst_156 = arith.constant 1.000000e+00 : f32
    %560 = vector.broadcast %cst_156 : f32 to vector<2x128xf32>
    %561 = arith.addf %560, %559 : vector<2x128xf32>
    %562 = arith.divf %560, %561 : vector<2x128xf32>
    %563 = arith.select %5, %557, %562 : vector<2x128xi1>, vector<2x128xf32>
    %564 = math.tanh %556 : vector<2x128xf32>
    %565 = arith.negf %556 : vector<2x128xf32>
    %566 = math.exp %565 : vector<2x128xf32>
    %cst_157 = arith.constant 1.000000e+00 : f32
    %567 = vector.broadcast %cst_157 : f32 to vector<2x128xf32>
    %568 = arith.addf %567, %566 : vector<2x128xf32>
    %569 = arith.divf %567, %568 : vector<2x128xf32>
    %570 = arith.select %5, %564, %569 : vector<2x128xi1>, vector<2x128xf32>
    %571 = vector.extract_strided_slice %563 {offsets = [0, 0], sizes = [2, 32], strides = [1, 1]} : vector<2x128xf32> to vector<2x32xf32>
    %572 = vector.extract_strided_slice %563 {offsets = [0, 32], sizes = [2, 32], strides = [1, 1]} : vector<2x128xf32> to vector<2x32xf32>
    %573 = vector.extract_strided_slice %563 {offsets = [0, 64], sizes = [2, 32], strides = [1, 1]} : vector<2x128xf32> to vector<2x32xf32>
    %574 = vector.extract_strided_slice %563 {offsets = [0, 96], sizes = [2, 32], strides = [1, 1]} : vector<2x128xf32> to vector<2x32xf32>
    %575 = vector.extract_strided_slice %570 {offsets = [0, 0], sizes = [2, 32], strides = [1, 1]} : vector<2x128xf32> to vector<2x32xf32>
    %576 = vector.extract_strided_slice %570 {offsets = [0, 32], sizes = [2, 32], strides = [1, 1]} : vector<2x128xf32> to vector<2x32xf32>
    %577 = vector.extract_strided_slice %570 {offsets = [0, 64], sizes = [2, 32], strides = [1, 1]} : vector<2x128xf32> to vector<2x32xf32>
    %578 = vector.extract_strided_slice %570 {offsets = [0, 96], sizes = [2, 32], strides = [1, 1]} : vector<2x128xf32> to vector<2x32xf32>
    %579 = arith.mulf %572, %538 : vector<2x32xf32>
    %580 = arith.mulf %571, %573 : vector<2x32xf32>
    %581 = arith.addf %579, %580 : vector<2x32xf32>
    %582 = math.tanh %581 : vector<2x32xf32>
    %583 = arith.mulf %574, %582 : vector<2x32xf32>
    %584 = arith.mulf %576, %543 : vector<2x32xf32>
    %585 = arith.mulf %575, %577 : vector<2x32xf32>
    %586 = arith.addf %584, %585 : vector<2x32xf32>
    %587 = math.tanh %586 : vector<2x32xf32>
    %588 = arith.mulf %578, %587 : vector<2x32xf32>
    %c8_158 = arith.constant 8 : index
    %c0_159 = arith.constant 0 : index
    %589 = vector.load %arg11[%c8_158, %c0_159] : memref<16x64xf32, #tpu.memory_space<vmem>>, vector<2x32xf32>
    tpu.vector_store %arg11[%c8_158, %c0_159], %583 {strides = array<i32>} : memref<16x64xf32, #tpu.memory_space<vmem>>, vector<2x32xf32>,
    %c6_160 = arith.constant 6 : index
    %c32_161 = arith.constant 32 : index
    %590 = vector.load %arg11[%c6_160, %c32_161] : memref<16x64xf32, #tpu.memory_space<vmem>>, vector<2x32xf32>
    tpu.vector_store %arg11[%c6_160, %c32_161], %588 {strides = array<i32>} : memref<16x64xf32, #tpu.memory_space<vmem>>, vector<2x32xf32>,
    %591 = tpu.concatenate %583, %588 in 1 : vector<2x32xf32>, vector<2x32xf32> -> vector<2x64xf32>
    %592 = arith.truncf %591 : vector<2x64xf32> to vector<2x64xbf16>
    %cst_162 = arith.constant dense<0.000000e+00> : vector<2x256xf32>
    %593 = tpu.matmul %592, %371, %cst_162 {dimension_numbers = #tpu.dot_dimension_numbers<[1], [0], [0], [1], [0, 0, 1, 1], [], []>} : vector<2x64xbf16>, vector<64x256xbf16>, vector<2x256xf32> -> vector<2x256xf32>
    %c10_163 = arith.constant 10 : index
    %c0_164 = arith.constant 0 : index
    %594 = vector.load %arg10[%c10_163, %c0_164] : memref<16x256xf32, #tpu.memory_space<vmem>>, vector<2x128xf32>
    %595 = vector.extract_strided_slice %593 {offsets = [0, 0], sizes = [2, 128], strides = [1, 1]} : vector<2x256xf32> to vector<2x128xf32>
    %596 = arith.addf %594, %595 : vector<2x128xf32>
    %c4_165 = arith.constant 4 : index
    %c128_166 = arith.constant 128 : index
    %597 = vector.load %arg10[%c4_165, %c128_166] : memref<16x256xf32, #tpu.memory_space<vmem>>, vector<2x128xf32>
    %598 = vector.extract_strided_slice %593 {offsets = [0, 128], sizes = [2, 128], strides = [1, 1]} : vector<2x256xf32> to vector<2x128xf32>
    %599 = arith.addf %597, %598 : vector<2x128xf32>
    %600 = math.tanh %596 : vector<2x128xf32>
    %601 = arith.negf %596 : vector<2x128xf32>
    %602 = math.exp %601 : vector<2x128xf32>
    %cst_167 = arith.constant 1.000000e+00 : f32
    %603 = vector.broadcast %cst_167 : f32 to vector<2x128xf32>
    %604 = arith.addf %603, %602 : vector<2x128xf32>
    %605 = arith.divf %603, %604 : vector<2x128xf32>
    %606 = arith.select %5, %600, %605 : vector<2x128xi1>, vector<2x128xf32>
    %607 = math.tanh %599 : vector<2x128xf32>
    %608 = arith.negf %599 : vector<2x128xf32>
    %609 = math.exp %608 : vector<2x128xf32>
    %cst_168 = arith.constant 1.000000e+00 : f32
    %610 = vector.broadcast %cst_168 : f32 to vector<2x128xf32>
    %611 = arith.addf %610, %609 : vector<2x128xf32>
    %612 = arith.divf %610, %611 : vector<2x128xf32>
    %613 = arith.select %5, %607, %612 : vector<2x128xi1>, vector<2x128xf32>
    %614 = vector.extract_strided_slice %606 {offsets = [0, 0], sizes = [2, 32], strides = [1, 1]} : vector<2x128xf32> to vector<2x32xf32>
    %615 = vector.extract_strided_slice %606 {offsets = [0, 32], sizes = [2, 32], strides = [1, 1]} : vector<2x128xf32> to vector<2x32xf32>
    %616 = vector.extract_strided_slice %606 {offsets = [0, 64], sizes = [2, 32], strides = [1, 1]} : vector<2x128xf32> to vector<2x32xf32>
    %617 = vector.extract_strided_slice %606 {offsets = [0, 96], sizes = [2, 32], strides = [1, 1]} : vector<2x128xf32> to vector<2x32xf32>
    %618 = vector.extract_strided_slice %613 {offsets = [0, 0], sizes = [2, 32], strides = [1, 1]} : vector<2x128xf32> to vector<2x32xf32>
    %619 = vector.extract_strided_slice %613 {offsets = [0, 32], sizes = [2, 32], strides = [1, 1]} : vector<2x128xf32> to vector<2x32xf32>
    %620 = vector.extract_strided_slice %613 {offsets = [0, 64], sizes = [2, 32], strides = [1, 1]} : vector<2x128xf32> to vector<2x32xf32>
    %621 = vector.extract_strided_slice %613 {offsets = [0, 96], sizes = [2, 32], strides = [1, 1]} : vector<2x128xf32> to vector<2x32xf32>
    %622 = arith.mulf %615, %581 : vector<2x32xf32>
    %623 = arith.mulf %614, %616 : vector<2x32xf32>
    %624 = arith.addf %622, %623 : vector<2x32xf32>
    %625 = math.tanh %624 : vector<2x32xf32>
    %626 = arith.mulf %617, %625 : vector<2x32xf32>
    %627 = arith.mulf %619, %586 : vector<2x32xf32>
    %628 = arith.mulf %618, %620 : vector<2x32xf32>
    %629 = arith.addf %627, %628 : vector<2x32xf32>
    %630 = math.tanh %629 : vector<2x32xf32>
    %631 = arith.mulf %621, %630 : vector<2x32xf32>
    %c10_169 = arith.constant 10 : index
    %c0_170 = arith.constant 0 : index
    %632 = vector.load %arg11[%c10_169, %c0_170] : memref<16x64xf32, #tpu.memory_space<vmem>>, vector<2x32xf32>
    tpu.vector_store %arg11[%c10_169, %c0_170], %626 {strides = array<i32>} : memref<16x64xf32, #tpu.memory_space<vmem>>, vector<2x32xf32>,
    %c4_171 = arith.constant 4 : index
    %c32_172 = arith.constant 32 : index
    %633 = vector.load %arg11[%c4_171, %c32_172] : memref<16x64xf32, #tpu.memory_space<vmem>>, vector<2x32xf32>
    tpu.vector_store %arg11[%c4_171, %c32_172], %631 {strides = array<i32>} : memref<16x64xf32, #tpu.memory_space<vmem>>, vector<2x32xf32>,
    %634 = tpu.concatenate %626, %631 in 1 : vector<2x32xf32>, vector<2x32xf32> -> vector<2x64xf32>
    %635 = arith.truncf %634 : vector<2x64xf32> to vector<2x64xbf16>
    %cst_173 = arith.constant dense<0.000000e+00> : vector<2x256xf32>
    %636 = tpu.matmul %635, %371, %cst_173 {dimension_numbers = #tpu.dot_dimension_numbers<[1], [0], [0], [1], [0, 0, 1, 1], [], []>} : vector<2x64xbf16>, vector<64x256xbf16>, vector<2x256xf32> -> vector<2x256xf32>
    %c12_174 = arith.constant 12 : index
    %c0_175 = arith.constant 0 : index
    %637 = vector.load %arg10[%c12_174, %c0_175] : memref<16x256xf32, #tpu.memory_space<vmem>>, vector<2x128xf32>
    %638 = vector.extract_strided_slice %636 {offsets = [0, 0], sizes = [2, 128], strides = [1, 1]} : vector<2x256xf32> to vector<2x128xf32>
    %639 = arith.addf %637, %638 : vector<2x128xf32>
    %c2_176 = arith.constant 2 : index
    %c128_177 = arith.constant 128 : index
    %640 = vector.load %arg10[%c2_176, %c128_177] : memref<16x256xf32, #tpu.memory_space<vmem>>, vector<2x128xf32>
    %641 = vector.extract_strided_slice %636 {offsets = [0, 128], sizes = [2, 128], strides = [1, 1]} : vector<2x256xf32> to vector<2x128xf32>
    %642 = arith.addf %640, %641 : vector<2x128xf32>
    %643 = math.tanh %639 : vector<2x128xf32>
    %644 = arith.negf %639 : vector<2x128xf32>
    %645 = math.exp %644 : vector<2x128xf32>
    %cst_178 = arith.constant 1.000000e+00 : f32
    %646 = vector.broadcast %cst_178 : f32 to vector<2x128xf32>
    %647 = arith.addf %646, %645 : vector<2x128xf32>
    %648 = arith.divf %646, %647 : vector<2x128xf32>
    %649 = arith.select %5, %643, %648 : vector<2x128xi1>, vector<2x128xf32>
    %650 = math.tanh %642 : vector<2x128xf32>
    %651 = arith.negf %642 : vector<2x128xf32>
    %652 = math.exp %651 : vector<2x128xf32>
    %cst_179 = arith.constant 1.000000e+00 : f32
    %653 = vector.broadcast %cst_179 : f32 to vector<2x128xf32>
    %654 = arith.addf %653, %652 : vector<2x128xf32>
    %655 = arith.divf %653, %654 : vector<2x128xf32>
    %656 = arith.select %5, %650, %655 : vector<2x128xi1>, vector<2x128xf32>
    %657 = vector.extract_strided_slice %649 {offsets = [0, 0], sizes = [2, 32], strides = [1, 1]} : vector<2x128xf32> to vector<2x32xf32>
    %658 = vector.extract_strided_slice %649 {offsets = [0, 32], sizes = [2, 32], strides = [1, 1]} : vector<2x128xf32> to vector<2x32xf32>
    %659 = vector.extract_strided_slice %649 {offsets = [0, 64], sizes = [2, 32], strides = [1, 1]} : vector<2x128xf32> to vector<2x32xf32>
    %660 = vector.extract_strided_slice %649 {offsets = [0, 96], sizes = [2, 32], strides = [1, 1]} : vector<2x128xf32> to vector<2x32xf32>
    %661 = vector.extract_strided_slice %656 {offsets = [0, 0], sizes = [2, 32], strides = [1, 1]} : vector<2x128xf32> to vector<2x32xf32>
    %662 = vector.extract_strided_slice %656 {offsets = [0, 32], sizes = [2, 32], strides = [1, 1]} : vector<2x128xf32> to vector<2x32xf32>
    %663 = vector.extract_strided_slice %656 {offsets = [0, 64], sizes = [2, 32], strides = [1, 1]} : vector<2x128xf32> to vector<2x32xf32>
    %664 = vector.extract_strided_slice %656 {offsets = [0, 96], sizes = [2, 32], strides = [1, 1]} : vector<2x128xf32> to vector<2x32xf32>
    %665 = arith.mulf %658, %624 : vector<2x32xf32>
    %666 = arith.mulf %657, %659 : vector<2x32xf32>
    %667 = arith.addf %665, %666 : vector<2x32xf32>
    %668 = math.tanh %667 : vector<2x32xf32>
    %669 = arith.mulf %660, %668 : vector<2x32xf32>
    %670 = arith.mulf %662, %629 : vector<2x32xf32>
    %671 = arith.mulf %661, %663 : vector<2x32xf32>
    %672 = arith.addf %670, %671 : vector<2x32xf32>
    %673 = math.tanh %672 : vector<2x32xf32>
    %674 = arith.mulf %664, %673 : vector<2x32xf32>
    %c12_180 = arith.constant 12 : index
    %c0_181 = arith.constant 0 : index
    %675 = vector.load %arg11[%c12_180, %c0_181] : memref<16x64xf32, #tpu.memory_space<vmem>>, vector<2x32xf32>
    tpu.vector_store %arg11[%c12_180, %c0_181], %669 {strides = array<i32>} : memref<16x64xf32, #tpu.memory_space<vmem>>, vector<2x32xf32>,
    %c2_182 = arith.constant 2 : index
    %c32_183 = arith.constant 32 : index
    %676 = vector.load %arg11[%c2_182, %c32_183] : memref<16x64xf32, #tpu.memory_space<vmem>>, vector<2x32xf32>
    tpu.vector_store %arg11[%c2_182, %c32_183], %674 {strides = array<i32>} : memref<16x64xf32, #tpu.memory_space<vmem>>, vector<2x32xf32>,
    %677 = tpu.concatenate %669, %674 in 1 : vector<2x32xf32>, vector<2x32xf32> -> vector<2x64xf32>
    %678 = arith.truncf %677 : vector<2x64xf32> to vector<2x64xbf16>
    %cst_184 = arith.constant dense<0.000000e+00> : vector<2x256xf32>
    %679 = tpu.matmul %678, %371, %cst_184 {dimension_numbers = #tpu.dot_dimension_numbers<[1], [0], [0], [1], [0, 0, 1, 1], [], []>} : vector<2x64xbf16>, vector<64x256xbf16>, vector<2x256xf32> -> vector<2x256xf32>
    %c14_185 = arith.constant 14 : index
    %c0_186 = arith.constant 0 : index
    %680 = vector.load %arg10[%c14_185, %c0_186] : memref<16x256xf32, #tpu.memory_space<vmem>>, vector<2x128xf32>
    %681 = vector.extract_strided_slice %679 {offsets = [0, 0], sizes = [2, 128], strides = [1, 1]} : vector<2x256xf32> to vector<2x128xf32>
    %682 = arith.addf %680, %681 : vector<2x128xf32>
    %c0_187 = arith.constant 0 : index
    %c128_188 = arith.constant 128 : index
    %683 = vector.load %arg10[%c0_187, %c128_188] : memref<16x256xf32, #tpu.memory_space<vmem>>, vector<2x128xf32>
    %684 = vector.extract_strided_slice %679 {offsets = [0, 128], sizes = [2, 128], strides = [1, 1]} : vector<2x256xf32> to vector<2x128xf32>
    %685 = arith.addf %683, %684 : vector<2x128xf32>
    %686 = math.tanh %682 : vector<2x128xf32>
    %687 = arith.negf %682 : vector<2x128xf32>
    %688 = math.exp %687 : vector<2x128xf32>
    %cst_189 = arith.constant 1.000000e+00 : f32
    %689 = vector.broadcast %cst_189 : f32 to vector<2x128xf32>
    %690 = arith.addf %689, %688 : vector<2x128xf32>
    %691 = arith.divf %689, %690 : vector<2x128xf32>
    %692 = arith.select %5, %686, %691 : vector<2x128xi1>, vector<2x128xf32>
    %693 = math.tanh %685 : vector<2x128xf32>
    %694 = arith.negf %685 : vector<2x128xf32>
    %695 = math.exp %694 : vector<2x128xf32>
    %cst_190 = arith.constant 1.000000e+00 : f32
    %696 = vector.broadcast %cst_190 : f32 to vector<2x128xf32>
    %697 = arith.addf %696, %695 : vector<2x128xf32>
    %698 = arith.divf %696, %697 : vector<2x128xf32>
    %699 = arith.select %5, %693, %698 : vector<2x128xi1>, vector<2x128xf32>
    %700 = vector.extract_strided_slice %692 {offsets = [0, 0], sizes = [2, 32], strides = [1, 1]} : vector<2x128xf32> to vector<2x32xf32>
    %701 = vector.extract_strided_slice %692 {offsets = [0, 32], sizes = [2, 32], strides = [1, 1]} : vector<2x128xf32> to vector<2x32xf32>
    %702 = vector.extract_strided_slice %692 {offsets = [0, 64], sizes = [2, 32], strides = [1, 1]} : vector<2x128xf32> to vector<2x32xf32>
    %703 = vector.extract_strided_slice %692 {offsets = [0, 96], sizes = [2, 32], strides = [1, 1]} : vector<2x128xf32> to vector<2x32xf32>
    %704 = vector.extract_strided_slice %699 {offsets = [0, 0], sizes = [2, 32], strides = [1, 1]} : vector<2x128xf32> to vector<2x32xf32>
    %705 = vector.extract_strided_slice %699 {offsets = [0, 32], sizes = [2, 32], strides = [1, 1]} : vector<2x128xf32> to vector<2x32xf32>
    %706 = vector.extract_strided_slice %699 {offsets = [0, 64], sizes = [2, 32], strides = [1, 1]} : vector<2x128xf32> to vector<2x32xf32>
    %707 = vector.extract_strided_slice %699 {offsets = [0, 96], sizes = [2, 32], strides = [1, 1]} : vector<2x128xf32> to vector<2x32xf32>
    %708 = arith.mulf %701, %667 : vector<2x32xf32>
    %709 = arith.mulf %700, %702 : vector<2x32xf32>
    %710 = arith.addf %708, %709 : vector<2x32xf32>
    %711 = math.tanh %710 : vector<2x32xf32>
    %712 = arith.mulf %703, %711 : vector<2x32xf32>
    %713 = arith.mulf %705, %672 : vector<2x32xf32>
    %714 = arith.mulf %704, %706 : vector<2x32xf32>
    %715 = arith.addf %713, %714 : vector<2x32xf32>
    %716 = math.tanh %715 : vector<2x32xf32>
    %717 = arith.mulf %707, %716 : vector<2x32xf32>
    %c14_191 = arith.constant 14 : index
    %c0_192 = arith.constant 0 : index
    %718 = vector.load %arg11[%c14_191, %c0_192] : memref<16x64xf32, #tpu.memory_space<vmem>>, vector<2x32xf32>
    tpu.vector_store %arg11[%c14_191, %c0_192], %712 {strides = array<i32>} : memref<16x64xf32, #tpu.memory_space<vmem>>, vector<2x32xf32>,
    %c0_193 = arith.constant 0 : index
    %c32_194 = arith.constant 32 : index
    %719 = vector.load %arg11[%c0_193, %c32_194] : memref<16x64xf32, #tpu.memory_space<vmem>>, vector<2x32xf32>
    tpu.vector_store %arg11[%c0_193, %c32_194], %717 {strides = array<i32>} : memref<16x64xf32, #tpu.memory_space<vmem>>, vector<2x32xf32>,
    %c0_195 = arith.constant 0 : index
    %c0_196 = arith.constant 0 : index
    %720 = vector.load %arg11[%c0_195, %c0_196] : memref<16x64xf32, #tpu.memory_space<vmem>>, vector<16x64xf32>
    %721 = arith.truncf %720 : vector<16x64xf32> to vector<16x64xbf16>
    %c0_197 = arith.constant 0 : index
    %c0_198 = arith.constant 0 : index
    %722 = vector.load %arg7[%c0_197, %c0_198] : memref<64x128xbf16, #tpu.memory_space<vmem>>, vector<64x128xbf16>
    %cst_199 = arith.constant dense<0.000000e+00> : vector<16x128xf32>
    %723 = tpu.matmul %721, %722, %cst_199 {dimension_numbers = #tpu.dot_dimension_numbers<[1], [0], [0], [1], [0, 0, 1, 1], [], []>} : vector<16x64xbf16>, vector<64x128xbf16>, vector<16x128xf32> -> vector<16x128xf32>
    %c0_200 = arith.constant 0 : index
    %c0_201 = arith.constant 0 : index
    %724 = vector.load %arg8[%c0_200, %c0_201] : memref<1x128xf32, #tpu.memory_space<vmem>>, vector<1x128xf32>
    %725 = vector.broadcast %724 : vector<1x128xf32> to vector<16x128xf32>
    %726 = arith.addf %723, %725 : vector<16x128xf32>
    %c0_202 = arith.constant 0 : index
    %c0_203 = arith.constant 0 : index
    %727 = vector.load %arg9[%c0_202, %c0_203] : memref<16x128xf32, #tpu.memory_space<vmem>>, vector<16x128xf32>
    tpu.vector_store %arg9[%c0_202, %c0_203], %726 {strides = array<i32>} : memref<16x128xf32, #tpu.memory_space<vmem>>, vector<16x128xf32>,
    return
  }
}

</mosaic_0001>

<llo_original>
// kernel: pos_tagger_forward.1
$region0: #{pos_tagger_forward.1}
  #allocation0 [shape = 'u32[]', space=smem, size = 0x4, offset = 0x4, fixed_abs, tag = 'smem constant byte address 0x4 - core index']
  #allocation1 [shape = 'u32[144,128]{1,0:T(1,128)}', space=vmem, size = 0x12000, scoped, tag = 'internal scratch']
  #allocation2 [shape = 'f32[16,256]{1,0:T(8,128)}', space=vmem, size = 0x4000, scoped, tag = 'scratch operand']
  #allocation3 [shape = 'f32[16,64]{1,0:T(8,128)}', space=vmem, size = 0x2000, scoped, tag = 'scratch operand']
  %s0 = inlined_call_operand.vmem [shape: f32[16,32], index: 0, kind: input, shape index: {}]
  %s1 = inlined_call_operand.vmem [shape: bf16[32,256], index: 1, kind: input, shape index: {}]
  %s2 = inlined_call_operand.vmem [shape: bf16[64,256], index: 2, kind: input, shape index: {}]
  %s3 = inlined_call_operand.vmem [shape: f32[1,256], index: 3, kind: input, shape index: {}]
  %s4 = inlined_call_operand.vmem [shape: bf16[64,256], index: 4, kind: input, shape index: {}]
  %s5 = inlined_call_operand.vmem [shape: bf16[64,256], index: 5, kind: input, shape index: {}]
  %s6 = inlined_call_operand.vmem [shape: f32[1,256], index: 6, kind: input, shape index: {}]
  %s7 = inlined_call_operand.vmem [shape: bf16[64,128], index: 7, kind: input, shape index: {}]
  %s8 = inlined_call_operand.vmem [shape: f32[1,128], index: 8, kind: input, shape index: {}]
  %s9 = inlined_call_operand.hbm [shape: f32[16,128], index: 9, kind: output, shape index: {}]
  %s10 = sld [smem:[#allocation0]]
  $region46: #{pos_tagger_forward.1} parent=0
    _
  %s12 = ssub.s32 1, %s10
  %s13 = scalar_select 0, %s12, %s10
  $region1: #{pos_tagger_forward.1} parent=0
    #allocation4 [shape = 'u8[8192]{0}', space=vmem, size = 0x2000, scoped, tag = 'output window, operand 0, single buffered']
    #allocation5 [shape = 's32[1]{0}', space=sflag, size = 0x4, scoped, tag = 'scoped memory for pos_tagger_forward.1']
    %14 = vsyncpa [#allocation5], 0
    // Predicated region
    $region2: #{pos_tagger_forward.1} parent=1 // pred_check
      _
    $region3: #{pos_tagger_forward.1} parent=1 // pred_check_branch
      %16 = sbr.rel (0) target = $region5
    $region4: #{pos_tagger_forward.1} parent=1 // pred_region
      _
    $region5: #{pos_tagger_forward.1} parent=1 // pred_fallthru
      _
    // Predicated region
    $region6: #{pos_tagger_forward.1} parent=1 // pred_check
      _
    $region7: #{pos_tagger_forward.1} parent=1 // pred_check_branch
      %18 = sbr.rel (0) target = $region9
    $region8: #{pos_tagger_forward.1} parent=1 // pred_region
      _
    $region9: #{pos_tagger_forward.1} parent=1 // pred_fallthru
      _
    // Predicated region
    $region10: #{pos_tagger_forward.1} parent=1 // pred_check
      _
    $region11: #{pos_tagger_forward.1} parent=1 // pred_check_branch
      %20 = sbr.rel (0) target = $region13
    $region12: #{pos_tagger_forward.1} parent=1 // pred_region
      _
    $region13: #{pos_tagger_forward.1} parent=1 // pred_fallthru
      _
    // Predicated region
    $region14: #{pos_tagger_forward.1} parent=1 // pred_check
      _
    $region15: #{pos_tagger_forward.1} parent=1 // pred_check_branch
      %22 = sbr.rel (0) target = $region17
    $region16: #{pos_tagger_forward.1} parent=1 // pred_region
      _
    $region17: #{pos_tagger_forward.1} parent=1 // pred_fallthru
      _
    // Predicated region
    $region18: #{pos_tagger_forward.1} parent=1 // pred_check
      _
    $region19: #{pos_tagger_forward.1} parent=1 // pred_check_branch
      %24 = sbr.rel (0) target = $region21
    $region20: #{pos_tagger_forward.1} parent=1 // pred_region
      _
    $region21: #{pos_tagger_forward.1} parent=1 // pred_fallthru
      _
    // Predicated region
    $region22: #{pos_tagger_forward.1} parent=1 // pred_check
      _
    $region23: #{pos_tagger_forward.1} parent=1 // pred_check_branch
      %26 = sbr.rel (0) target = $region25
    $region24: #{pos_tagger_forward.1} parent=1 // pred_region
      _
    $region25: #{pos_tagger_forward.1} parent=1 // pred_fallthru
      _
    // Predicated region
    $region26: #{pos_tagger_forward.1} parent=1 // pred_check
      _
    $region27: #{pos_tagger_forward.1} parent=1 // pred_check_branch
      %28 = sbr.rel (0) target = $region29
    $region28: #{pos_tagger_forward.1} parent=1 // pred_region
      _
    $region29: #{pos_tagger_forward.1} parent=1 // pred_fallthru
      _
    // Predicated region
    $region30: #{pos_tagger_forward.1} parent=1 // pred_check
      _
    $region31: #{pos_tagger_forward.1} parent=1 // pred_check_branch
      %30 = sbr.rel (0) target = $region33
    $region32: #{pos_tagger_forward.1} parent=1 // pred_region
      _
    $region33: #{pos_tagger_forward.1} parent=1 // pred_fallthru
      _
    // Predicated region
    $region34: #{pos_tagger_forward.1} parent=1 // pred_check
      _
    $region35: #{pos_tagger_forward.1} parent=1 // pred_check_branch
      %32 = sbr.rel (0) target = $region37
    $region36: #{pos_tagger_forward.1} parent=1 // pred_region
      _
    $region37: #{pos_tagger_forward.1} parent=1 // pred_fallthru
      _
    %v34 = vlaneseq
    %v35 = vand.u32 %v34, 127
    %vm36 = vcmp.ge.s32.totalorder %v35, 64
    %vm37 = vcmp.lt.s32.totalorder %v35, 96
    %vm38 = vmand %vm36, %vm37
    %v39 = vld [vmem:[%s0] sm:$0xff]
    %v40 = vld [vmem:[%s0 + $0x8] sm:$0xff]
    %v41 = vpack.c.bf16 %v40, %v39
    %v42 = vld [vmem:[%s1] sm:$0xff]
    %v43 = vld [vmem:[%s1 + $0x8] sm:$0xff]
    %v44 = vld [vmem:[%s1 + $0x10] sm:$0xff]
    %v45 = vld [vmem:[%s1 + $0x18] sm:$0xff]
    %v46 = vld [vmem:[%s3] sm:$0x3]
    %v48 = vlaneseq
    %v49 = vshrl.u32 %v48, 7
    %v50 = vsub.s32 0, %v49
    %v51 = vrot.slane %v46, %v50
    %v52 = vlaneseq
    %v53 = vshrl.u32 %v52, 7
    %v54 = vsub.s32 1, %v53
    %v55 = vrot.slane %v46, %v54
    %v62 = vunpack.c.l.b16 %v42
    %v63 = vunpack.c.h.b16 %v42
    %v64 = vunpack.c.l.b16 %v43
    %v65 = vunpack.c.h.b16 %v43
    %v66 = vunpack.c.l.b16 %v44
    %v67 = vunpack.c.h.b16 %v44
    %v68 = vunpack.c.l.b16 %v45
    %v69 = vunpack.c.h.b16 %v45
    %v70 = vpack.c.b16 %v64, %v62
    %v71 = vpack.c.b16 %v65, %v63
    %v72 = vpack.c.b16 %v68, %v66
    %v73 = vpack.c.b16 %v69, %v67
    %vm78 = vcmask 261120
    %v80 = vsel %vm78, %v41, 0
    %82 = vmatprep.subr.bf16.mxu0 %v71
    %83 = vmatpush1.bf16.msra.mxu0 %v70
    %84 = vmatprep.subr.bf16.mxu0 %v73
    %85 = vmatpush1.bf16.msra.mxu0 %v72
    %86 = vmatprep.subr.bf16.mxu0 0
    %87 = vmatpush1.bf16.msra.mxu0 0
    %88 = vmatprep.subr.bf16.mxu0 0
    %89 = vmatpush1.bf16.msra.mxu0 0
    %90 = vmatprep.subr.bf16.mxu0 0
    %91 = vmatpush1.bf16.msra.mxu0 0
    %92 = vmatprep.subr.bf16.mxu0 0
    %93 = vmatpush1.bf16.msra.mxu0 0
    %94 = vmatprep.subr.bf16.mxu0 0
    %95 = vmatpush1.bf16.msra.mxu0 0
    %96 = vmatprep.subr.bf16.mxu0 0
    %97 = vmatpush1.bf16.msra.mxu0 0
    %98 = vmatprep.subr.bf16.mxu0 0
    %99 = vmatpush1.bf16.msra.mxu0 0
    %100 = vmatprep.subr.bf16.mxu0 0
    %101 = vmatpush1.bf16.msra.mxu0 0
    %102 = vmatprep.subr.bf16.mxu0 0
    %103 = vmatpush1.bf16.msra.mxu0 0
    %104 = vmatprep.subr.bf16.mxu0 0
    %105 = vmatpush1.bf16.msra.mxu0 0
    %106 = vmatprep.subr.bf16.mxu0 0
    %107 = vmatpush1.bf16.msra.mxu0 0
    %108 = vmatprep.subr.bf16.mxu0 0
    %109 = vmatpush1.bf16.msra.mxu0 0
    %110 = vmatprep.subr.bf16.mxu0 0
    %111 = vmatpush1.bf16.msra.mxu0 0
    %112 = vmatprep.subr.bf16.mxu0 0
    %113 = vmatpush1.bf16.msra.mxu0 0
    %114 = vmatprep.mubr.bf16.mxu0 0
    %115 = vmatmul.mubr.bf16.gmra.mrb[0].mxu0 %v80
    %v116 = vpop.f32.mrb[0].mxu0
    %v117 = vadd.f32 %v51, %v116
    %v118 = vpop.f32.mrb[0].mxu0
    %v119 = vadd.f32 %v55, %v118
    %v120 = vpop.f32.mrb[0].mxu0
    %v121 = vadd.f32 %v51, %v120
    %v122 = vpop.f32.mrb[0].mxu0
    %v123 = vadd.f32 %v55, %v122
    %124 = vdwg.mxu0
    %125 = vst [vmem:[#allocation2] sm:$0xff] %v117
    %126 = vst [vmem:[#allocation2 + $0x8] sm:$0xff] %v119
    %127 = vst [vmem:[#allocation2 + $0x10] sm:$0xff] %v121
    %128 = vst [vmem:[#allocation2 + $0x18] sm:$0xff] %v123
    %v129 = vld [vmem:[%s2] sm:$0xff]
    %v130 = vld [vmem:[%s2 + $0x8] sm:$0xff]
    %v131 = vld [vmem:[%s2 + $0x10] sm:$0xff]
    %v132 = vld [vmem:[%s2 + $0x18] sm:$0xff]
    %v133 = vld [vmem:[%s2 + $0x20] sm:$0xff]
    %v134 = vld [vmem:[%s2 + $0x28] sm:$0xff]
    %v135 = vld [vmem:[%s2 + $0x30] sm:$0xff]
    %v136 = vld [vmem:[%s2 + $0x38] sm:$0xff]
    %v137 = vpack.c.bf16 0.0, 0.0
    %v146 = vunpack.c.l.b16 %v129
    %v147 = vunpack.c.h.b16 %v129
    %v148 = vunpack.c.l.b16 %v130
    %v149 = vunpack.c.h.b16 %v130
    %v150 = vunpack.c.l.b16 %v131
    %v151 = vunpack.c.h.b16 %v131
    %v152 = vunpack.c.l.b16 %v132
    %v153 = vunpack.c.h.b16 %v132
    %v154 = vunpack.c.l.b16 %v133
    %v155 = vunpack.c.h.b16 %v133
    %v156 = vunpack.c.l.b16 %v134
    %v157 = vunpack.c.h.b16 %v134
    %v158 = vunpack.c.l.b16 %v135
    %v159 = vunpack.c.h.b16 %v135
    %v160 = vunpack.c.l.b16 %v136
    %v161 = vunpack.c.h.b16 %v136
    %v162 = vpack.c.b16 %v148, %v146
    %v163 = vpack.c.b16 %v149, %v147
    %v164 = vpack.c.b16 %v152, %v150
    %v165 = vpack.c.b16 %v153, %v151
    %v166 = vpack.c.b16 %v156, %v154
    %v167 = vpack.c.b16 %v157, %v155
    %v168 = vpack.c.b16 %v160, %v158
    %v169 = vpack.c.b16 %v161, %v159
    %vm178 = vcmask 523264
    %v180 = vsel %vm178, %v137, 0
    %182 = vmatprep.subr.bf16.mxu0 %v163
    %183 = vmatpush1.bf16.msra.mxu0 %v162
    %184 = vmatprep.subr.bf16.mxu0 %v165
    %185 = vmatpush1.bf16.msra.mxu0 %v164
    %186 = vmatprep.subr.bf16.mxu0 %v167
    %187 = vmatpush1.bf16.msra.mxu0 %v166
    %188 = vmatprep.subr.bf16.mxu0 %v169
    %189 = vmatpush1.bf16.msra.mxu0 %v168
    %190 = vmatprep.subr.bf16.mxu0 0
    %191 = vmatpush1.bf16.msra.mxu0 0
    %192 = vmatprep.subr.bf16.mxu0 0
    %193 = vmatpush1.bf16.msra.mxu0 0
    %194 = vmatprep.subr.bf16.mxu0 0
    %195 = vmatpush1.bf16.msra.mxu0 0
    %196 = vmatprep.subr.bf16.mxu0 0
    %197 = vmatpush1.bf16.msra.mxu0 0
    %198 = vmatprep.subr.bf16.mxu0 0
    %199 = vmatpush1.bf16.msra.mxu0 0
    %200 = vmatprep.subr.bf16.mxu0 0
    %201 = vmatpush1.bf16.msra.mxu0 0
    %202 = vmatprep.subr.bf16.mxu0 0
    %203 = vmatpush1.bf16.msra.mxu0 0
    %204 = vmatprep.subr.bf16.mxu0 0
    %205 = vmatpush1.bf16.msra.mxu0 0
    %206 = vmatprep.subr.bf16.mxu0 0
    %207 = vmatpush1.bf16.msra.mxu0 0
    %208 = vmatprep.subr.bf16.mxu0 0
    %209 = vmatpush1.bf16.msra.mxu0 0
    %210 = vmatprep.subr.bf16.mxu0 0
    %211 = vmatpush1.bf16.msra.mxu0 0
    %212 = vmatprep.subr.bf16.mxu0 0
    %213 = vmatpush1.bf16.msra.mxu0 0
    %214 = vmatprep.mubr.bf16.mxu0 0
    %215 = vmatmul.mubr.bf16.gmra.mrb[0].mxu0 %v180
    %v216 = vpop.f32.mrb[0].mxu0
    %v217 = vadd.f32 0.0, %v216
    %v218 = vpop.f32.mrb[0].mxu0
    %v219 = vadd.f32 0.0, %v218
    %v220 = vpop.f32.mrb[0].mxu0
    %v221 = vpop.f32.mrb[0].mxu0
    %222 = vdwg.mxu0
    %v223 = vld [vmem:[#allocation2] sm:$0x3]
    %v224 = vadd.f32 %v223, %v217
    %v225 = vld [vmem:[#allocation2 + $0x18] sm:$0xc0]
    %v227 = vrot.slane %v219, 2
    %v229 = vadd.f32 %v225, %v227
    %v230 = vtanh.pop %v224
    %v231 = vxor.u32 %v224, 2147483648
    %v232 = vmul.f32 %v231, 1.442695
    %v233 = vpow.pop %v232
    %v234 = vadd.f32 %v233, 1.0
    %v235 = vrcp.pop %v234
    %v236 = vmul.f32 1.0, %v235
    %v237 = vsel %vm38, %v230, %v236
    %v238 = vtanh.pop %v229
    %v239 = vxor.u32 %v229, 2147483648
    %v240 = vmul.f32 %v239, 1.442695
    %v241 = vpow.pop %v240
    %v242 = vadd.f32 %v241, 1.0
    %v243 = vrcp.pop %v242
    %v244 = vmul.f32 1.0, %v243
    %v245 = vsel %vm38, %v238, %v244
    %v246 = vmul.f32 %v237, 0.0
    %248 = vrot.lane.b32.xlu0 %v237, 64
    %v249 = vpop.permute.xlu0 %248
    %v251 = vmul.f32 %v237, %v249
    %253 = vrot.lane.b32.xlu0 %v251, 32
    %v254 = vpop.permute.xlu0 %253
    %v256 = vadd.f32 %v246, %v254
    %v257 = vtanh.pop %v256
    %259 = vrot.lane.b32.xlu0 %v257, 64
    %v260 = vpop.permute.xlu0 %259
    %v262 = vmul.f32 %v237, %v260
    %v263 = vmul.f32 %v245, 0.0
    %265 = vrot.lane.b32.xlu0 %v245, 64
    %v266 = vpop.permute.xlu0 %265
    %v268 = vmul.f32 %v245, %v266
    %270 = vrot.lane.b32.xlu0 %v268, 32
    %v271 = vpop.permute.xlu0 %270
    %v273 = vadd.f32 %v263, %v271
    %v274 = vtanh.pop %v273
    %276 = vrot.lane.b32.xlu0 %v274, 64
    %v277 = vpop.permute.xlu0 %276
    %v279 = vmul.f32 %v245, %v277
    %281 = vrot.lane.b32.xlu0 %v262, 32
    %v282 = vpop.permute.xlu0 %281
    %vm284 = vcmask 254976
    %285 = vst.msk [vmem:[#allocation3] sm:$0x3] %vm284, %v282
    %287 = vrot.lane.b32.xlu0 %v279, 64
    %v288 = vpop.permute.xlu0 %287
    %vm290 = vcmask 523526
    %291 = vst.msk [vmem:[#allocation3 + $0x8] sm:$0xc0] %vm290, %v288
    %v292 = vrot.slane %v279, 6
    %293 = vrot.lane.b32.xlu0 %v292, 64
    %v294 = vpop.permute.xlu0 %293
    %v296 = vsel %vm78, %v282, %v294
    %v297 = vpack.c.bf16 %v296, %v296
    %v299 = vsel %vm178, %v297, 0
    %301 = vmatprep.subr.bf16.mxu0 %v163
    %302 = vmatpush1.bf16.msra.mxu0 %v162
    %303 = vmatprep.subr.bf16.mxu0 %v165
    %304 = vmatpush1.bf16.msra.mxu0 %v164
    %305 = vmatprep.subr.bf16.mxu0 %v167
    %306 = vmatpush1.bf16.msra.mxu0 %v166
    %307 = vmatprep.subr.bf16.mxu0 %v169
    %308 = vmatpush1.bf16.msra.mxu0 %v168
    %309 = vmatprep.subr.bf16.mxu0 0
    %310 = vmatpush1.bf16.msra.mxu0 0
    %311 = vmatprep.subr.bf16.mxu0 0
    %312 = vmatpush1.bf16.msra.mxu0 0
    %313 = vmatprep.subr.bf16.mxu0 0
    %314 = vmatpush1.bf16.msra.mxu0 0
    %315 = vmatprep.subr.bf16.mxu0 0
    %316 = vmatpush1.bf16.msra.mxu0 0
    %317 = vmatprep.subr.bf16.mxu0 0
    %318 = vmatpush1.bf16.msra.mxu0 0
    %319 = vmatprep.subr.bf16.mxu0 0
    %320 = vmatpush1.bf16.msra.mxu0 0
    %321 = vmatprep.subr.bf16.mxu0 0
    %322 = vmatpush1.bf16.msra.mxu0 0
    %323 = vmatprep.subr.bf16.mxu0 0
    %324 = vmatpush1.bf16.msra.mxu0 0
    %325 = vmatprep.subr.bf16.mxu0 0
    %326 = vmatpush1.bf16.msra.mxu0 0
    %327 = vmatprep.subr.bf16.mxu0 0
    %328 = vmatpush1.bf16.msra.mxu0 0
    %329 = vmatprep.subr.bf16.mxu0 0
    %330 = vmatpush1.bf16.msra.mxu0 0
    %331 = vmatprep.subr.bf16.mxu0 0
    %332 = vmatpush1.bf16.msra.mxu0 0
    %333 = vmatprep.mubr.bf16.mxu0 0
    %334 = vmatmul.mubr.bf16.gmra.mrb[0].mxu0 %v299
    %v335 = vpop.f32.mrb[0].mxu0
    %v336 = vadd.f32 0.0, %v335
    %v337 = vpop.f32.mrb[0].mxu0
    %v338 = vadd.f32 0.0, %v337
    %v339 = vpop.f32.mrb[0].mxu0
    %v340 = vpop.f32.mrb[0].mxu0
    %341 = vdwg.mxu0
    %v342 = vld [vmem:[#allocation2] sm:$0xc]
    %v344 = vrot.slane %v336, 6
    %v346 = vadd.f32 %v342, %v344
    %v347 = vld [vmem:[#allocation2 + $0x18] sm:$0x30]
    %v349 = vrot.slane %v338, 4
    %v351 = vadd.f32 %v347, %v349
    %v352 = vtanh.pop %v346
    %v353 = vxor.u32 %v346, 2147483648
    %v354 = vmul.f32 %v353, 1.442695
    %v355 = vpow.pop %v354
    %v356 = vadd.f32 %v355, 1.0
    %v357 = vrcp.pop %v356
    %v358 = vmul.f32 1.0, %v357
    %v359 = vsel %vm38, %v352, %v358
    %v360 = vtanh.pop %v351
    %v361 = vxor.u32 %v351, 2147483648
    %v362 = vmul.f32 %v361, 1.442695
    %v363 = vpow.pop %v362
    %v364 = vadd.f32 %v363, 1.0
    %v365 = vrcp.pop %v364
    %v366 = vmul.f32 1.0, %v365
    %v367 = vsel %vm38, %v360, %v366
    %v369 = vrot.slane %v256, 6
    %v371 = vmul.f32 %v359, %v369
    %373 = vrot.lane.b32.xlu0 %v359, 64
    %v374 = vpop.permute.xlu0 %373
    %v376 = vmul.f32 %v359, %v374
    %378 = vrot.lane.b32.xlu0 %v376, 32
    %v379 = vpop.permute.xlu0 %378
    %v381 = vadd.f32 %v371, %v379
    %v382 = vtanh.pop %v381
    %384 = vrot.lane.b32.xlu0 %v382, 64
    %v385 = vpop.permute.xlu0 %384
    %v387 = vmul.f32 %v359, %v385
    %v389 = vrot.slane %v273, 2
    %v391 = vmul.f32 %v367, %v389
    %393 = vrot.lane.b32.xlu0 %v367, 64
    %v394 = vpop.permute.xlu0 %393
    %v396 = vmul.f32 %v367, %v394
    %398 = vrot.lane.b32.xlu0 %v396, 32
    %v399 = vpop.permute.xlu0 %398
    %v401 = vadd.f32 %v391, %v399
    %v402 = vtanh.pop %v401
    %404 = vrot.lane.b32.xlu0 %v402, 64
    %v405 = vpop.permute.xlu0 %404
    %v407 = vmul.f32 %v367, %v405
    %409 = vrot.lane.b32.xlu0 %v387, 32
    %v410 = vpop.permute.xlu0 %409
    %vm412 = vcmask 257026
    %413 = vst.msk [vmem:[#allocation3] sm:$0xc] %vm412, %v410
    %415 = vrot.lane.b32.xlu0 %v407, 64
    %v416 = vpop.permute.xlu0 %415
    %vm418 = vcmask 521476
    %419 = vst.msk [vmem:[#allocation3 + $0x8] sm:$0x30] %vm418, %v416
    %v420 = vrot.slane %v407, 2
    %421 = vrot.lane.b32.xlu0 %v420, 64
    %v422 = vpop.permute.xlu0 %421
    %v424 = vsel %vm78, %v410, %v422
    %v425 = vpack.c.bf16 %v424, %v424
    %v427 = vrot.slane %v425, 1
    %v429 = vsel %vm178, %v427, 0
    %431 = vmatprep.subr.bf16.mxu0 %v163
    %432 = vmatpush1.bf16.msra.mxu0 %v162
    %433 = vmatprep.subr.bf16.mxu0 %v165
    %434 = vmatpush1.bf16.msra.mxu0 %v164
    %435 = vmatprep.subr.bf16.mxu0 %v167
    %436 = vmatpush1.bf16.msra.mxu0 %v166
    %437 = vmatprep.subr.bf16.mxu0 %v169
    %438 = vmatpush1.bf16.msra.mxu0 %v168
    %439 = vmatprep.subr.bf16.mxu0 0
    %440 = vmatpush1.bf16.msra.mxu0 0
    %441 = vmatprep.subr.bf16.mxu0 0
    %442 = vmatpush1.bf16.msra.mxu0 0
    %443 = vmatprep.subr.bf16.mxu0 0
    %444 = vmatpush1.bf16.msra.mxu0 0
    %445 = vmatprep.subr.bf16.mxu0 0
    %446 = vmatpush1.bf16.msra.mxu0 0
    %447 = vmatprep.subr.bf16.mxu0 0
    %448 = vmatpush1.bf16.msra.mxu0 0
    %449 = vmatprep.subr.bf16.mxu0 0
    %450 = vmatpush1.bf16.msra.mxu0 0
    %451 = vmatprep.subr.bf16.mxu0 0
    %452 = vmatpush1.bf16.msra.mxu0 0
    %453 = vmatprep.subr.bf16.mxu0 0
    %454 = vmatpush1.bf16.msra.mxu0 0
    %455 = vmatprep.subr.bf16.mxu0 0
    %456 = vmatpush1.bf16.msra.mxu0 0
    %457 = vmatprep.subr.bf16.mxu0 0
    %458 = vmatpush1.bf16.msra.mxu0 0
    %459 = vmatprep.subr.bf16.mxu0 0
    %460 = vmatpush1.bf16.msra.mxu0 0
    %461 = vmatprep.subr.bf16.mxu0 0
    %462 = vmatpush1.bf16.msra.mxu0 0
    %463 = vmatprep.mubr.bf16.mxu0 0
    %464 = vmatmul.mubr.bf16.gmra.mrb[0].mxu0 %v429
    %v465 = vpop.f32.mrb[0].mxu0
    %v466 = vadd.f32 0.0, %v465
    %v467 = vpop.f32.mrb[0].mxu0
    %v468 = vadd.f32 0.0, %v467
    %v469 = vpop.f32.mrb[0].mxu0
    %v470 = vpop.f32.mrb[0].mxu0
    %471 = vdwg.mxu0
    %v472 = vld [vmem:[#allocation2] sm:$0x30]
    %v474 = vrot.slane %v466, 4
    %v476 = vadd.f32 %v472, %v474
    %v477 = vld [vmem:[#allocation2 + $0x18] sm:$0xc]
    %v479 = vrot.slane %v468, 6
    %v481 = vadd.f32 %v477, %v479
    %v482 = vtanh.pop %v476
    %v483 = vxor.u32 %v476, 2147483648
    %v484 = vmul.f32 %v483, 1.442695
    %v485 = vpow.pop %v484
    %v486 = vadd.f32 %v485, 1.0
    %v487 = vrcp.pop %v486
    %v488 = vmul.f32 1.0, %v487
    %v489 = vsel %vm38, %v482, %v488
    %v490 = vtanh.pop %v481
    %v491 = vxor.u32 %v481, 2147483648
    %v492 = vmul.f32 %v491, 1.442695
    %v493 = vpow.pop %v492
    %v494 = vadd.f32 %v493, 1.0
    %v495 = vrcp.pop %v494
    %v496 = vmul.f32 1.0, %v495
    %v497 = vsel %vm38, %v490, %v496
    %v499 = vrot.slane %v381, 6
    %v501 = vmul.f32 %v489, %v499
    %503 = vrot.lane.b32.xlu0 %v489, 64
    %v504 = vpop.permute.xlu0 %503
    %v506 = vmul.f32 %v489, %v504
    %508 = vrot.lane.b32.xlu0 %v506, 32
    %v509 = vpop.permute.xlu0 %508
    %v511 = vadd.f32 %v501, %v509
    %v512 = vtanh.pop %v511
    %514 = vrot.lane.b32.xlu0 %v512, 64
    %v515 = vpop.permute.xlu0 %514
    %v517 = vmul.f32 %v489, %v515
    %v519 = vrot.slane %v401, 2
    %v521 = vmul.f32 %v497, %v519
    %523 = vrot.lane.b32.xlu0 %v497, 64
    %v524 = vpop.permute.xlu0 %523
    %v526 = vmul.f32 %v497, %v524
    %528 = vrot.lane.b32.xlu0 %v526, 32
    %v529 = vpop.permute.xlu0 %528
    %v531 = vadd.f32 %v521, %v529
    %v532 = vtanh.pop %v531
    %534 = vrot.lane.b32.xlu0 %v532, 64
    %v535 = vpop.permute.xlu0 %534
    %v537 = vmul.f32 %v497, %v535
    %539 = vrot.lane.b32.xlu0 %v517, 32
    %v540 = vpop.permute.xlu0 %539
    %vm542 = vcmask 259076
    %543 = vst.msk [vmem:[#allocation3] sm:$0x30] %vm542, %v540
    %545 = vrot.lane.b32.xlu0 %v537, 64
    %v546 = vpop.permute.xlu0 %545
    %vm548 = vcmask 519426
    %549 = vst.msk [vmem:[#allocation3 + $0x8] sm:$0xc] %vm548, %v546
    %v550 = vrot.slane %v537, 6
    %551 = vrot.lane.b32.xlu0 %v550, 64
    %v552 = vpop.permute.xlu0 %551
    %v554 = vsel %vm78, %v540, %v552
    %v555 = vpack.c.bf16 %v554, %v554
    %v557 = vrot.slane %v555, 2
    %v559 = vsel %vm178, %v557, 0
    %561 = vmatprep.subr.bf16.mxu0 %v163
    %562 = vmatpush1.bf16.msra.mxu0 %v162
    %563 = vmatprep.subr.bf16.mxu0 %v165
    %564 = vmatpush1.bf16.msra.mxu0 %v164
    %565 = vmatprep.subr.bf16.mxu0 %v167
    %566 = vmatpush1.bf16.msra.mxu0 %v166
    %567 = vmatprep.subr.bf16.mxu0 %v169
    %568 = vmatpush1.bf16.msra.mxu0 %v168
    %569 = vmatprep.subr.bf16.mxu0 0
    %570 = vmatpush1.bf16.msra.mxu0 0
    %571 = vmatprep.subr.bf16.mxu0 0
    %572 = vmatpush1.bf16.msra.mxu0 0
    %573 = vmatprep.subr.bf16.mxu0 0
    %574 = vmatpush1.bf16.msra.mxu0 0
    %575 = vmatprep.subr.bf16.mxu0 0
    %576 = vmatpush1.bf16.msra.mxu0 0
    %577 = vmatprep.subr.bf16.mxu0 0
    %578 = vmatpush1.bf16.msra.mxu0 0
    %579 = vmatprep.subr.bf16.mxu0 0
    %580 = vmatpush1.bf16.msra.mxu0 0
    %581 = vmatprep.subr.bf16.mxu0 0
    %582 = vmatpush1.bf16.msra.mxu0 0
    %583 = vmatprep.subr.bf16.mxu0 0
    %584 = vmatpush1.bf16.msra.mxu0 0
    %585 = vmatprep.subr.bf16.mxu0 0
    %586 = vmatpush1.bf16.msra.mxu0 0
    %587 = vmatprep.subr.bf16.mxu0 0
    %588 = vmatpush1.bf16.msra.mxu0 0
    %589 = vmatprep.subr.bf16.mxu0 0
    %590 = vmatpush1.bf16.msra.mxu0 0
    %591 = vmatprep.subr.bf16.mxu0 0
    %592 = vmatpush1.bf16.msra.mxu0 0
    %593 = vmatprep.mubr.bf16.mxu0 0
    %594 = vmatmul.mubr.bf16.gmra.mrb[0].mxu0 %v559
    %v595 = vpop.f32.mrb[0].mxu0
    %v596 = vadd.f32 0.0, %v595
    %v597 = vpop.f32.mrb[0].mxu0
    %v598 = vadd.f32 0.0, %v597
    %v599 = vpop.f32.mrb[0].mxu0
    %v600 = vpop.f32.mrb[0].mxu0
    %601 = vdwg.mxu0
    %v602 = vld [vmem:[#allocation2] sm:$0xc0]
    %v604 = vrot.slane %v596, 2
    %v606 = vadd.f32 %v602, %v604
    %v607 = vld [vmem:[#allocation2 + $0x18] sm:$0x3]
    %v608 = vadd.f32 %v607, %v598
    %v609 = vtanh.pop %v606
    %v610 = vxor.u32 %v606, 2147483648
    %v611 = vmul.f32 %v610, 1.442695
    %v612 = vpow.pop %v611
    %v613 = vadd.f32 %v612, 1.0
    %v614 = vrcp.pop %v613
    %v615 = vmul.f32 1.0, %v614
    %v616 = vsel %vm38, %v609, %v615
    %v617 = vtanh.pop %v608
    %v618 = vxor.u32 %v608, 2147483648
    %v619 = vmul.f32 %v618, 1.442695
    %v620 = vpow.pop %v619
    %v621 = vadd.f32 %v620, 1.0
    %v622 = vrcp.pop %v621
    %v623 = vmul.f32 1.0, %v622
    %v624 = vsel %vm38, %v617, %v623
    %v626 = vrot.slane %v511, 6
    %v628 = vmul.f32 %v616, %v626
    %630 = vrot.lane.b32.xlu0 %v616, 64
    %v631 = vpop.permute.xlu0 %630
    %v633 = vmul.f32 %v616, %v631
    %635 = vrot.lane.b32.xlu0 %v633, 32
    %v636 = vpop.permute.xlu0 %635
    %v638 = vadd.f32 %v628, %v636
    %v639 = vtanh.pop %v638
    %641 = vrot.lane.b32.xlu0 %v639, 64
    %v642 = vpop.permute.xlu0 %641
    %v644 = vmul.f32 %v616, %v642
    %v646 = vrot.slane %v531, 2
    %v648 = vmul.f32 %v624, %v646
    %650 = vrot.lane.b32.xlu0 %v624, 64
    %v651 = vpop.permute.xlu0 %650
    %v653 = vmul.f32 %v624, %v651
    %655 = vrot.lane.b32.xlu0 %v653, 32
    %v656 = vpop.permute.xlu0 %655
    %v658 = vadd.f32 %v648, %v656
    %v659 = vtanh.pop %v658
    %661 = vrot.lane.b32.xlu0 %v659, 64
    %v662 = vpop.permute.xlu0 %661
    %v664 = vmul.f32 %v624, %v662
    %666 = vrot.lane.b32.xlu0 %v644, 32
    %v667 = vpop.permute.xlu0 %666
    %vm669 = vcmask 261126
    %670 = vst.msk [vmem:[#allocation3] sm:$0xc0] %vm669, %v667
    %672 = vrot.lane.b32.xlu0 %v664, 64
    %v673 = vpop.permute.xlu0 %672
    %vm675 = vcmask 517376
    %676 = vst.msk [vmem:[#allocation3 + $0x8] sm:$0x3] %vm675, %v673
    %v677 = vrot.slane %v664, 2
    %678 = vrot.lane.b32.xlu0 %v677, 64
    %v679 = vpop.permute.xlu0 %678
    %v681 = vsel %vm78, %v667, %v679
    %v682 = vpack.c.bf16 %v681, %v681
    %v684 = vrot.slane %v682, 3
    %v686 = vsel %vm178, %v684, 0
    %688 = vmatprep.subr.bf16.mxu0 %v163
    %689 = vmatpush1.bf16.msra.mxu0 %v162
    %690 = vmatprep.subr.bf16.mxu0 %v165
    %691 = vmatpush1.bf16.msra.mxu0 %v164
    %692 = vmatprep.subr.bf16.mxu0 %v167
    %693 = vmatpush1.bf16.msra.mxu0 %v166
    %694 = vmatprep.subr.bf16.mxu0 %v169
    %695 = vmatpush1.bf16.msra.mxu0 %v168
    %696 = vmatprep.subr.bf16.mxu0 0
    %697 = vmatpush1.bf16.msra.mxu0 0
    %698 = vmatprep.subr.bf16.mxu0 0
    %699 = vmatpush1.bf16.msra.mxu0 0
    %700 = vmatprep.subr.bf16.mxu0 0
    %701 = vmatpush1.bf16.msra.mxu0 0
    %702 = vmatprep.subr.bf16.mxu0 0
    %703 = vmatpush1.bf16.msra.mxu0 0
    %704 = vmatprep.subr.bf16.mxu0 0
    %705 = vmatpush1.bf16.msra.mxu0 0
    %706 = vmatprep.subr.bf16.mxu0 0
    %707 = vmatpush1.bf16.msra.mxu0 0
    %708 = vmatprep.subr.bf16.mxu0 0
    %709 = vmatpush1.bf16.msra.mxu0 0
    %710 = vmatprep.subr.bf16.mxu0 0
    %711 = vmatpush1.bf16.msra.mxu0 0
    %712 = vmatprep.subr.bf16.mxu0 0
    %713 = vmatpush1.bf16.msra.mxu0 0
    %714 = vmatprep.subr.bf16.mxu0 0
    %715 = vmatpush1.bf16.msra.mxu0 0
    %716 = vmatprep.subr.bf16.mxu0 0
    %717 = vmatpush1.bf16.msra.mxu0 0
    %718 = vmatprep.subr.bf16.mxu0 0
    %719 = vmatpush1.bf16.msra.mxu0 0
    %720 = vmatprep.mubr.bf16.mxu0 0
    %721 = vmatmul.mubr.bf16.gmra.mrb[0].mxu0 %v686
    %v722 = vpop.f32.mrb[0].mxu0
    %v723 = vadd.f32 0.0, %v722
    %v724 = vpop.f32.mrb[0].mxu0
    %v725 = vadd.f32 0.0, %v724
    %v726 = vpop.f32.mrb[0].mxu0
    %v727 = vpop.f32.mrb[0].mxu0
    %728 = vdwg.mxu0
    %v729 = vld [vmem:[#allocation2 + $0x10] sm:$0x3]
    %v730 = vadd.f32 %v729, %v723
    %v731 = vld [vmem:[#allocation2 + $0x8] sm:$0xc0]
    %v733 = vrot.slane %v725, 2
    %v735 = vadd.f32 %v731, %v733
    %v736 = vtanh.pop %v730
    %v737 = vxor.u32 %v730, 2147483648
    %v738 = vmul.f32 %v737, 1.442695
    %v739 = vpow.pop %v738
    %v740 = vadd.f32 %v739, 1.0
    %v741 = vrcp.pop %v740
    %v742 = vmul.f32 1.0, %v741
    %v743 = vsel %vm38, %v736, %v742
    %v744 = vtanh.pop %v735
    %v745 = vxor.u32 %v735, 2147483648
    %v746 = vmul.f32 %v745, 1.442695
    %v747 = vpow.pop %v746
    %v748 = vadd.f32 %v747, 1.0
    %v749 = vrcp.pop %v748
    %v750 = vmul.f32 1.0, %v749
    %v751 = vsel %vm38, %v744, %v750
    %v753 = vrot.slane %v638, 6
    %v755 = vmul.f32 %v743, %v753
    %757 = vrot.lane.b32.xlu0 %v743, 64
    %v758 = vpop.permute.xlu0 %757
    %v760 = vmul.f32 %v743, %v758
    %762 = vrot.lane.b32.xlu0 %v760, 32
    %v763 = vpop.permute.xlu0 %762
    %v765 = vadd.f32 %v755, %v763
    %v766 = vtanh.pop %v765
    %768 = vrot.lane.b32.xlu0 %v766, 64
    %v769 = vpop.permute.xlu0 %768
    %v771 = vmul.f32 %v743, %v769
    %v773 = vrot.slane %v658, 2
    %v775 = vmul.f32 %v751, %v773
    %777 = vrot.lane.b32.xlu0 %v751, 64
    %v778 = vpop.permute.xlu0 %777
    %v780 = vmul.f32 %v751, %v778
    %782 = vrot.lane.b32.xlu0 %v780, 32
    %v783 = vpop.permute.xlu0 %782
    %v785 = vadd.f32 %v775, %v783
    %v786 = vtanh.pop %v785
    %788 = vrot.lane.b32.xlu0 %v786, 64
    %v789 = vpop.permute.xlu0 %788
    %v791 = vmul.f32 %v751, %v789
    %793 = vrot.lane.b32.xlu0 %v771, 32
    %v794 = vpop.permute.xlu0 %793
    %796 = vst.msk [vmem:[#allocation3 + $0x8] sm:$0x3] %vm284, %v794
    %798 = vrot.lane.b32.xlu0 %v791, 64
    %v799 = vpop.permute.xlu0 %798
    %801 = vst.msk [vmem:[#allocation3] sm:$0xc0] %vm290, %v799
    %v802 = vrot.slane %v791, 6
    %803 = vrot.lane.b32.xlu0 %v802, 64
    %v804 = vpop.permute.xlu0 %803
    %v806 = vsel %vm78, %v794, %v804
    %v807 = vpack.c.bf16 %v806, %v806
    %v809 = vsel %vm178, %v807, 0
    %811 = vmatprep.subr.bf16.mxu0 %v163
    %812 = vmatpush1.bf16.msra.mxu0 %v162
    %813 = vmatprep.subr.bf16.mxu0 %v165
    %814 = vmatpush1.bf16.msra.mxu0 %v164
    %815 = vmatprep.subr.bf16.mxu0 %v167
    %816 = vmatpush1.bf16.msra.mxu0 %v166
    %817 = vmatprep.subr.bf16.mxu0 %v169
    %818 = vmatpush1.bf16.msra.mxu0 %v168
    %819 = vmatprep.subr.bf16.mxu0 0
    %820 = vmatpush1.bf16.msra.mxu0 0
    %821 = vmatprep.subr.bf16.mxu0 0
    %822 = vmatpush1.bf16.msra.mxu0 0
    %823 = vmatprep.subr.bf16.mxu0 0
    %824 = vmatpush1.bf16.msra.mxu0 0
    %825 = vmatprep.subr.bf16.mxu0 0
    %826 = vmatpush1.bf16.msra.mxu0 0
    %827 = vmatprep.subr.bf16.mxu0 0
    %828 = vmatpush1.bf16.msra.mxu0 0
    %829 = vmatprep.subr.bf16.mxu0 0
    %830 = vmatpush1.bf16.msra.mxu0 0
    %831 = vmatprep.subr.bf16.mxu0 0
    %832 = vmatpush1.bf16.msra.mxu0 0
    %833 = vmatprep.subr.bf16.mxu0 0
    %834 = vmatpush1.bf16.msra.mxu0 0
    %835 = vmatprep.subr.bf16.mxu0 0
    %836 = vmatpush1.bf16.msra.mxu0 0
    %837 = vmatprep.subr.bf16.mxu0 0
    %838 = vmatpush1.bf16.msra.mxu0 0
    %839 = vmatprep.subr.bf16.mxu0 0
    %840 = vmatpush1.bf16.msra.mxu0 0
    %841 = vmatprep.subr.bf16.mxu0 0
    %842 = vmatpush1.bf16.msra.mxu0 0
    %843 = vmatprep.mubr.bf16.mxu0 0
    %844 = vmatmul.mubr.bf16.gmra.mrb[0].mxu0 %v809
    %v845 = vpop.f32.mrb[0].mxu0
    %v846 = vadd.f32 0.0, %v845
    %v847 = vpop.f32.mrb[0].mxu0
    %v848 = vadd.f32 0.0, %v847
    %v849 = vpop.f32.mrb[0].mxu0
    %v850 = vpop.f32.mrb[0].mxu0
    %851 = vdwg.mxu0
    %v852 = vld [vmem:[#allocation2 + $0x10] sm:$0xc]
    %v854 = vrot.slane %v846, 6
    %v856 = vadd.f32 %v852, %v854
    %v857 = vld [vmem:[#allocation2 + $0x8] sm:$0x30]
    %v859 = vrot.slane %v848, 4
    %v861 = vadd.f32 %v857, %v859
    %v862 = vtanh.pop %v856
    %v863 = vxor.u32 %v856, 2147483648
    %v864 = vmul.f32 %v863, 1.442695
    %v865 = vpow.pop %v864
    %v866 = vadd.f32 %v865, 1.0
    %v867 = vrcp.pop %v866
    %v868 = vmul.f32 1.0, %v867
    %v869 = vsel %vm38, %v862, %v868
    %v870 = vtanh.pop %v861
    %v871 = vxor.u32 %v861, 2147483648
    %v872 = vmul.f32 %v871, 1.442695
    %v873 = vpow.pop %v872
    %v874 = vadd.f32 %v873, 1.0
    %v875 = vrcp.pop %v874
    %v876 = vmul.f32 1.0, %v875
    %v877 = vsel %vm38, %v870, %v876
    %v879 = vrot.slane %v765, 6
    %v881 = vmul.f32 %v869, %v879
    %883 = vrot.lane.b32.xlu0 %v869, 64
    %v884 = vpop.permute.xlu0 %883
    %v886 = vmul.f32 %v869, %v884
    %888 = vrot.lane.b32.xlu0 %v886, 32
    %v889 = vpop.permute.xlu0 %888
    %v891 = vadd.f32 %v881, %v889
    %v892 = vtanh.pop %v891
    %894 = vrot.lane.b32.xlu0 %v892, 64
    %v895 = vpop.permute.xlu0 %894
    %v897 = vmul.f32 %v869, %v895
    %v899 = vrot.slane %v785, 2
    %v901 = vmul.f32 %v877, %v899
    %903 = vrot.lane.b32.xlu0 %v877, 64
    %v904 = vpop.permute.xlu0 %903
    %v906 = vmul.f32 %v877, %v904
    %908 = vrot.lane.b32.xlu0 %v906, 32
    %v909 = vpop.permute.xlu0 %908
    %v911 = vadd.f32 %v901, %v909
    %v912 = vtanh.pop %v911
    %914 = vrot.lane.b32.xlu0 %v912, 64
    %v915 = vpop.permute.xlu0 %914
    %v917 = vmul.f32 %v877, %v915
    %919 = vrot.lane.b32.xlu0 %v897, 32
    %v920 = vpop.permute.xlu0 %919
    %922 = vst.msk [vmem:[#allocation3 + $0x8] sm:$0xc] %vm412, %v920
    %924 = vrot.lane.b32.xlu0 %v917, 64
    %v925 = vpop.permute.xlu0 %924
    %927 = vst.msk [vmem:[#allocation3] sm:$0x30] %vm418, %v925
    %v928 = vrot.slane %v917, 2
    %929 = vrot.lane.b32.xlu0 %v928, 64
    %v930 = vpop.permute.xlu0 %929
    %v932 = vsel %vm78, %v920, %v930
    %v933 = vpack.c.bf16 %v932, %v932
    %v935 = vrot.slane %v933, 1
    %v937 = vsel %vm178, %v935, 0
    %939 = vmatprep.subr.bf16.mxu0 %v163
    %940 = vmatpush1.bf16.msra.mxu0 %v162
    %941 = vmatprep.subr.bf16.mxu0 %v165
    %942 = vmatpush1.bf16.msra.mxu0 %v164
    %943 = vmatprep.subr.bf16.mxu0 %v167
    %944 = vmatpush1.bf16.msra.mxu0 %v166
    %945 = vmatprep.subr.bf16.mxu0 %v169
    %946 = vmatpush1.bf16.msra.mxu0 %v168
    %947 = vmatprep.subr.bf16.mxu0 0
    %948 = vmatpush1.bf16.msra.mxu0 0
    %949 = vmatprep.subr.bf16.mxu0 0
    %950 = vmatpush1.bf16.msra.mxu0 0
    %951 = vmatprep.subr.bf16.mxu0 0
    %952 = vmatpush1.bf16.msra.mxu0 0
    %953 = vmatprep.subr.bf16.mxu0 0
    %954 = vmatpush1.bf16.msra.mxu0 0
    %955 = vmatprep.subr.bf16.mxu0 0
    %956 = vmatpush1.bf16.msra.mxu0 0
    %957 = vmatprep.subr.bf16.mxu0 0
    %958 = vmatpush1.bf16.msra.mxu0 0
    %959 = vmatprep.subr.bf16.mxu0 0
    %960 = vmatpush1.bf16.msra.mxu0 0
    %961 = vmatprep.subr.bf16.mxu0 0
    %962 = vmatpush1.bf16.msra.mxu0 0
    %963 = vmatprep.subr.bf16.mxu0 0
    %964 = vmatpush1.bf16.msra.mxu0 0
    %965 = vmatprep.subr.bf16.mxu0 0
    %966 = vmatpush1.bf16.msra.mxu0 0
    %967 = vmatprep.subr.bf16.mxu0 0
    %968 = vmatpush1.bf16.msra.mxu0 0
    %969 = vmatprep.subr.bf16.mxu0 0
    %970 = vmatpush1.bf16.msra.mxu0 0
    %971 = vmatprep.mubr.bf16.mxu0 0
    %972 = vmatmul.mubr.bf16.gmra.mrb[0].mxu0 %v937
    %v973 = vpop.f32.mrb[0].mxu0
    %v974 = vadd.f32 0.0, %v973
    %v975 = vpop.f32.mrb[0].mxu0
    %v976 = vadd.f32 0.0, %v975
    %v977 = vpop.f32.mrb[0].mxu0
    %v978 = vpop.f32.mrb[0].mxu0
    %979 = vdwg.mxu0
    %v980 = vld [vmem:[#allocation2 + $0x10] sm:$0x30]
    %v982 = vrot.slane %v974, 4
    %v984 = vadd.f32 %v980, %v982
    %v985 = vld [vmem:[#allocation2 + $0x8] sm:$0xc]
    %v987 = vrot.slane %v976, 6
    %v989 = vadd.f32 %v985, %v987
    %v990 = vtanh.pop %v984
    %v991 = vxor.u32 %v984, 2147483648
    %v992 = vmul.f32 %v991, 1.442695
    %v993 = vpow.pop %v992
    %v994 = vadd.f32 %v993, 1.0
    %v995 = vrcp.pop %v994
    %v996 = vmul.f32 1.0, %v995
    %v997 = vsel %vm38, %v990, %v996
    %v998 = vtanh.pop %v989
    %v999 = vxor.u32 %v989, 2147483648
    %v1000 = vmul.f32 %v999, 1.442695
    %v1001 = vpow.pop %v1000
    %v1002 = vadd.f32 %v1001, 1.0
    %v1003 = vrcp.pop %v1002
    %v1004 = vmul.f32 1.0, %v1003
    %v1005 = vsel %vm38, %v998, %v1004
    %v1007 = vrot.slane %v891, 6
    %v1009 = vmul.f32 %v997, %v1007
    %1011 = vrot.lane.b32.xlu0 %v997, 64
    %v1012 = vpop.permute.xlu0 %1011
    %v1014 = vmul.f32 %v997, %v1012
    %1016 = vrot.lane.b32.xlu0 %v1014, 32
    %v1017 = vpop.permute.xlu0 %1016
    %v1019 = vadd.f32 %v1009, %v1017
    %v1020 = vtanh.pop %v1019
    %1022 = vrot.lane.b32.xlu0 %v1020, 64
    %v1023 = vpop.permute.xlu0 %1022
    %v1025 = vmul.f32 %v997, %v1023
    %v1027 = vrot.slane %v911, 2
    %v1029 = vmul.f32 %v1005, %v1027
    %1031 = vrot.lane.b32.xlu0 %v1005, 64
    %v1032 = vpop.permute.xlu0 %1031
    %v1034 = vmul.f32 %v1005, %v1032
    %1036 = vrot.lane.b32.xlu0 %v1034, 32
    %v1037 = vpop.permute.xlu0 %1036
    %v1039 = vadd.f32 %v1029, %v1037
    %v1040 = vtanh.pop %v1039
    %1042 = vrot.lane.b32.xlu0 %v1040, 64
    %v1043 = vpop.permute.xlu0 %1042
    %v1045 = vmul.f32 %v1005, %v1043
    %1047 = vrot.lane.b32.xlu0 %v1025, 32
    %v1048 = vpop.permute.xlu0 %1047
    %1050 = vst.msk [vmem:[#allocation3 + $0x8] sm:$0x30] %vm542, %v1048
    %1052 = vrot.lane.b32.xlu0 %v1045, 64
    %v1053 = vpop.permute.xlu0 %1052
    %1055 = vst.msk [vmem:[#allocation3] sm:$0xc] %vm548, %v1053
    %v1056 = vrot.slane %v1045, 6
    %1057 = vrot.lane.b32.xlu0 %v1056, 64
    %v1058 = vpop.permute.xlu0 %1057
    %v1060 = vsel %vm78, %v1048, %v1058
    %v1061 = vpack.c.bf16 %v1060, %v1060
    %v1063 = vrot.slane %v1061, 2
    %v1065 = vsel %vm178, %v1063, 0
    %1067 = vmatprep.subr.bf16.mxu0 %v163
    %1068 = vmatpush1.bf16.msra.mxu0 %v162
    %1069 = vmatprep.subr.bf16.mxu0 %v165
    %1070 = vmatpush1.bf16.msra.mxu0 %v164
    %1071 = vmatprep.subr.bf16.mxu0 %v167
    %1072 = vmatpush1.bf16.msra.mxu0 %v166
    %1073 = vmatprep.subr.bf16.mxu0 %v169
    %1074 = vmatpush1.bf16.msra.mxu0 %v168
    %1075 = vmatprep.subr.bf16.mxu0 0
    %1076 = vmatpush1.bf16.msra.mxu0 0
    %1077 = vmatprep.subr.bf16.mxu0 0
    %1078 = vmatpush1.bf16.msra.mxu0 0
    %1079 = vmatprep.subr.bf16.mxu0 0
    %1080 = vmatpush1.bf16.msra.mxu0 0
    %1081 = vmatprep.subr.bf16.mxu0 0
    %1082 = vmatpush1.bf16.msra.mxu0 0
    %1083 = vmatprep.subr.bf16.mxu0 0
    %1084 = vmatpush1.bf16.msra.mxu0 0
    %1085 = vmatprep.subr.bf16.mxu0 0
    %1086 = vmatpush1.bf16.msra.mxu0 0
    %1087 = vmatprep.subr.bf16.mxu0 0
    %1088 = vmatpush1.bf16.msra.mxu0 0
    %1089 = vmatprep.subr.bf16.mxu0 0
    %1090 = vmatpush1.bf16.msra.mxu0 0
    %1091 = vmatprep.subr.bf16.mxu0 0
    %1092 = vmatpush1.bf16.msra.mxu0 0
    %1093 = vmatprep.subr.bf16.mxu0 0
    %1094 = vmatpush1.bf16.msra.mxu0 0
    %1095 = vmatprep.subr.bf16.mxu0 0
    %1096 = vmatpush1.bf16.msra.mxu0 0
    %1097 = vmatprep.subr.bf16.mxu0 0
    %1098 = vmatpush1.bf16.msra.mxu0 0
    %1099 = vmatprep.mubr.bf16.mxu0 0
    %1100 = vmatmul.mubr.bf16.gmra.mrb[0].mxu0 %v1065
    %v1101 = vpop.f32.mrb[0].mxu0
    %v1102 = vadd.f32 0.0, %v1101
    %v1103 = vpop.f32.mrb[0].mxu0
    %v1104 = vadd.f32 0.0, %v1103
    %v1105 = vpop.f32.mrb[0].mxu0
    %v1106 = vpop.f32.mrb[0].mxu0
    %1107 = vdwg.mxu0
    %v1108 = vld [vmem:[#allocation2 + $0x10] sm:$0xc0]
    %v1110 = vrot.slane %v1102, 2
    %v1112 = vadd.f32 %v1108, %v1110
    %v1113 = vld [vmem:[#allocation2 + $0x8] sm:$0x3]
    %v1114 = vadd.f32 %v1113, %v1104
    %v1115 = vtanh.pop %v1112
    %v1116 = vxor.u32 %v1112, 2147483648
    %v1117 = vmul.f32 %v1116, 1.442695
    %v1118 = vpow.pop %v1117
    %v1119 = vadd.f32 %v1118, 1.0
    %v1120 = vrcp.pop %v1119
    %v1121 = vmul.f32 1.0, %v1120
    %v1122 = vsel %vm38, %v1115, %v1121
    %v1123 = vtanh.pop %v1114
    %v1124 = vxor.u32 %v1114, 2147483648
    %v1125 = vmul.f32 %v1124, 1.442695
    %v1126 = vpow.pop %v1125
    %v1127 = vadd.f32 %v1126, 1.0
    %v1128 = vrcp.pop %v1127
    %v1129 = vmul.f32 1.0, %v1128
    %v1130 = vsel %vm38, %v1123, %v1129
    %v1132 = vrot.slane %v1019, 6
    %v1134 = vmul.f32 %v1122, %v1132
    %1136 = vrot.lane.b32.xlu0 %v1122, 64
    %v1137 = vpop.permute.xlu0 %1136
    %v1139 = vmul.f32 %v1122, %v1137
    %1141 = vrot.lane.b32.xlu0 %v1139, 32
    %v1142 = vpop.permute.xlu0 %1141
    %v1144 = vadd.f32 %v1134, %v1142
    %v1145 = vtanh.pop %v1144
    %1147 = vrot.lane.b32.xlu0 %v1145, 64
    %v1148 = vpop.permute.xlu0 %1147
    %v1150 = vmul.f32 %v1122, %v1148
    %v1152 = vrot.slane %v1039, 2
    %v1154 = vmul.f32 %v1130, %v1152
    %1156 = vrot.lane.b32.xlu0 %v1130, 64
    %v1157 = vpop.permute.xlu0 %1156
    %v1159 = vmul.f32 %v1130, %v1157
    %1161 = vrot.lane.b32.xlu0 %v1159, 32
    %v1162 = vpop.permute.xlu0 %1161
    %v1164 = vadd.f32 %v1154, %v1162
    %v1165 = vtanh.pop %v1164
    %1167 = vrot.lane.b32.xlu0 %v1165, 64
    %v1168 = vpop.permute.xlu0 %1167
    %v1170 = vmul.f32 %v1130, %v1168
    %1172 = vrot.lane.b32.xlu0 %v1150, 32
    %v1173 = vpop.permute.xlu0 %1172
    %1175 = vst.msk [vmem:[#allocation3 + $0x8] sm:$0xc0] %vm669, %v1173
    %1177 = vrot.lane.b32.xlu0 %v1170, 64
    %v1178 = vpop.permute.xlu0 %1177
    %1180 = vst.msk [vmem:[#allocation3] sm:$0x3] %vm675, %v1178
    %v1181 = vld [vmem:[#allocation3] sm:$0xff]
    %v1182 = vld [vmem:[#allocation3 + $0x8] sm:$0xff]
    %v1183 = vpack.c.bf16 %v1182, %v1181
    %v1184 = vld [vmem:[%s4] sm:$0xff]
    %v1185 = vld [vmem:[%s4 + $0x8] sm:$0xff]
    %v1186 = vld [vmem:[%s4 + $0x10] sm:$0xff]
    %v1187 = vld [vmem:[%s4 + $0x18] sm:$0xff]
    %v1188 = vld [vmem:[%s4 + $0x20] sm:$0xff]
    %v1189 = vld [vmem:[%s4 + $0x28] sm:$0xff]
    %v1190 = vld [vmem:[%s4 + $0x30] sm:$0xff]
    %v1191 = vld [vmem:[%s4 + $0x38] sm:$0xff]
    %v1192 = vld [vmem:[%s6] sm:$0x3]
    %v1194 = vlaneseq
    %v1195 = vshrl.u32 %v1194, 7
    %v1196 = vsub.s32 0, %v1195
    %v1197 = vrot.slane %v1192, %v1196
    %v1198 = vlaneseq
    %v1199 = vshrl.u32 %v1198, 7
    %v1200 = vsub.s32 1, %v1199
    %v1201 = vrot.slane %v1192, %v1200
    %v1212 = vunpack.c.l.b16 %v1184
    %v1213 = vunpack.c.h.b16 %v1184
    %v1214 = vunpack.c.l.b16 %v1185
    %v1215 = vunpack.c.h.b16 %v1185
    %v1216 = vunpack.c.l.b16 %v1186
    %v1217 = vunpack.c.h.b16 %v1186
    %v1218 = vunpack.c.l.b16 %v1187
    %v1219 = vunpack.c.h.b16 %v1187
    %v1220 = vunpack.c.l.b16 %v1188
    %v1221 = vunpack.c.h.b16 %v1188
    %v1222 = vunpack.c.l.b16 %v1189
    %v1223 = vunpack.c.h.b16 %v1189
    %v1224 = vunpack.c.l.b16 %v1190
    %v1225 = vunpack.c.h.b16 %v1190
    %v1226 = vunpack.c.l.b16 %v1191
    %v1227 = vunpack.c.h.b16 %v1191
    %v1228 = vpack.c.b16 %v1214, %v1212
    %v1229 = vpack.c.b16 %v1215, %v1213
    %v1230 = vpack.c.b16 %v1218, %v1216
    %v1231 = vpack.c.b16 %v1219, %v1217
    %v1232 = vpack.c.b16 %v1222, %v1220
    %v1233 = vpack.c.b16 %v1223, %v1221
    %v1234 = vpack.c.b16 %v1226, %v1224
    %v1235 = vpack.c.b16 %v1227, %v1225
    %v1245 = vsel %vm178, %v1183, 0
    %1247 = vmatprep.subr.bf16.mxu0 %v1229
    %1248 = vmatpush1.bf16.msra.mxu0 %v1228
    %1249 = vmatprep.subr.bf16.mxu0 %v1231
    %1250 = vmatpush1.bf16.msra.mxu0 %v1230
    %1251 = vmatprep.subr.bf16.mxu0 %v1233
    %1252 = vmatpush1.bf16.msra.mxu0 %v1232
    %1253 = vmatprep.subr.bf16.mxu0 %v1235
    %1254 = vmatpush1.bf16.msra.mxu0 %v1234
    %1255 = vmatprep.subr.bf16.mxu0 0
    %1256 = vmatpush1.bf16.msra.mxu0 0
    %1257 = vmatprep.subr.bf16.mxu0 0
    %1258 = vmatpush1.bf16.msra.mxu0 0
    %1259 = vmatprep.subr.bf16.mxu0 0
    %1260 = vmatpush1.bf16.msra.mxu0 0
    %1261 = vmatprep.subr.bf16.mxu0 0
    %1262 = vmatpush1.bf16.msra.mxu0 0
    %1263 = vmatprep.subr.bf16.mxu0 0
    %1264 = vmatpush1.bf16.msra.mxu0 0
    %1265 = vmatprep.subr.bf16.mxu0 0
    %1266 = vmatpush1.bf16.msra.mxu0 0
    %1267 = vmatprep.subr.bf16.mxu0 0
    %1268 = vmatpush1.bf16.msra.mxu0 0
    %1269 = vmatprep.subr.bf16.mxu0 0
    %1270 = vmatpush1.bf16.msra.mxu0 0
    %1271 = vmatprep.subr.bf16.mxu0 0
    %1272 = vmatpush1.bf16.msra.mxu0 0
    %1273 = vmatprep.subr.bf16.mxu0 0
    %1274 = vmatpush1.bf16.msra.mxu0 0
    %1275 = vmatprep.subr.bf16.mxu0 0
    %1276 = vmatpush1.bf16.msra.mxu0 0
    %1277 = vmatprep.subr.bf16.mxu0 0
    %1278 = vmatpush1.bf16.msra.mxu0 0
    %1279 = vmatprep.mubr.bf16.mxu0 0
    %1280 = vmatmul.mubr.bf16.gmra.mrb[0].mxu0 %v1245
    %v1281 = vpop.f32.mrb[0].mxu0
    %v1282 = vadd.f32 %v1197, %v1281
    %v1283 = vpop.f32.mrb[0].mxu0
    %v1284 = vadd.f32 %v1201, %v1283
    %v1285 = vpop.f32.mrb[0].mxu0
    %v1286 = vadd.f32 %v1197, %v1285
    %v1287 = vpop.f32.mrb[0].mxu0
    %v1288 = vadd.f32 %v1201, %v1287
    %1289 = vdwg.mxu0
    %1290 = vst [vmem:[#allocation2] sm:$0xff] %v1282
    %1291 = vst [vmem:[#allocation2 + $0x8] sm:$0xff] %v1284
    %1292 = vst [vmem:[#allocation2 + $0x10] sm:$0xff] %v1286
    %1293 = vst [vmem:[#allocation2 + $0x18] sm:$0xff] %v1288
    %v1294 = vld [vmem:[%s5] sm:$0xff]
    %v1295 = vld [vmem:[%s5 + $0x8] sm:$0xff]
    %v1296 = vld [vmem:[%s5 + $0x10] sm:$0xff]
    %v1297 = vld [vmem:[%s5 + $0x18] sm:$0xff]
    %v1298 = vld [vmem:[%s5 + $0x20] sm:$0xff]
    %v1299 = vld [vmem:[%s5 + $0x28] sm:$0xff]
    %v1300 = vld [vmem:[%s5 + $0x30] sm:$0xff]
    %v1301 = vld [vmem:[%s5 + $0x38] sm:$0xff]
    %v1310 = vunpack.c.l.b16 %v1294
    %v1311 = vunpack.c.h.b16 %v1294
    %v1312 = vunpack.c.l.b16 %v1295
    %v1313 = vunpack.c.h.b16 %v1295
    %v1314 = vunpack.c.l.b16 %v1296
    %v1315 = vunpack.c.h.b16 %v1296
    %v1316 = vunpack.c.l.b16 %v1297
    %v1317 = vunpack.c.h.b16 %v1297
    %v1318 = vunpack.c.l.b16 %v1298
    %v1319 = vunpack.c.h.b16 %v1298
    %v1320 = vunpack.c.l.b16 %v1299
    %v1321 = vunpack.c.h.b16 %v1299
    %v1322 = vunpack.c.l.b16 %v1300
    %v1323 = vunpack.c.h.b16 %v1300
    %v1324 = vunpack.c.l.b16 %v1301
    %v1325 = vunpack.c.h.b16 %v1301
    %v1326 = vpack.c.b16 %v1312, %v1310
    %v1327 = vpack.c.b16 %v1313, %v1311
    %v1328 = vpack.c.b16 %v1316, %v1314
    %v1329 = vpack.c.b16 %v1317, %v1315
    %v1330 = vpack.c.b16 %v1320, %v1318
    %v1331 = vpack.c.b16 %v1321, %v1319
    %v1332 = vpack.c.b16 %v1324, %v1322
    %v1333 = vpack.c.b16 %v1325, %v1323
    %1342 = vmatprep.subr.bf16.mxu0 %v1327
    %1343 = vmatpush1.bf16.msra.mxu0 %v1326
    %1344 = vmatprep.subr.bf16.mxu0 %v1329
    %1345 = vmatpush1.bf16.msra.mxu0 %v1328
    %1346 = vmatprep.subr.bf16.mxu0 %v1331
    %1347 = vmatpush1.bf16.msra.mxu0 %v1330
    %1348 = vmatprep.subr.bf16.mxu0 %v1333
    %1349 = vmatpush1.bf16.msra.mxu0 %v1332
    %1350 = vmatprep.subr.bf16.mxu0 0
    %1351 = vmatpush1.bf16.msra.mxu0 0
    %1352 = vmatprep.subr.bf16.mxu0 0
    %1353 = vmatpush1.bf16.msra.mxu0 0
    %1354 = vmatprep.subr.bf16.mxu0 0
    %1355 = vmatpush1.bf16.msra.mxu0 0
    %1356 = vmatprep.subr.bf16.mxu0 0
    %1357 = vmatpush1.bf16.msra.mxu0 0
    %1358 = vmatprep.subr.bf16.mxu0 0
    %1359 = vmatpush1.bf16.msra.mxu0 0
    %1360 = vmatprep.subr.bf16.mxu0 0
    %1361 = vmatpush1.bf16.msra.mxu0 0
    %1362 = vmatprep.subr.bf16.mxu0 0
    %1363 = vmatpush1.bf16.msra.mxu0 0
    %1364 = vmatprep.subr.bf16.mxu0 0
    %1365 = vmatpush1.bf16.msra.mxu0 0
    %1366 = vmatprep.subr.bf16.mxu0 0
    %1367 = vmatpush1.bf16.msra.mxu0 0
    %1368 = vmatprep.subr.bf16.mxu0 0
    %1369 = vmatpush1.bf16.msra.mxu0 0
    %1370 = vmatprep.subr.bf16.mxu0 0
    %1371 = vmatpush1.bf16.msra.mxu0 0
    %1372 = vmatprep.subr.bf16.mxu0 0
    %1373 = vmatpush1.bf16.msra.mxu0 0
    %1374 = vmatprep.mubr.bf16.mxu0 0
    %1375 = vmatmul.mubr.bf16.gmra.mrb[0].mxu0 %v180
    %v1376 = vpop.f32.mrb[0].mxu0
    %v1377 = vadd.f32 0.0, %v1376
    %v1378 = vpop.f32.mrb[0].mxu0
    %v1379 = vadd.f32 0.0, %v1378
    %v1380 = vpop.f32.mrb[0].mxu0
    %v1381 = vpop.f32.mrb[0].mxu0
    %1382 = vdwg.mxu0
    %v1383 = vld [vmem:[#allocation2] sm:$0x3]
    %v1384 = vadd.f32 %v1383, %v1377
    %v1385 = vld [vmem:[#allocation2 + $0x18] sm:$0xc0]
    %v1387 = vrot.slane %v1379, 2
    %v1389 = vadd.f32 %v1385, %v1387
    %v1390 = vtanh.pop %v1384
    %v1391 = vxor.u32 %v1384, 2147483648
    %v1392 = vmul.f32 %v1391, 1.442695
    %v1393 = vpow.pop %v1392
    %v1394 = vadd.f32 %v1393, 1.0
    %v1395 = vrcp.pop %v1394
    %v1396 = vmul.f32 1.0, %v1395
    %v1397 = vsel %vm38, %v1390, %v1396
    %v1398 = vtanh.pop %v1389
    %v1399 = vxor.u32 %v1389, 2147483648
    %v1400 = vmul.f32 %v1399, 1.442695
    %v1401 = vpow.pop %v1400
    %v1402 = vadd.f32 %v1401, 1.0
    %v1403 = vrcp.pop %v1402
    %v1404 = vmul.f32 1.0, %v1403
    %v1405 = vsel %vm38, %v1398, %v1404
    %v1406 = vmul.f32 %v1397, 0.0
    %1408 = vrot.lane.b32.xlu0 %v1397, 64
    %v1409 = vpop.permute.xlu0 %1408
    %v1411 = vmul.f32 %v1397, %v1409
    %1413 = vrot.lane.b32.xlu0 %v1411, 32
    %v1414 = vpop.permute.xlu0 %1413
    %v1416 = vadd.f32 %v1406, %v1414
    %v1417 = vtanh.pop %v1416
    %1419 = vrot.lane.b32.xlu0 %v1417, 64
    %v1420 = vpop.permute.xlu0 %1419
    %v1422 = vmul.f32 %v1397, %v1420
    %v1423 = vmul.f32 %v1405, 0.0
    %1425 = vrot.lane.b32.xlu0 %v1405, 64
    %v1426 = vpop.permute.xlu0 %1425
    %v1428 = vmul.f32 %v1405, %v1426
    %1430 = vrot.lane.b32.xlu0 %v1428, 32
    %v1431 = vpop.permute.xlu0 %1430
    %v1433 = vadd.f32 %v1423, %v1431
    %v1434 = vtanh.pop %v1433
    %1436 = vrot.lane.b32.xlu0 %v1434, 64
    %v1437 = vpop.permute.xlu0 %1436
    %v1439 = vmul.f32 %v1405, %v1437
    %1441 = vrot.lane.b32.xlu0 %v1422, 32
    %v1442 = vpop.permute.xlu0 %1441
    %1444 = vst.msk [vmem:[#allocation3] sm:$0x3] %vm284, %v1442
    %1446 = vrot.lane.b32.xlu0 %v1439, 64
    %v1447 = vpop.permute.xlu0 %1446
    %1449 = vst.msk [vmem:[#allocation3 + $0x8] sm:$0xc0] %vm290, %v1447
    %v1450 = vrot.slane %v1439, 6
    %1451 = vrot.lane.b32.xlu0 %v1450, 64
    %v1452 = vpop.permute.xlu0 %1451
    %v1454 = vsel %vm78, %v1442, %v1452
    %v1455 = vpack.c.bf16 %v1454, %v1454
    %v1457 = vsel %vm178, %v1455, 0
    %1459 = vmatprep.subr.bf16.mxu0 %v1327
    %1460 = vmatpush1.bf16.msra.mxu0 %v1326
    %1461 = vmatprep.subr.bf16.mxu0 %v1329
    %1462 = vmatpush1.bf16.msra.mxu0 %v1328
    %1463 = vmatprep.subr.bf16.mxu0 %v1331
    %1464 = vmatpush1.bf16.msra.mxu0 %v1330
    %1465 = vmatprep.subr.bf16.mxu0 %v1333
    %1466 = vmatpush1.bf16.msra.mxu0 %v1332
    %1467 = vmatprep.subr.bf16.mxu0 0
    %1468 = vmatpush1.bf16.msra.mxu0 0
    %1469 = vmatprep.subr.bf16.mxu0 0
    %1470 = vmatpush1.bf16.msra.mxu0 0
    %1471 = vmatprep.subr.bf16.mxu0 0
    %1472 = vmatpush1.bf16.msra.mxu0 0
    %1473 = vmatprep.subr.bf16.mxu0 0
    %1474 = vmatpush1.bf16.msra.mxu0 0
    %1475 = vmatprep.subr.bf16.mxu0 0
    %1476 = vmatpush1.bf16.msra.mxu0 0
    %1477 = vmatprep.subr.bf16.mxu0 0
    %1478 = vmatpush1.bf16.msra.mxu0 0
    %1479 = vmatprep.subr.bf16.mxu0 0
    %1480 = vmatpush1.bf16.msra.mxu0 0
    %1481 = vmatprep.subr.bf16.mxu0 0
    %1482 = vmatpush1.bf16.msra.mxu0 0
    %1483 = vmatprep.subr.bf16.mxu0 0
    %1484 = vmatpush1.bf16.msra.mxu0 0
    %1485 = vmatprep.subr.bf16.mxu0 0
    %1486 = vmatpush1.bf16.msra.mxu0 0
    %1487 = vmatprep.subr.bf16.mxu0 0
    %1488 = vmatpush1.bf16.msra.mxu0 0
    %1489 = vmatprep.subr.bf16.mxu0 0
    %1490 = vmatpush1.bf16.msra.mxu0 0
    %1491 = vmatprep.mubr.bf16.mxu0 0
    %1492 = vmatmul.mubr.bf16.gmra.mrb[0].mxu0 %v1457
    %v1493 = vpop.f32.mrb[0].mxu0
    %v1494 = vadd.f32 0.0, %v1493
    %v1495 = vpop.f32.mrb[0].mxu0
    %v1496 = vadd.f32 0.0, %v1495
    %v1497 = vpop.f32.mrb[0].mxu0
    %v1498 = vpop.f32.mrb[0].mxu0
    %1499 = vdwg.mxu0
    %v1500 = vld [vmem:[#allocation2] sm:$0xc]
    %v1502 = vrot.slane %v1494, 6
    %v1504 = vadd.f32 %v1500, %v1502
    %v1505 = vld [vmem:[#allocation2 + $0x18] sm:$0x30]
    %v1507 = vrot.slane %v1496, 4
    %v1509 = vadd.f32 %v1505, %v1507
    %v1510 = vtanh.pop %v1504
    %v1511 = vxor.u32 %v1504, 2147483648
    %v1512 = vmul.f32 %v1511, 1.442695
    %v1513 = vpow.pop %v1512
    %v1514 = vadd.f32 %v1513, 1.0
    %v1515 = vrcp.pop %v1514
    %v1516 = vmul.f32 1.0, %v1515
    %v1517 = vsel %vm38, %v1510, %v1516
    %v1518 = vtanh.pop %v1509
    %v1519 = vxor.u32 %v1509, 2147483648
    %v1520 = vmul.f32 %v1519, 1.442695
    %v1521 = vpow.pop %v1520
    %v1522 = vadd.f32 %v1521, 1.0
    %v1523 = vrcp.pop %v1522
    %v1524 = vmul.f32 1.0, %v1523
    %v1525 = vsel %vm38, %v1518, %v1524
    %v1527 = vrot.slane %v1416, 6
    %v1529 = vmul.f32 %v1517, %v1527
    %1531 = vrot.lane.b32.xlu0 %v1517, 64
    %v1532 = vpop.permute.xlu0 %1531
    %v1534 = vmul.f32 %v1517, %v1532
    %1536 = vrot.lane.b32.xlu0 %v1534, 32
    %v1537 = vpop.permute.xlu0 %1536
    %v1539 = vadd.f32 %v1529, %v1537
    %v1540 = vtanh.pop %v1539
    %1542 = vrot.lane.b32.xlu0 %v1540, 64
    %v1543 = vpop.permute.xlu0 %1542
    %v1545 = vmul.f32 %v1517, %v1543
    %v1547 = vrot.slane %v1433, 2
    %v1549 = vmul.f32 %v1525, %v1547
    %1551 = vrot.lane.b32.xlu0 %v1525, 64
    %v1552 = vpop.permute.xlu0 %1551
    %v1554 = vmul.f32 %v1525, %v1552
    %1556 = vrot.lane.b32.xlu0 %v1554, 32
    %v1557 = vpop.permute.xlu0 %1556
    %v1559 = vadd.f32 %v1549, %v1557
    %v1560 = vtanh.pop %v1559
    %1562 = vrot.lane.b32.xlu0 %v1560, 64
    %v1563 = vpop.permute.xlu0 %1562
    %v1565 = vmul.f32 %v1525, %v1563
    %1567 = vrot.lane.b32.xlu0 %v1545, 32
    %v1568 = vpop.permute.xlu0 %1567
    %1570 = vst.msk [vmem:[#allocation3] sm:$0xc] %vm412, %v1568
    %1572 = vrot.lane.b32.xlu0 %v1565, 64
    %v1573 = vpop.permute.xlu0 %1572
    %1575 = vst.msk [vmem:[#allocation3 + $0x8] sm:$0x30] %vm418, %v1573
    %v1576 = vrot.slane %v1565, 2
    %1577 = vrot.lane.b32.xlu0 %v1576, 64
    %v1578 = vpop.permute.xlu0 %1577
    %v1580 = vsel %vm78, %v1568, %v1578
    %v1581 = vpack.c.bf16 %v1580, %v1580
    %v1583 = vrot.slane %v1581, 1
    %v1585 = vsel %vm178, %v1583, 0
    %1587 = vmatprep.subr.bf16.mxu0 %v1327
    %1588 = vmatpush1.bf16.msra.mxu0 %v1326
    %1589 = vmatprep.subr.bf16.mxu0 %v1329
    %1590 = vmatpush1.bf16.msra.mxu0 %v1328
    %1591 = vmatprep.subr.bf16.mxu0 %v1331
    %1592 = vmatpush1.bf16.msra.mxu0 %v1330
    %1593 = vmatprep.subr.bf16.mxu0 %v1333
    %1594 = vmatpush1.bf16.msra.mxu0 %v1332
    %1595 = vmatprep.subr.bf16.mxu0 0
    %1596 = vmatpush1.bf16.msra.mxu0 0
    %1597 = vmatprep.subr.bf16.mxu0 0
    %1598 = vmatpush1.bf16.msra.mxu0 0
    %1599 = vmatprep.subr.bf16.mxu0 0
    %1600 = vmatpush1.bf16.msra.mxu0 0
    %1601 = vmatprep.subr.bf16.mxu0 0
    %1602 = vmatpush1.bf16.msra.mxu0 0
    %1603 = vmatprep.subr.bf16.mxu0 0
    %1604 = vmatpush1.bf16.msra.mxu0 0
    %1605 = vmatprep.subr.bf16.mxu0 0
    %1606 = vmatpush1.bf16.msra.mxu0 0
    %1607 = vmatprep.subr.bf16.mxu0 0
    %1608 = vmatpush1.bf16.msra.mxu0 0
    %1609 = vmatprep.subr.bf16.mxu0 0
    %1610 = vmatpush1.bf16.msra.mxu0 0
    %1611 = vmatprep.subr.bf16.mxu0 0
    %1612 = vmatpush1.bf16.msra.mxu0 0
    %1613 = vmatprep.subr.bf16.mxu0 0
    %1614 = vmatpush1.bf16.msra.mxu0 0
    %1615 = vmatprep.subr.bf16.mxu0 0
    %1616 = vmatpush1.bf16.msra.mxu0 0
    %1617 = vmatprep.subr.bf16.mxu0 0
    %1618 = vmatpush1.bf16.msra.mxu0 0
    %1619 = vmatprep.mubr.bf16.mxu0 0
    %1620 = vmatmul.mubr.bf16.gmra.mrb[0].mxu0 %v1585
    %v1621 = vpop.f32.mrb[0].mxu0
    %v1622 = vadd.f32 0.0, %v1621
    %v1623 = vpop.f32.mrb[0].mxu0
    %v1624 = vadd.f32 0.0, %v1623
    %v1625 = vpop.f32.mrb[0].mxu0
    %v1626 = vpop.f32.mrb[0].mxu0
    %1627 = vdwg.mxu0
    %v1628 = vld [vmem:[#allocation2] sm:$0x30]
    %v1630 = vrot.slane %v1622, 4
    %v1632 = vadd.f32 %v1628, %v1630
    %v1633 = vld [vmem:[#allocation2 + $0x18] sm:$0xc]
    %v1635 = vrot.slane %v1624, 6
    %v1637 = vadd.f32 %v1633, %v1635
    %v1638 = vtanh.pop %v1632
    %v1639 = vxor.u32 %v1632, 2147483648
    %v1640 = vmul.f32 %v1639, 1.442695
    %v1641 = vpow.pop %v1640
    %v1642 = vadd.f32 %v1641, 1.0
    %v1643 = vrcp.pop %v1642
    %v1644 = vmul.f32 1.0, %v1643
    %v1645 = vsel %vm38, %v1638, %v1644
    %v1646 = vtanh.pop %v1637
    %v1647 = vxor.u32 %v1637, 2147483648
    %v1648 = vmul.f32 %v1647, 1.442695
    %v1649 = vpow.pop %v1648
    %v1650 = vadd.f32 %v1649, 1.0
    %v1651 = vrcp.pop %v1650
    %v1652 = vmul.f32 1.0, %v1651
    %v1653 = vsel %vm38, %v1646, %v1652
    %v1655 = vrot.slane %v1539, 6
    %v1657 = vmul.f32 %v1645, %v1655
    %1659 = vrot.lane.b32.xlu0 %v1645, 64
    %v1660 = vpop.permute.xlu0 %1659
    %v1662 = vmul.f32 %v1645, %v1660
    %1664 = vrot.lane.b32.xlu0 %v1662, 32
    %v1665 = vpop.permute.xlu0 %1664
    %v1667 = vadd.f32 %v1657, %v1665
    %v1668 = vtanh.pop %v1667
    %1670 = vrot.lane.b32.xlu0 %v1668, 64
    %v1671 = vpop.permute.xlu0 %1670
    %v1673 = vmul.f32 %v1645, %v1671
    %v1675 = vrot.slane %v1559, 2
    %v1677 = vmul.f32 %v1653, %v1675
    %1679 = vrot.lane.b32.xlu0 %v1653, 64
    %v1680 = vpop.permute.xlu0 %1679
    %v1682 = vmul.f32 %v1653, %v1680
    %1684 = vrot.lane.b32.xlu0 %v1682, 32
    %v1685 = vpop.permute.xlu0 %1684
    %v1687 = vadd.f32 %v1677, %v1685
    %v1688 = vtanh.pop %v1687
    %1690 = vrot.lane.b32.xlu0 %v1688, 64
    %v1691 = vpop.permute.xlu0 %1690
    %v1693 = vmul.f32 %v1653, %v1691
    %1695 = vrot.lane.b32.xlu0 %v1673, 32
    %v1696 = vpop.permute.xlu0 %1695
    %1698 = vst.msk [vmem:[#allocation3] sm:$0x30] %vm542, %v1696
    %1700 = vrot.lane.b32.xlu0 %v1693, 64
    %v1701 = vpop.permute.xlu0 %1700
    %1703 = vst.msk [vmem:[#allocation3 + $0x8] sm:$0xc] %vm548, %v1701
    %v1704 = vrot.slane %v1693, 6
    %1705 = vrot.lane.b32.xlu0 %v1704, 64
    %v1706 = vpop.permute.xlu0 %1705
    %v1708 = vsel %vm78, %v1696, %v1706
    %v1709 = vpack.c.bf16 %v1708, %v1708
    %v1711 = vrot.slane %v1709, 2
    %v1713 = vsel %vm178, %v1711, 0
    %1715 = vmatprep.subr.bf16.mxu0 %v1327
    %1716 = vmatpush1.bf16.msra.mxu0 %v1326
    %1717 = vmatprep.subr.bf16.mxu0 %v1329
    %1718 = vmatpush1.bf16.msra.mxu0 %v1328
    %1719 = vmatprep.subr.bf16.mxu0 %v1331
    %1720 = vmatpush1.bf16.msra.mxu0 %v1330
    %1721 = vmatprep.subr.bf16.mxu0 %v1333
    %1722 = vmatpush1.bf16.msra.mxu0 %v1332
    %1723 = vmatprep.subr.bf16.mxu0 0
    %1724 = vmatpush1.bf16.msra.mxu0 0
    %1725 = vmatprep.subr.bf16.mxu0 0
    %1726 = vmatpush1.bf16.msra.mxu0 0
    %1727 = vmatprep.subr.bf16.mxu0 0
    %1728 = vmatpush1.bf16.msra.mxu0 0
    %1729 = vmatprep.subr.bf16.mxu0 0
    %1730 = vmatpush1.bf16.msra.mxu0 0
    %1731 = vmatprep.subr.bf16.mxu0 0
    %1732 = vmatpush1.bf16.msra.mxu0 0
    %1733 = vmatprep.subr.bf16.mxu0 0
    %1734 = vmatpush1.bf16.msra.mxu0 0
    %1735 = vmatprep.subr.bf16.mxu0 0
    %1736 = vmatpush1.bf16.msra.mxu0 0
    %1737 = vmatprep.subr.bf16.mxu0 0
    %1738 = vmatpush1.bf16.msra.mxu0 0
    %1739 = vmatprep.subr.bf16.mxu0 0
    %1740 = vmatpush1.bf16.msra.mxu0 0
    %1741 = vmatprep.subr.bf16.mxu0 0
    %1742 = vmatpush1.bf16.msra.mxu0 0
    %1743 = vmatprep.subr.bf16.mxu0 0
    %1744 = vmatpush1.bf16.msra.mxu0 0
    %1745 = vmatprep.subr.bf16.mxu0 0
    %1746 = vmatpush1.bf16.msra.mxu0 0
    %1747 = vmatprep.mubr.bf16.mxu0 0
    %1748 = vmatmul.mubr.bf16.gmra.mrb[0].mxu0 %v1713
    %v1749 = vpop.f32.mrb[0].mxu0
    %v1750 = vadd.f32 0.0, %v1749
    %v1751 = vpop.f32.mrb[0].mxu0
    %v1752 = vadd.f32 0.0, %v1751
    %v1753 = vpop.f32.mrb[0].mxu0
    %v1754 = vpop.f32.mrb[0].mxu0
    %1755 = vdwg.mxu0
    %v1756 = vld [vmem:[#allocation2] sm:$0xc0]
    %v1758 = vrot.slane %v1750, 2
    %v1760 = vadd.f32 %v1756, %v1758
    %v1761 = vld [vmem:[#allocation2 + $0x18] sm:$0x3]
    %v1762 = vadd.f32 %v1761, %v1752
    %v1763 = vtanh.pop %v1760
    %v1764 = vxor.u32 %v1760, 2147483648
    %v1765 = vmul.f32 %v1764, 1.442695
    %v1766 = vpow.pop %v1765
    %v1767 = vadd.f32 %v1766, 1.0
    %v1768 = vrcp.pop %v1767
    %v1769 = vmul.f32 1.0, %v1768
    %v1770 = vsel %vm38, %v1763, %v1769
    %v1771 = vtanh.pop %v1762
    %v1772 = vxor.u32 %v1762, 2147483648
    %v1773 = vmul.f32 %v1772, 1.442695
    %v1774 = vpow.pop %v1773
    %v1775 = vadd.f32 %v1774, 1.0
    %v1776 = vrcp.pop %v1775
    %v1777 = vmul.f32 1.0, %v1776
    %v1778 = vsel %vm38, %v1771, %v1777
    %v1780 = vrot.slane %v1667, 6
    %v1782 = vmul.f32 %v1770, %v1780
    %1784 = vrot.lane.b32.xlu0 %v1770, 64
    %v1785 = vpop.permute.xlu0 %1784
    %v1787 = vmul.f32 %v1770, %v1785
    %1789 = vrot.lane.b32.xlu0 %v1787, 32
    %v1790 = vpop.permute.xlu0 %1789
    %v1792 = vadd.f32 %v1782, %v1790
    %v1793 = vtanh.pop %v1792
    %1795 = vrot.lane.b32.xlu0 %v1793, 64
    %v1796 = vpop.permute.xlu0 %1795
    %v1798 = vmul.f32 %v1770, %v1796
    %v1800 = vrot.slane %v1687, 2
    %v1802 = vmul.f32 %v1778, %v1800
    %1804 = vrot.lane.b32.xlu0 %v1778, 64
    %v1805 = vpop.permute.xlu0 %1804
    %v1807 = vmul.f32 %v1778, %v1805
    %1809 = vrot.lane.b32.xlu0 %v1807, 32
    %v1810 = vpop.permute.xlu0 %1809
    %v1812 = vadd.f32 %v1802, %v1810
    %v1813 = vtanh.pop %v1812
    %1815 = vrot.lane.b32.xlu0 %v1813, 64
    %v1816 = vpop.permute.xlu0 %1815
    %v1818 = vmul.f32 %v1778, %v1816
    %1820 = vrot.lane.b32.xlu0 %v1798, 32
    %v1821 = vpop.permute.xlu0 %1820
    %1823 = vst.msk [vmem:[#allocation3] sm:$0xc0] %vm669, %v1821
    %1825 = vrot.lane.b32.xlu0 %v1818, 64
    %v1826 = vpop.permute.xlu0 %1825
    %1828 = vst.msk [vmem:[#allocation3 + $0x8] sm:$0x3] %vm675, %v1826
    %v1829 = vrot.slane %v1818, 2
    %1830 = vrot.lane.b32.xlu0 %v1829, 64
    %v1831 = vpop.permute.xlu0 %1830
    %v1833 = vsel %vm78, %v1821, %v1831
    %v1834 = vpack.c.bf16 %v1833, %v1833
    %v1836 = vrot.slane %v1834, 3
    %v1838 = vsel %vm178, %v1836, 0
    %1840 = vmatprep.subr.bf16.mxu0 %v1327
    %1841 = vmatpush1.bf16.msra.mxu0 %v1326
    %1842 = vmatprep.subr.bf16.mxu0 %v1329
    %1843 = vmatpush1.bf16.msra.mxu0 %v1328
    %1844 = vmatprep.subr.bf16.mxu0 %v1331
    %1845 = vmatpush1.bf16.msra.mxu0 %v1330
    %1846 = vmatprep.subr.bf16.mxu0 %v1333
    %1847 = vmatpush1.bf16.msra.mxu0 %v1332
    %1848 = vmatprep.subr.bf16.mxu0 0
    %1849 = vmatpush1.bf16.msra.mxu0 0
    %1850 = vmatprep.subr.bf16.mxu0 0
    %1851 = vmatpush1.bf16.msra.mxu0 0
    %1852 = vmatprep.subr.bf16.mxu0 0
    %1853 = vmatpush1.bf16.msra.mxu0 0
    %1854 = vmatprep.subr.bf16.mxu0 0
    %1855 = vmatpush1.bf16.msra.mxu0 0
    %1856 = vmatprep.subr.bf16.mxu0 0
    %1857 = vmatpush1.bf16.msra.mxu0 0
    %1858 = vmatprep.subr.bf16.mxu0 0
    %1859 = vmatpush1.bf16.msra.mxu0 0
    %1860 = vmatprep.subr.bf16.mxu0 0
    %1861 = vmatpush1.bf16.msra.mxu0 0
    %1862 = vmatprep.subr.bf16.mxu0 0
    %1863 = vmatpush1.bf16.msra.mxu0 0
    %1864 = vmatprep.subr.bf16.mxu0 0
    %1865 = vmatpush1.bf16.msra.mxu0 0
    %1866 = vmatprep.subr.bf16.mxu0 0
    %1867 = vmatpush1.bf16.msra.mxu0 0
    %1868 = vmatprep.subr.bf16.mxu0 0
    %1869 = vmatpush1.bf16.msra.mxu0 0
    %1870 = vmatprep.subr.bf16.mxu0 0
    %1871 = vmatpush1.bf16.msra.mxu0 0
    %1872 = vmatprep.mubr.bf16.mxu0 0
    %1873 = vmatmul.mubr.bf16.gmra.mrb[0].mxu0 %v1838
    %v1874 = vpop.f32.mrb[0].mxu0
    %v1875 = vadd.f32 0.0, %v1874
    %v1876 = vpop.f32.mrb[0].mxu0
    %v1877 = vadd.f32 0.0, %v1876
    %v1878 = vpop.f32.mrb[0].mxu0
    %v1879 = vpop.f32.mrb[0].mxu0
    %1880 = vdwg.mxu0
    %v1881 = vld [vmem:[#allocation2 + $0x10] sm:$0x3]
    %v1882 = vadd.f32 %v1881, %v1875
    %v1883 = vld [vmem:[#allocation2 + $0x8] sm:$0xc0]
    %v1885 = vrot.slane %v1877, 2
    %v1887 = vadd.f32 %v1883, %v1885
    %v1888 = vtanh.pop %v1882
    %v1889 = vxor.u32 %v1882, 2147483648
    %v1890 = vmul.f32 %v1889, 1.442695
    %v1891 = vpow.pop %v1890
    %v1892 = vadd.f32 %v1891, 1.0
    %v1893 = vrcp.pop %v1892
    %v1894 = vmul.f32 1.0, %v1893
    %v1895 = vsel %vm38, %v1888, %v1894
    %v1896 = vtanh.pop %v1887
    %v1897 = vxor.u32 %v1887, 2147483648
    %v1898 = vmul.f32 %v1897, 1.442695
    %v1899 = vpow.pop %v1898
    %v1900 = vadd.f32 %v1899, 1.0
    %v1901 = vrcp.pop %v1900
    %v1902 = vmul.f32 1.0, %v1901
    %v1903 = vsel %vm38, %v1896, %v1902
    %v1905 = vrot.slane %v1792, 6
    %v1907 = vmul.f32 %v1895, %v1905
    %1909 = vrot.lane.b32.xlu0 %v1895, 64
    %v1910 = vpop.permute.xlu0 %1909
    %v1912 = vmul.f32 %v1895, %v1910
    %1914 = vrot.lane.b32.xlu0 %v1912, 32
    %v1915 = vpop.permute.xlu0 %1914
    %v1917 = vadd.f32 %v1907, %v1915
    %v1918 = vtanh.pop %v1917
    %1920 = vrot.lane.b32.xlu0 %v1918, 64
    %v1921 = vpop.permute.xlu0 %1920
    %v1923 = vmul.f32 %v1895, %v1921
    %v1925 = vrot.slane %v1812, 2
    %v1927 = vmul.f32 %v1903, %v1925
    %1929 = vrot.lane.b32.xlu0 %v1903, 64
    %v1930 = vpop.permute.xlu0 %1929
    %v1932 = vmul.f32 %v1903, %v1930
    %1934 = vrot.lane.b32.xlu0 %v1932, 32
    %v1935 = vpop.permute.xlu0 %1934
    %v1937 = vadd.f32 %v1927, %v1935
    %v1938 = vtanh.pop %v1937
    %1940 = vrot.lane.b32.xlu0 %v1938, 64
    %v1941 = vpop.permute.xlu0 %1940
    %v1943 = vmul.f32 %v1903, %v1941
    %1945 = vrot.lane.b32.xlu0 %v1923, 32
    %v1946 = vpop.permute.xlu0 %1945
    %1948 = vst.msk [vmem:[#allocation3 + $0x8] sm:$0x3] %vm284, %v1946
    %1950 = vrot.lane.b32.xlu0 %v1943, 64
    %v1951 = vpop.permute.xlu0 %1950
    %1953 = vst.msk [vmem:[#allocation3] sm:$0xc0] %vm290, %v1951
    %v1954 = vrot.slane %v1943, 6
    %1955 = vrot.lane.b32.xlu0 %v1954, 64
    %v1956 = vpop.permute.xlu0 %1955
    %v1958 = vsel %vm78, %v1946, %v1956
    %v1959 = vpack.c.bf16 %v1958, %v1958
    %v1961 = vsel %vm178, %v1959, 0
    %1963 = vmatprep.subr.bf16.mxu0 %v1327
    %1964 = vmatpush1.bf16.msra.mxu0 %v1326
    %1965 = vmatprep.subr.bf16.mxu0 %v1329
    %1966 = vmatpush1.bf16.msra.mxu0 %v1328
    %1967 = vmatprep.subr.bf16.mxu0 %v1331
    %1968 = vmatpush1.bf16.msra.mxu0 %v1330
    %1969 = vmatprep.subr.bf16.mxu0 %v1333
    %1970 = vmatpush1.bf16.msra.mxu0 %v1332
    %1971 = vmatprep.subr.bf16.mxu0 0
    %1972 = vmatpush1.bf16.msra.mxu0 0
    %1973 = vmatprep.subr.bf16.mxu0 0
    %1974 = vmatpush1.bf16.msra.mxu0 0
    %1975 = vmatprep.subr.bf16.mxu0 0
    %1976 = vmatpush1.bf16.msra.mxu0 0
    %1977 = vmatprep.subr.bf16.mxu0 0
    %1978 = vmatpush1.bf16.msra.mxu0 0
    %1979 = vmatprep.subr.bf16.mxu0 0
    %1980 = vmatpush1.bf16.msra.mxu0 0
    %1981 = vmatprep.subr.bf16.mxu0 0
    %1982 = vmatpush1.bf16.msra.mxu0 0
    %1983 = vmatprep.subr.bf16.mxu0 0
    %1984 = vmatpush1.bf16.msra.mxu0 0
    %1985 = vmatprep.subr.bf16.mxu0 0
    %1986 = vmatpush1.bf16.msra.mxu0 0
    %1987 = vmatprep.subr.bf16.mxu0 0
    %1988 = vmatpush1.bf16.msra.mxu0 0
    %1989 = vmatprep.subr.bf16.mxu0 0
    %1990 = vmatpush1.bf16.msra.mxu0 0
    %1991 = vmatprep.subr.bf16.mxu0 0
    %1992 = vmatpush1.bf16.msra.mxu0 0
    %1993 = vmatprep.subr.bf16.mxu0 0
    %1994 = vmatpush1.bf16.msra.mxu0 0
    %1995 = vmatprep.mubr.bf16.mxu0 0
    %1996 = vmatmul.mubr.bf16.gmra.mrb[0].mxu0 %v1961
    %v1997 = vpop.f32.mrb[0].mxu0
    %v1998 = vadd.f32 0.0, %v1997
    %v1999 = vpop.f32.mrb[0].mxu0
    %v2000 = vadd.f32 0.0, %v1999
    %v2001 = vpop.f32.mrb[0].mxu0
    %v2002 = vpop.f32.mrb[0].mxu0
    %2003 = vdwg.mxu0
    %v2004 = vld [vmem:[#allocation2 + $0x10] sm:$0xc]
    %v2006 = vrot.slane %v1998, 6
    %v2008 = vadd.f32 %v2004, %v2006
    %v2009 = vld [vmem:[#allocation2 + $0x8] sm:$0x30]
    %v2011 = vrot.slane %v2000, 4
    %v2013 = vadd.f32 %v2009, %v2011
    %v2014 = vtanh.pop %v2008
    %v2015 = vxor.u32 %v2008, 2147483648
    %v2016 = vmul.f32 %v2015, 1.442695
    %v2017 = vpow.pop %v2016
    %v2018 = vadd.f32 %v2017, 1.0
    %v2019 = vrcp.pop %v2018
    %v2020 = vmul.f32 1.0, %v2019
    %v2021 = vsel %vm38, %v2014, %v2020
    %v2022 = vtanh.pop %v2013
    %v2023 = vxor.u32 %v2013, 2147483648
    %v2024 = vmul.f32 %v2023, 1.442695
    %v2025 = vpow.pop %v2024
    %v2026 = vadd.f32 %v2025, 1.0
    %v2027 = vrcp.pop %v2026
    %v2028 = vmul.f32 1.0, %v2027
    %v2029 = vsel %vm38, %v2022, %v2028
    %v2031 = vrot.slane %v1917, 6
    %v2033 = vmul.f32 %v2021, %v2031
    %2035 = vrot.lane.b32.xlu0 %v2021, 64
    %v2036 = vpop.permute.xlu0 %2035
    %v2038 = vmul.f32 %v2021, %v2036
    %2040 = vrot.lane.b32.xlu0 %v2038, 32
    %v2041 = vpop.permute.xlu0 %2040
    %v2043 = vadd.f32 %v2033, %v2041
    %v2044 = vtanh.pop %v2043
    %2046 = vrot.lane.b32.xlu0 %v2044, 64
    %v2047 = vpop.permute.xlu0 %2046
    %v2049 = vmul.f32 %v2021, %v2047
    %v2051 = vrot.slane %v1937, 2
    %v2053 = vmul.f32 %v2029, %v2051
    %2055 = vrot.lane.b32.xlu0 %v2029, 64
    %v2056 = vpop.permute.xlu0 %2055
    %v2058 = vmul.f32 %v2029, %v2056
    %2060 = vrot.lane.b32.xlu0 %v2058, 32
    %v2061 = vpop.permute.xlu0 %2060
    %v2063 = vadd.f32 %v2053, %v2061
    %v2064 = vtanh.pop %v2063
    %2066 = vrot.lane.b32.xlu0 %v2064, 64
    %v2067 = vpop.permute.xlu0 %2066
    %v2069 = vmul.f32 %v2029, %v2067
    %2071 = vrot.lane.b32.xlu0 %v2049, 32
    %v2072 = vpop.permute.xlu0 %2071
    %2074 = vst.msk [vmem:[#allocation3 + $0x8] sm:$0xc] %vm412, %v2072
    %2076 = vrot.lane.b32.xlu0 %v2069, 64
    %v2077 = vpop.permute.xlu0 %2076
    %2079 = vst.msk [vmem:[#allocation3] sm:$0x30] %vm418, %v2077
    %v2080 = vrot.slane %v2069, 2
    %2081 = vrot.lane.b32.xlu0 %v2080, 64
    %v2082 = vpop.permute.xlu0 %2081
    %v2084 = vsel %vm78, %v2072, %v2082
    %v2085 = vpack.c.bf16 %v2084, %v2084
    %v2087 = vrot.slane %v2085, 1
    %v2089 = vsel %vm178, %v2087, 0
    %2091 = vmatprep.subr.bf16.mxu0 %v1327
    %2092 = vmatpush1.bf16.msra.mxu0 %v1326
    %2093 = vmatprep.subr.bf16.mxu0 %v1329
    %2094 = vmatpush1.bf16.msra.mxu0 %v1328
    %2095 = vmatprep.subr.bf16.mxu0 %v1331
    %2096 = vmatpush1.bf16.msra.mxu0 %v1330
    %2097 = vmatprep.subr.bf16.mxu0 %v1333
    %2098 = vmatpush1.bf16.msra.mxu0 %v1332
    %2099 = vmatprep.subr.bf16.mxu0 0
    %2100 = vmatpush1.bf16.msra.mxu0 0
    %2101 = vmatprep.subr.bf16.mxu0 0
    %2102 = vmatpush1.bf16.msra.mxu0 0
    %2103 = vmatprep.subr.bf16.mxu0 0
    %2104 = vmatpush1.bf16.msra.mxu0 0
    %2105 = vmatprep.subr.bf16.mxu0 0
    %2106 = vmatpush1.bf16.msra.mxu0 0
    %2107 = vmatprep.subr.bf16.mxu0 0
    %2108 = vmatpush1.bf16.msra.mxu0 0
    %2109 = vmatprep.subr.bf16.mxu0 0
    %2110 = vmatpush1.bf16.msra.mxu0 0
    %2111 = vmatprep.subr.bf16.mxu0 0
    %2112 = vmatpush1.bf16.msra.mxu0 0
    %2113 = vmatprep.subr.bf16.mxu0 0
    %2114 = vmatpush1.bf16.msra.mxu0 0
    %2115 = vmatprep.subr.bf16.mxu0 0
    %2116 = vmatpush1.bf16.msra.mxu0 0
    %2117 = vmatprep.subr.bf16.mxu0 0
    %2118 = vmatpush1.bf16.msra.mxu0 0
    %2119 = vmatprep.subr.bf16.mxu0 0
    %2120 = vmatpush1.bf16.msra.mxu0 0
    %2121 = vmatprep.subr.bf16.mxu0 0
    %2122 = vmatpush1.bf16.msra.mxu0 0
    %2123 = vmatprep.mubr.bf16.mxu0 0
    %2124 = vmatmul.mubr.bf16.gmra.mrb[0].mxu0 %v2089
    %v2125 = vpop.f32.mrb[0].mxu0
    %v2126 = vadd.f32 0.0, %v2125
    %v2127 = vpop.f32.mrb[0].mxu0
    %v2128 = vadd.f32 0.0, %v2127
    %v2129 = vpop.f32.mrb[0].mxu0
    %v2130 = vpop.f32.mrb[0].mxu0
    %2131 = vdwg.mxu0
    %v2132 = vld [vmem:[#allocation2 + $0x10] sm:$0x30]
    %v2134 = vrot.slane %v2126, 4
    %v2136 = vadd.f32 %v2132, %v2134
    %v2137 = vld [vmem:[#allocation2 + $0x8] sm:$0xc]
    %v2139 = vrot.slane %v2128, 6
    %v2141 = vadd.f32 %v2137, %v2139
    %v2142 = vtanh.pop %v2136
    %v2143 = vxor.u32 %v2136, 2147483648
    %v2144 = vmul.f32 %v2143, 1.442695
    %v2145 = vpow.pop %v2144
    %v2146 = vadd.f32 %v2145, 1.0
    %v2147 = vrcp.pop %v2146
    %v2148 = vmul.f32 1.0, %v2147
    %v2149 = vsel %vm38, %v2142, %v2148
    %v2150 = vtanh.pop %v2141
    %v2151 = vxor.u32 %v2141, 2147483648
    %v2152 = vmul.f32 %v2151, 1.442695
    %v2153 = vpow.pop %v2152
    %v2154 = vadd.f32 %v2153, 1.0
    %v2155 = vrcp.pop %v2154
    %v2156 = vmul.f32 1.0, %v2155
    %v2157 = vsel %vm38, %v2150, %v2156
    %v2159 = vrot.slane %v2043, 6
    %v2161 = vmul.f32 %v2149, %v2159
    %2163 = vrot.lane.b32.xlu0 %v2149, 64
    %v2164 = vpop.permute.xlu0 %2163
    %v2166 = vmul.f32 %v2149, %v2164
    %2168 = vrot.lane.b32.xlu0 %v2166, 32
    %v2169 = vpop.permute.xlu0 %2168
    %v2171 = vadd.f32 %v2161, %v2169
    %v2172 = vtanh.pop %v2171
    %2174 = vrot.lane.b32.xlu0 %v2172, 64
    %v2175 = vpop.permute.xlu0 %2174
    %v2177 = vmul.f32 %v2149, %v2175
    %v2179 = vrot.slane %v2063, 2
    %v2181 = vmul.f32 %v2157, %v2179
    %2183 = vrot.lane.b32.xlu0 %v2157, 64
    %v2184 = vpop.permute.xlu0 %2183
    %v2186 = vmul.f32 %v2157, %v2184
    %2188 = vrot.lane.b32.xlu0 %v2186, 32
    %v2189 = vpop.permute.xlu0 %2188
    %v2191 = vadd.f32 %v2181, %v2189
    %v2192 = vtanh.pop %v2191
    %2194 = vrot.lane.b32.xlu0 %v2192, 64
    %v2195 = vpop.permute.xlu0 %2194
    %v2197 = vmul.f32 %v2157, %v2195
    %2199 = vrot.lane.b32.xlu0 %v2177, 32
    %v2200 = vpop.permute.xlu0 %2199
    %2202 = vst.msk [vmem:[#allocation3 + $0x8] sm:$0x30] %vm542, %v2200
    %2204 = vrot.lane.b32.xlu0 %v2197, 64
    %v2205 = vpop.permute.xlu0 %2204
    %2207 = vst.msk [vmem:[#allocation3] sm:$0xc] %vm548, %v2205
    %v2208 = vrot.slane %v2197, 6
    %2209 = vrot.lane.b32.xlu0 %v2208, 64
    %v2210 = vpop.permute.xlu0 %2209
    %v2212 = vsel %vm78, %v2200, %v2210
    %v2213 = vpack.c.bf16 %v2212, %v2212
    %v2215 = vrot.slane %v2213, 2
    %v2217 = vsel %vm178, %v2215, 0
    %2219 = vmatprep.subr.bf16.mxu0 %v1327
    %2220 = vmatpush1.bf16.msra.mxu0 %v1326
    %2221 = vmatprep.subr.bf16.mxu0 %v1329
    %2222 = vmatpush1.bf16.msra.mxu0 %v1328
    %2223 = vmatprep.subr.bf16.mxu0 %v1331
    %2224 = vmatpush1.bf16.msra.mxu0 %v1330
    %2225 = vmatprep.subr.bf16.mxu0 %v1333
    %2226 = vmatpush1.bf16.msra.mxu0 %v1332
    %2227 = vmatprep.subr.bf16.mxu0 0
    %2228 = vmatpush1.bf16.msra.mxu0 0
    %2229 = vmatprep.subr.bf16.mxu0 0
    %2230 = vmatpush1.bf16.msra.mxu0 0
    %2231 = vmatprep.subr.bf16.mxu0 0
    %2232 = vmatpush1.bf16.msra.mxu0 0
    %2233 = vmatprep.subr.bf16.mxu0 0
    %2234 = vmatpush1.bf16.msra.mxu0 0
    %2235 = vmatprep.subr.bf16.mxu0 0
    %2236 = vmatpush1.bf16.msra.mxu0 0
    %2237 = vmatprep.subr.bf16.mxu0 0
    %2238 = vmatpush1.bf16.msra.mxu0 0
    %2239 = vmatprep.subr.bf16.mxu0 0
    %2240 = vmatpush1.bf16.msra.mxu0 0
    %2241 = vmatprep.subr.bf16.mxu0 0
    %2242 = vmatpush1.bf16.msra.mxu0 0
    %2243 = vmatprep.subr.bf16.mxu0 0
    %2244 = vmatpush1.bf16.msra.mxu0 0
    %2245 = vmatprep.subr.bf16.mxu0 0
    %2246 = vmatpush1.bf16.msra.mxu0 0
    %2247 = vmatprep.subr.bf16.mxu0 0
    %2248 = vmatpush1.bf16.msra.mxu0 0
    %2249 = vmatprep.subr.bf16.mxu0 0
    %2250 = vmatpush1.bf16.msra.mxu0 0
    %2251 = vmatprep.mubr.bf16.mxu0 0
    %2252 = vmatmul.mubr.bf16.gmra.mrb[0].mxu0 %v2217
    %v2253 = vpop.f32.mrb[0].mxu0
    %v2254 = vadd.f32 0.0, %v2253
    %v2255 = vpop.f32.mrb[0].mxu0
    %v2256 = vadd.f32 0.0, %v2255
    %v2257 = vpop.f32.mrb[0].mxu0
    %v2258 = vpop.f32.mrb[0].mxu0
    %2259 = vdwg.mxu0
    %v2260 = vld [vmem:[#allocation2 + $0x10] sm:$0xc0]
    %v2262 = vrot.slane %v2254, 2
    %v2264 = vadd.f32 %v2260, %v2262
    %v2265 = vld [vmem:[#allocation2 + $0x8] sm:$0x3]
    %v2266 = vadd.f32 %v2265, %v2256
    %v2267 = vtanh.pop %v2264
    %v2268 = vxor.u32 %v2264, 2147483648
    %v2269 = vmul.f32 %v2268, 1.442695
    %v2270 = vpow.pop %v2269
    %v2271 = vadd.f32 %v2270, 1.0
    %v2272 = vrcp.pop %v2271
    %v2273 = vmul.f32 1.0, %v2272
    %v2274 = vsel %vm38, %v2267, %v2273
    %v2275 = vtanh.pop %v2266
    %v2276 = vxor.u32 %v2266, 2147483648
    %v2277 = vmul.f32 %v2276, 1.442695
    %v2278 = vpow.pop %v2277
    %v2279 = vadd.f32 %v2278, 1.0
    %v2280 = vrcp.pop %v2279
    %v2281 = vmul.f32 1.0, %v2280
    %v2282 = vsel %vm38, %v2275, %v2281
    %v2284 = vrot.slane %v2171, 6
    %v2286 = vmul.f32 %v2274, %v2284
    %2288 = vrot.lane.b32.xlu0 %v2274, 64
    %v2289 = vpop.permute.xlu0 %2288
    %v2291 = vmul.f32 %v2274, %v2289
    %2293 = vrot.lane.b32.xlu0 %v2291, 32
    %v2294 = vpop.permute.xlu0 %2293
    %v2296 = vadd.f32 %v2286, %v2294
    %v2297 = vtanh.pop %v2296
    %2299 = vrot.lane.b32.xlu0 %v2297, 64
    %v2300 = vpop.permute.xlu0 %2299
    %v2302 = vmul.f32 %v2274, %v2300
    %v2304 = vrot.slane %v2191, 2
    %v2306 = vmul.f32 %v2282, %v2304
    %2308 = vrot.lane.b32.xlu0 %v2282, 64
    %v2309 = vpop.permute.xlu0 %2308
    %v2311 = vmul.f32 %v2282, %v2309
    %2313 = vrot.lane.b32.xlu0 %v2311, 32
    %v2314 = vpop.permute.xlu0 %2313
    %v2316 = vadd.f32 %v2306, %v2314
    %v2317 = vtanh.pop %v2316
    %2319 = vrot.lane.b32.xlu0 %v2317, 64
    %v2320 = vpop.permute.xlu0 %2319
    %v2322 = vmul.f32 %v2282, %v2320
    %2324 = vrot.lane.b32.xlu0 %v2302, 32
    %v2325 = vpop.permute.xlu0 %2324
    %2327 = vst.msk [vmem:[#allocation3 + $0x8] sm:$0xc0] %vm669, %v2325
    %2329 = vrot.lane.b32.xlu0 %v2322, 64
    %v2330 = vpop.permute.xlu0 %2329
    %2332 = vst.msk [vmem:[#allocation3] sm:$0x3] %vm675, %v2330
    %v2333 = vld [vmem:[#allocation3] sm:$0xff]
    %v2334 = vld [vmem:[#allocation3 + $0x8] sm:$0xff]
    %v2335 = vpack.c.bf16 %v2334, %v2333
    %v2336 = vld [vmem:[%s7] sm:$0xf]
    %v2337 = vld [vmem:[%s7 + $0x4] sm:$0xf]
    %v2338 = vld [vmem:[%s7 + $0x8] sm:$0xf]
    %v2339 = vld [vmem:[%s7 + $0xc] sm:$0xf]
    %v2340 = vld [vmem:[%s7 + $0x10] sm:$0xf]
    %v2341 = vld [vmem:[%s7 + $0x14] sm:$0xf]
    %v2342 = vld [vmem:[%s7 + $0x18] sm:$0xf]
    %v2343 = vld [vmem:[%s7 + $0x1c] sm:$0xf]
    %v2344 = vld [vmem:[%s8] sm:$0x1]
    %v2346 = vlaneseq
    %v2347 = vshrl.u32 %v2346, 7
    %v2348 = vsub.s32 0, %v2347
    %v2349 = vrot.slane %v2344, %v2348
    %v2359 = vunpack.c.l.b16 %v2336
    %v2360 = vunpack.c.l.b16 %v2337
    %v2361 = vunpack.c.l.b16 %v2338
    %v2362 = vunpack.c.l.b16 %v2339
    %v2363 = vunpack.c.l.b16 %v2340
    %v2364 = vunpack.c.l.b16 %v2341
    %v2365 = vunpack.c.l.b16 %v2342
    %v2366 = vunpack.c.l.b16 %v2343
    %v2367 = vpack.c.b16 %v2360, %v2359
    %v2368 = vpack.c.b16 %v2362, %v2361
    %v2369 = vpack.c.b16 %v2364, %v2363
    %v2370 = vpack.c.b16 %v2366, %v2365
    %v2376 = vsel %vm178, %v2335, 0
    %2378 = vmatprep.subr.bf16.mxu0 0
    %2379 = vmatpush1.bf16.msra.mxu0 %v2367
    %2380 = vmatprep.subr.bf16.mxu0 0
    %2381 = vmatpush1.bf16.msra.mxu0 %v2368
    %2382 = vmatprep.subr.bf16.mxu0 0
    %2383 = vmatpush1.bf16.msra.mxu0 %v2369
    %2384 = vmatprep.subr.bf16.mxu0 0
    %2385 = vmatpush1.bf16.msra.mxu0 %v2370
    %2386 = vmatprep.subr.bf16.mxu0 0
    %2387 = vmatpush1.bf16.msra.mxu0 0
    %2388 = vmatprep.subr.bf16.mxu0 0
    %2389 = vmatpush1.bf16.msra.mxu0 0
    %2390 = vmatprep.subr.bf16.mxu0 0
    %2391 = vmatpush1.bf16.msra.mxu0 0
    %2392 = vmatprep.subr.bf16.mxu0 0
    %2393 = vmatpush1.bf16.msra.mxu0 0
    %2394 = vmatprep.subr.bf16.mxu0 0
    %2395 = vmatpush1.bf16.msra.mxu0 0
    %2396 = vmatprep.subr.bf16.mxu0 0
    %2397 = vmatpush1.bf16.msra.mxu0 0
    %2398 = vmatprep.subr.bf16.mxu0 0
    %2399 = vmatpush1.bf16.msra.mxu0 0
    %2400 = vmatprep.subr.bf16.mxu0 0
    %2401 = vmatpush1.bf16.msra.mxu0 0
    %2402 = vmatprep.subr.bf16.mxu0 0
    %2403 = vmatpush1.bf16.msra.mxu0 0
    %2404 = vmatprep.subr.bf16.mxu0 0
    %2405 = vmatpush1.bf16.msra.mxu0 0
    %2406 = vmatprep.subr.bf16.mxu0 0
    %2407 = vmatpush1.bf16.msra.mxu0 0
    %2408 = vmatprep.subr.bf16.mxu0 0
    %2409 = vmatpush1.bf16.msra.mxu0 0
    %2410 = vmatprep.mubr.bf16.mxu0 0
    %2411 = vmatmul.mubr.bf16.gmra.mrb[0].mxu0 %v2376
    %v2412 = vpop.f32.mrb[0].mxu0
    %v2413 = vadd.f32 %v2349, %v2412
    %v2414 = vpop.f32.mrb[0].mxu0
    %v2415 = vpop.f32.mrb[0].mxu0
    %v2416 = vadd.f32 %v2349, %v2415
    %v2417 = vpop.f32.mrb[0].mxu0
    %2418 = vdwg.mxu0
    %2419 = vst [vmem:[#allocation4] sm:$0xff] %v2413
    %2420 = vst [vmem:[#allocation4 + $0x8] sm:$0xff] %v2416
    // Predicated region
    $region38: #{pos_tagger_forward.1} parent=1 // pred_check
      _
    $region39: #{pos_tagger_forward.1} parent=1 // pred_check_branch
      %2422 = sbr.rel (0) target = $region41
    $region40: #{pos_tagger_forward.1} parent=1 // pred_region
      %s2424 = ssub.s32 256, 256
      %2425 = vsyncadd [#allocation5], %s2424
      %s2426 = sshll.u32 [#allocation4], 4
      %s2427 = int_to_ptr.vmem [resolvable:$true] %s2426
      %2432 = dma.vmem_to_hbm [thread:$0]  %s2427, 256, %s9, [#allocation5], 128, 128, 8
    $region41: #{pos_tagger_forward.1} parent=1 // pred_fallthru
      _
    // Predicated region
    $region42: #{pos_tagger_forward.1} parent=1 // pred_check
      _
    $region43: #{pos_tagger_forward.1} parent=1 // pred_check_branch
      %2434 = sbr.rel (0) target = $region45
    $region44: #{pos_tagger_forward.1} parent=1 // pred_region
      %2435 = dma.done [#allocation5], 256
    $region45: #{pos_tagger_forward.1} parent=1 // pred_fallthru
      _
    %2436 = vsyncpa [#allocation5], 1

</llo_original>
